<compile_context>
chip_gen: v7x
topology: tpu7x:2x2x1
jax: 0.10.0
libtpu: 0.0.40
codegen_flags: <defaults>
</compile_context>

<pallas_src>
import functools

import jax
import jax.numpy as jnp
from jax import lax
from jax.experimental import pallas as pl
from jax.experimental.pallas import tpu as pltpu

EPS = 1e-5  # nn.GroupNorm default eps


def _round_up(n, m):
    return ((n + m - 1) // m) * m


# ---------------------------------------------------------------------------
# Fused Bottleneck kernel (one grid step == one batch element)
# ---------------------------------------------------------------------------
def _bottleneck_kernel(x_ref, w1_ref, g1_ref, b1_ref, w2_ref, g2_ref, b2_ref,
                       o_ref, tpad_ref, *, H, W, pad, cm_real, c2_real, add):
    M = H * W
    Cmp = tpad_ref.shape[1]

    x = x_ref[0]                                               # (M, C1p) f32

    # ---- cv1: 1x1 conv (bf16 on MXU, f32 accumulation) + GN(1) + ReLU -----
    y1 = jnp.dot(x.astype(jnp.bfloat16), w1_ref[...],
                 preferred_element_type=jnp.float32)           # (M, Cmp) f32
    cnt1 = float(M * cm_real)                                  # real elems only
    mean1 = jnp.sum(y1) / cnt1                                 # single-pass stats
    var1 = jnp.sum(y1 * y1) / cnt1 - mean1 * mean1
    t = (y1 - mean1) * lax.rsqrt(var1 + EPS) * g1_ref[...] + b1_ref[...]
    t = jnp.maximum(t, 0.0)                                    # (M, Cmp) f32

    # ---- stage cv1 output into a vertically haloed VMEM scratch ------------
    tpad_ref[0:pad, :] = jnp.zeros((pad, Cmp), jnp.float32)
    tpad_ref[pad + M:pad + M + pad, :] = jnp.zeros((pad, Cmp), jnp.float32)
    tpad_ref[pad:pad + M, :] = t

    # ---- cv2: 3x3 conv (pad=1) as 9 shifted-slice matmuls (fused im2col) ---
    col = lax.broadcasted_iota(jnp.int32, (M, 1), 0) % W
    not_left = col != 0          # output column 0 has no dx = -1 neighbour
    not_right = col != (W - 1)   # output column W-1 has no dx = +1 neighbour

    acc = jnp.zeros((M, w2_ref.shape[2]), jnp.float32)
    for tap in range(9):
        dy, dx = tap // 3 - 1, tap % 3 - 1
        start = pad + dy * W + dx                              # static offset
        slab = tpad_ref[start:start + M, :]                    # (M, Cmp) f32
        contrib = jnp.dot(slab.astype(jnp.bfloat16), w2_ref[tap],
                          preferred_element_type=jnp.float32)  # (M, C2p) f32
        if dx == -1:
            contrib = jnp.where(not_left, contrib, 0.0)
        elif dx == 1:
            contrib = jnp.where(not_right, contrib, 0.0)
        acc = acc + contrib

    # ---- GN(1) + ReLU on cv2 output, optional residual add -----------------
    cnt2 = float(M * c2_real)
    mean2 = jnp.sum(acc) / cnt2
    var2 = jnp.sum(acc * acc) / cnt2 - mean2 * mean2
    out = (acc - mean2) * lax.rsqrt(var2 + EPS) * g2_ref[...] + b2_ref[...]
    out = jnp.maximum(out, 0.0)
    if add:                                                    # c1 == c2 only
        out = out + x                                          # exact f32 residual
    o_ref[0] = out


# ---------------------------------------------------------------------------
# Wrapper: NCHW <-> (N, H*W, C) layout, channel padding, pallas_call plumbing
# ---------------------------------------------------------------------------
def bottleneck_forward(x_nchw, params):
    N, C1, H, W = x_nchw.shape
    M = H * W
    c_ = params["w1"].shape[1]
    C2 = params["w2"].shape[2]
    add = params["add"]

    C1p = _round_up(C1, 128)
    Cmp = _round_up(c_, 128)
    C2p = _round_up(C2, 128)
    PAD = _round_up(W + 1, 8)          # vertical halo rows, sublane-aligned

    # NCHW -> (N, H*W, C1) f32, zero-pad channels to lane-dense width.
    x = jnp.transpose(x_nchw, (0, 2, 3, 1)).reshape(N, M, C1).astype(jnp.float32)
    x = jnp.pad(x, ((0, 0), (0, 0), (0, C1p - C1)))

    # Zero-pad weights / affine params in the wrapper (static, free).
    w1 = jnp.pad(params["w1"], ((0, C1p - C1), (0, Cmp - c_))).astype(jnp.bfloat16)
    g1 = jnp.pad(params["g1"], (0, Cmp - c_)).reshape(1, Cmp)
    b1 = jnp.pad(params["b1"], (0, Cmp - c_)).reshape(1, Cmp)
    w2 = jnp.pad(params["w2"], ((0, 0), (0, Cmp - c_), (0, C2p - C2))).astype(jnp.bfloat16)
    g2 = jnp.pad(params["g2"], (0, C2p - C2)).reshape(1, C2p)
    b2 = jnp.pad(params["b2"], (0, C2p - C2)).reshape(1, C2p)

    kernel = functools.partial(
        _bottleneck_kernel, H=H, W=W, pad=PAD,
        cm_real=c_, c2_real=C2, add=add)

    flops = N * (2 * M * C1p * Cmp + 9 * 2 * M * Cmp * C2p)
    bytes_accessed = (x.size * 4 + w1.size * 2 + w2.size * 2
                      + (g1.size + b1.size + g2.size + b2.size) * 4
                      + N * M * C2p * 4)

    block_bytes = (2 * M * (C1p + C2p) * 4             # x / out double-buffers
                   + 2 * (w1.size + w2.size) * 2       # bf16 weights, 2 buffers
                   + (M + 2 * PAD) * Cmp * 4           # haloed scratch
                   + 8 * (Cmp + C2p) * 4)              # affine params
    vmem_limit = int(min(64 * 2**20, max(32 * 2**20, 2 * block_bytes)))

    out = pl.pallas_call(
        kernel,
        out_shape=jax.ShapeDtypeStruct((N, M, C2p), jnp.float32),
        grid=(N,),
        in_specs=[
            pl.BlockSpec((1, M, C1p), lambda b: (b, 0, 0)),
            pl.BlockSpec((C1p, Cmp), lambda b: (0, 0)),
            pl.BlockSpec((1, Cmp), lambda b: (0, 0)),
            pl.BlockSpec((1, Cmp), lambda b: (0, 0)),
            pl.BlockSpec((9, Cmp, C2p), lambda b: (0, 0, 0)),
            pl.BlockSpec((1, C2p), lambda b: (0, 0)),
            pl.BlockSpec((1, C2p), lambda b: (0, 0)),
        ],
        out_specs=pl.BlockSpec((1, M, C2p), lambda b: (b, 0, 0)),
        scratch_shapes=[pltpu.VMEM((M + 2 * PAD, Cmp), jnp.float32)],
        compiler_params=pltpu.CompilerParams(
            dimension_semantics=("parallel",),
            vmem_limit_bytes=vmem_limit),
        cost_estimate=pl.CostEstimate(
            flops=flops, transcendentals=2 * N, bytes_accessed=bytes_accessed),
    )(x, w1, g1, b1, w2, g2, b2)

    out = out[:, :, :C2].reshape(N, H, W, C2)
    return jnp.transpose(out, (0, 3, 1, 2))


# ---------------------------------------------------------------------------
# Deterministic synthetic parameters (mirrors Bottleneck.__init__ shapes)
# ---------------------------------------------------------------------------
def init_params(key, c1, c2, shortcut=True, e=0.5):
    c_ = int(c2 * e)
    k = jax.random.split(key, 6)
    return {
        "w1": 0.3 * jax.random.normal(k[0], (c1, c_), jnp.float32),       # cv1 1x1
        "g1": 1.0 + 0.1 * jax.random.normal(k[1], (c_,), jnp.float32),
        "b1": 0.1 * jax.random.normal(k[2], (c_,), jnp.float32),
        "w2": 0.3 * jax.random.normal(k[3], (9, c_, c2), jnp.float32),    # cv2 3x3 taps
        "g2": 1.0 + 0.1 * jax.random.normal(k[4], (c2,), jnp.float32),
        "b2": 0.1 * jax.random.normal(k[5], (c2,), jnp.float32),
        "add": bool(shortcut and c1 == c2),
    }


# ---------------------------------------------------------------------------
# Pure-JAX reference (module semantics); matmul_dtype lets us match the
# kernel's bf16 matmul rounding for a tight comparison.
# ---------------------------------------------------------------------------
def _ref_gn_relu(x_nhwc, gamma, beta):
    N = x_nhwc.shape[0]
    xf = x_nhwc.reshape(N, -1)
    mean = xf.mean(axis=1)
    var = jnp.mean((xf - mean[:, None]) ** 2, axis=1)
    mean = mean.reshape(N, 1, 1, 1)
    var = var.reshape(N, 1, 1, 1)
    y = (x_nhwc - mean) * lax.rsqrt(var + EPS) * gamma + beta
    return jnp.maximum(y, 0.0)


def reference_forward(x_nchw, p, matmul_dtype=jnp.float32):
    md = matmul_dtype
    x = jnp.transpose(x_nchw, (0, 2, 3, 1)).astype(jnp.float32)   # NHWC
    t = jnp.einsum("nhwc,cf->nhwf", x.astype(md), p["w1"].astype(md),
                   preferred_element_type=jnp.float32)
    t = _ref_gn_relu(t, p["g1"], p["b1"])
    c_, c2 = p["w2"].shape[1], p["w2"].shape[2]
    w_hwio = p["w2"].reshape(3, 3, c_, c2)
    y = lax.conv_general_dilated(t.astype(md), w_hwio.astype(md), (1, 1),
                                 ((1, 1), (1, 1)),
                                 dimension_numbers=("NHWC", "HWIO", "NHWC"),
                                 preferred_element_type=jnp.float32)
    y = _ref_gn_relu(y, p["g2"], p["b2"])
    if p["add"]:
        y = y + x
    return jnp.transpose(y, (0, 3, 1, 2))


# ---------------------------------------------------------------------------
if __name__ == "__main__":
    key = jax.random.PRNGKey(0)
    N, H, W = 2, 16, 16
    configs = [
        dict(c1=8, c2=8, shortcut=True),   # residual path (c1 == c2)
        dict(c1=4, c2=8, shortcut=True),   # add=False (c1 != c2)
    ]

    for cfg in configs:
        key, kx, kp = jax.random.split(key, 3)
        x = jax.random.normal(kx, (N, cfg["c1"], H, W), jnp.float32)
        params = init_params(kp, cfg["c1"], cfg["c2"], shortcut=cfg["shortcut"])

        out = jax.block_until_ready(bottleneck_forward(x, params))

        ref_bf16 = reference_forward(x, params, matmul_dtype=jnp.bfloat16)
        ref_f32 = reference_forward(x, params, matmul_dtype=jnp.float32)

        assert out.shape == (N, cfg["c2"], H, W), out.shape
        # Tight check vs. a reference that matches the kernel's bf16 matmuls.
        assert jnp.allclose(out, ref_bf16, atol=2e-3, rtol=2e-3), \
            float(jnp.max(jnp.abs(out - ref_bf16)))
        # Semantic sanity check vs. pure-f32 module math (bf16 matmul tolerance).
        assert jnp.allclose(out, ref_f32, atol=5e-2, rtol=5e-2), \
            float(jnp.max(jnp.abs(out - ref_f32)))

    print("KERNEL_OK")
</pallas_src>

<mosaic_0001>
module attributes {stable_mosaic.version = 11 : i64} {
  func.func @_bottleneck_kernel(%arg0: i32, %arg1: memref<1x256x128xf32, #tpu.memory_space<vmem>>, %arg2: memref<128x128xbf16, #tpu.memory_space<vmem>>, %arg3: memref<1x128xf32, #tpu.memory_space<vmem>>, %arg4: memref<1x128xf32, #tpu.memory_space<vmem>>, %arg5: memref<9x128x128xbf16, #tpu.memory_space<vmem>>, %arg6: memref<1x128xf32, #tpu.memory_space<vmem>>, %arg7: memref<1x128xf32, #tpu.memory_space<vmem>>, %arg8: memref<1x256x128xf32, #tpu.memory_space<vmem>>, %arg9: memref<304x128xf32, #tpu.memory_space<vmem>>) attributes {dimension_semantics = [#tpu.dimension_semantics<parallel>], iteration_bounds = array<i64: 2>, scalar_prefetch = 0 : i64, scratch_operands = 1 : i64, tpu.core_type = #tpu.core_type<tc>, window_params = [{transform_indices = @transform_0, window_bounds = array<i64: 1, 256, 128>}, {pipeline_mode = #tpu.pipeline_mode<synchronous>, transform_indices = @transform_1, window_bounds = array<i64: 128, 128>}, {pipeline_mode = #tpu.pipeline_mode<synchronous>, transform_indices = @transform_2, window_bounds = array<i64: 1, 128>}, {pipeline_mode = #tpu.pipeline_mode<synchronous>, transform_indices = @transform_3, window_bounds = array<i64: 1, 128>}, {pipeline_mode = #tpu.pipeline_mode<synchronous>, transform_indices = @transform_4, window_bounds = array<i64: 9, 128, 128>}, {pipeline_mode = #tpu.pipeline_mode<synchronous>, transform_indices = @transform_5, window_bounds = array<i64: 1, 128>}, {pipeline_mode = #tpu.pipeline_mode<synchronous>, transform_indices = @transform_6, window_bounds = array<i64: 1, 128>}, {transform_indices = @transform_7, window_bounds = array<i64: 1, 256, 128>}]} {
    %c0 = arith.constant 0 : index
    %c0_0 = arith.constant 0 : index
    %c0_1 = arith.constant 0 : index
    %0 = vector.load %arg1[%c0, %c0_0, %c0_1] : memref<1x256x128xf32, #tpu.memory_space<vmem>>, vector<1x256x128xf32>
    %1 = vector.shape_cast %0 : vector<1x256x128xf32> to vector<256x128xf32>
    %2 = arith.truncf %1 : vector<256x128xf32> to vector<256x128xbf16>
    %c0_2 = arith.constant 0 : index
    %c0_3 = arith.constant 0 : index
    %3 = vector.load %arg2[%c0_2, %c0_3] : memref<128x128xbf16, #tpu.memory_space<vmem>>, vector<128x128xbf16>
    %cst = arith.constant dense<0.000000e+00> : vector<256x128xf32>
    %4 = tpu.matmul %2, %3, %cst {dimension_numbers = #tpu.dot_dimension_numbers<[1], [0], [0], [1], [0, 0, 1, 1], [], []>} : vector<256x128xbf16>, vector<128x128xbf16>, vector<256x128xf32> -> vector<256x128xf32>
    %5 = vector.shape_cast %4 : vector<256x128xf32> to vector<1x256x128xf32>
    %cst_4 = arith.constant dense<0.000000e+00> : vector<1xf32>
    %6 = vector.multi_reduction <add>, %5, %cst_4 [1, 2] : vector<1x256x128xf32> to vector<1xf32>
    %7 = vector.shape_cast %6 : vector<1xf32> to vector<1x1x1xf32>
    %8 = vector.extract %7[0, 0, 0] : f32 from vector<1x1x1xf32>
    %cst_5 = arith.constant 1.024000e+03 : f32
    %9 = arith.divf %8, %cst_5 : f32
    %10 = arith.mulf %4, %4 : vector<256x128xf32>
    %11 = vector.shape_cast %10 : vector<256x128xf32> to vector<1x256x128xf32>
    %cst_6 = arith.constant dense<0.000000e+00> : vector<1xf32>
    %12 = vector.multi_reduction <add>, %11, %cst_6 [1, 2] : vector<1x256x128xf32> to vector<1xf32>
    %13 = vector.shape_cast %12 : vector<1xf32> to vector<1x1x1xf32>
    %14 = vector.extract %13[0, 0, 0] : f32 from vector<1x1x1xf32>
    %cst_7 = arith.constant 1.024000e+03 : f32
    %15 = arith.divf %14, %cst_7 : f32
    %16 = arith.mulf %9, %9 : f32
    %17 = arith.subf %15, %16 : f32
    %18 = vector.broadcast %9 : f32 to vector<256x128xf32>
    %19 = arith.subf %4, %18 : vector<256x128xf32>
    %cst_8 = arith.constant 9.99999974E-6 : f32
    %20 = arith.addf %17, %cst_8 : f32
    %21 = math.rsqrt %20 : f32
    %22 = vector.broadcast %21 : f32 to vector<256x128xf32>
    %23 = arith.mulf %19, %22 : vector<256x128xf32>
    %c0_9 = arith.constant 0 : index
    %c0_10 = arith.constant 0 : index
    %24 = vector.load %arg3[%c0_9, %c0_10] : memref<1x128xf32, #tpu.memory_space<vmem>>, vector<1x128xf32>
    %25 = vector.broadcast %24 : vector<1x128xf32> to vector<256x128xf32>
    %26 = arith.mulf %23, %25 : vector<256x128xf32>
    %c0_11 = arith.constant 0 : index
    %c0_12 = arith.constant 0 : index
    %27 = vector.load %arg4[%c0_11, %c0_12] : memref<1x128xf32, #tpu.memory_space<vmem>>, vector<1x128xf32>
    %28 = vector.broadcast %27 : vector<1x128xf32> to vector<256x128xf32>
    %29 = arith.addf %26, %28 : vector<256x128xf32>
    %cst_13 = arith.constant 0.000000e+00 : f32
    %30 = vector.broadcast %cst_13 : f32 to vector<256x128xf32>
    %31 = arith.maximumf %29, %30 : vector<256x128xf32>
    %cst_14 = arith.constant 0.000000e+00 : f32
    %32 = vector.broadcast %cst_14 : f32 to vector<24x128xf32>
    %c0_15 = arith.constant 0 : index
    %c0_16 = arith.constant 0 : index
    %33 = vector.load %arg9[%c0_15, %c0_16] : memref<304x128xf32, #tpu.memory_space<vmem>>, vector<24x128xf32>
    tpu.vector_store %arg9[%c0_15, %c0_16], %32 {strides = array<i32>} : memref<304x128xf32, #tpu.memory_space<vmem>>, vector<24x128xf32>,
    %cst_17 = arith.constant 0.000000e+00 : f32
    %34 = vector.broadcast %cst_17 : f32 to vector<24x128xf32>
    %c280 = arith.constant 280 : index
    %c0_18 = arith.constant 0 : index
    %35 = vector.load %arg9[%c280, %c0_18] : memref<304x128xf32, #tpu.memory_space<vmem>>, vector<24x128xf32>
    tpu.vector_store %arg9[%c280, %c0_18], %34 {strides = array<i32>} : memref<304x128xf32, #tpu.memory_space<vmem>>, vector<24x128xf32>,
    %c24 = arith.constant 24 : index
    %c0_19 = arith.constant 0 : index
    %36 = vector.load %arg9[%c24, %c0_19] : memref<304x128xf32, #tpu.memory_space<vmem>>, vector<256x128xf32>
    tpu.vector_store %arg9[%c24, %c0_19], %31 {strides = array<i32>} : memref<304x128xf32, #tpu.memory_space<vmem>>, vector<256x128xf32>,
    %37 = tpu.iota {dimensions = array<i32: 0>} : vector<256x1xi32>
    %c16_i32 = arith.constant 16 : i32
    %c0_i32 = arith.constant 0 : i32
    %38 = arith.cmpi eq, %c16_i32, %c0_i32 : i32
    %c1_i32 = arith.constant 1 : i32
    %39 = arith.select %38, %c1_i32, %c16_i32 : i32
    %40 = vector.broadcast %39 : i32 to vector<256x1xi32>
    %41 = arith.remsi %37, %40 : vector<256x1xi32>
    %c0_i32_20 = arith.constant 0 : i32
    %42 = vector.broadcast %c0_i32_20 : i32 to vector<256x1xi32>
    %43 = arith.cmpi ne, %41, %42 : vector<256x1xi32>
    %c0_i32_21 = arith.constant 0 : i32
    %44 = vector.broadcast %c0_i32_21 : i32 to vector<256x1xi32>
    %45 = arith.cmpi slt, %41, %44 : vector<256x1xi32>
    %c0_i32_22 = arith.constant 0 : i32
    %46 = arith.cmpi slt, %39, %c0_i32_22 : i32
    %47 = vector.broadcast %46 : i1 to vector<256x1xi1>
    %48 = vector.broadcast %47 : vector<256x1xi1> to vector<256x1xi1>
    %49 = arith.xori %45, %48 : vector<256x1xi1>
    %50 = arith.andi %49, %43 : vector<256x1xi1>
    %51 = vector.broadcast %39 : i32 to vector<256x1xi32>
    %52 = arith.addi %41, %51 : vector<256x1xi32>
    %53 = arith.select %50, %52, %41 : vector<256x1xi1>, vector<256x1xi32>
    %c0_i32_23 = arith.constant 0 : i32
    %54 = vector.broadcast %c0_i32_23 : i32 to vector<256x1xi32>
    %55 = arith.cmpi ne, %53, %54 : vector<256x1xi32>
    %c15_i32 = arith.constant 15 : i32
    %56 = vector.broadcast %c15_i32 : i32 to vector<256x1xi32>
    %57 = arith.cmpi ne, %53, %56 : vector<256x1xi32>
    %cst_24 = arith.constant 0.000000e+00 : f32
    %58 = vector.broadcast %cst_24 : f32 to vector<256x128xf32>
    %c7 = arith.constant 7 : index
    %c0_25 = arith.constant 0 : index
    %59 = vector.load %arg9[%c7, %c0_25] : memref<304x128xf32, #tpu.memory_space<vmem>>, vector<256x128xf32>
    %60 = arith.truncf %59 : vector<256x128xf32> to vector<256x128xbf16>
    %c0_26 = arith.constant 0 : index
    %c0_27 = arith.constant 0 : index
    %c0_28 = arith.constant 0 : index
    %61 = vector.load %arg5[%c0_26, %c0_27, %c0_28] : memref<9x128x128xbf16, #tpu.memory_space<vmem>>, vector<1x128x128xbf16>
    %62 = vector.shape_cast %61 : vector<1x128x128xbf16> to vector<128x128xbf16>
    %cst_29 = arith.constant dense<0.000000e+00> : vector<256x128xf32>
    %63 = tpu.matmul %60, %62, %cst_29 {dimension_numbers = #tpu.dot_dimension_numbers<[1], [0], [0], [1], [0, 0, 1, 1], [], []>} : vector<256x128xbf16>, vector<128x128xbf16>, vector<256x128xf32> -> vector<256x128xf32>
    %cst_30 = arith.constant 0.000000e+00 : f32
    %64 = vector.shape_cast %55 : vector<256x1xi1> to vector<256x1xi1>
    %65 = vector.broadcast %64 : vector<256x1xi1> to vector<256x128xi1>
    %66 = vector.broadcast %cst_30 : f32 to vector<256x128xf32>
    %67 = arith.select %65, %63, %66 : vector<256x128xi1>, vector<256x128xf32>
    %68 = arith.addf %58, %67 : vector<256x128xf32>
    %c8 = arith.constant 8 : index
    %c0_31 = arith.constant 0 : index
    %69 = vector.load %arg9[%c8, %c0_31] : memref<304x128xf32, #tpu.memory_space<vmem>>, vector<256x128xf32>
    %70 = arith.truncf %69 : vector<256x128xf32> to vector<256x128xbf16>
    %c1 = arith.constant 1 : index
    %c0_32 = arith.constant 0 : index
    %c0_33 = arith.constant 0 : index
    %71 = vector.load %arg5[%c1, %c0_32, %c0_33] : memref<9x128x128xbf16, #tpu.memory_space<vmem>>, vector<1x128x128xbf16>
    %72 = vector.shape_cast %71 : vector<1x128x128xbf16> to vector<128x128xbf16>
    %cst_34 = arith.constant dense<0.000000e+00> : vector<256x128xf32>
    %73 = tpu.matmul %70, %72, %cst_34 {dimension_numbers = #tpu.dot_dimension_numbers<[1], [0], [0], [1], [0, 0, 1, 1], [], []>} : vector<256x128xbf16>, vector<128x128xbf16>, vector<256x128xf32> -> vector<256x128xf32>
    %74 = arith.addf %68, %73 : vector<256x128xf32>
    %c9 = arith.constant 9 : index
    %c0_35 = arith.constant 0 : index
    %75 = vector.load %arg9[%c9, %c0_35] : memref<304x128xf32, #tpu.memory_space<vmem>>, vector<256x128xf32>
    %76 = arith.truncf %75 : vector<256x128xf32> to vector<256x128xbf16>
    %c2 = arith.constant 2 : index
    %c0_36 = arith.constant 0 : index
    %c0_37 = arith.constant 0 : index
    %77 = vector.load %arg5[%c2, %c0_36, %c0_37] : memref<9x128x128xbf16, #tpu.memory_space<vmem>>, vector<1x128x128xbf16>
    %78 = vector.shape_cast %77 : vector<1x128x128xbf16> to vector<128x128xbf16>
    %cst_38 = arith.constant dense<0.000000e+00> : vector<256x128xf32>
    %79 = tpu.matmul %76, %78, %cst_38 {dimension_numbers = #tpu.dot_dimension_numbers<[1], [0], [0], [1], [0, 0, 1, 1], [], []>} : vector<256x128xbf16>, vector<128x128xbf16>, vector<256x128xf32> -> vector<256x128xf32>
    %cst_39 = arith.constant 0.000000e+00 : f32
    %80 = vector.shape_cast %57 : vector<256x1xi1> to vector<256x1xi1>
    %81 = vector.broadcast %80 : vector<256x1xi1> to vector<256x128xi1>
    %82 = vector.broadcast %cst_39 : f32 to vector<256x128xf32>
    %83 = arith.select %81, %79, %82 : vector<256x128xi1>, vector<256x128xf32>
    %84 = arith.addf %74, %83 : vector<256x128xf32>
    %c23 = arith.constant 23 : index
    %c0_40 = arith.constant 0 : index
    %85 = vector.load %arg9[%c23, %c0_40] : memref<304x128xf32, #tpu.memory_space<vmem>>, vector<256x128xf32>
    %86 = arith.truncf %85 : vector<256x128xf32> to vector<256x128xbf16>
    %c3 = arith.constant 3 : index
    %c0_41 = arith.constant 0 : index
    %c0_42 = arith.constant 0 : index
    %87 = vector.load %arg5[%c3, %c0_41, %c0_42] : memref<9x128x128xbf16, #tpu.memory_space<vmem>>, vector<1x128x128xbf16>
    %88 = vector.shape_cast %87 : vector<1x128x128xbf16> to vector<128x128xbf16>
    %cst_43 = arith.constant dense<0.000000e+00> : vector<256x128xf32>
    %89 = tpu.matmul %86, %88, %cst_43 {dimension_numbers = #tpu.dot_dimension_numbers<[1], [0], [0], [1], [0, 0, 1, 1], [], []>} : vector<256x128xbf16>, vector<128x128xbf16>, vector<256x128xf32> -> vector<256x128xf32>
    %cst_44 = arith.constant 0.000000e+00 : f32
    %90 = vector.shape_cast %55 : vector<256x1xi1> to vector<256x1xi1>
    %91 = vector.broadcast %90 : vector<256x1xi1> to vector<256x128xi1>
    %92 = vector.broadcast %cst_44 : f32 to vector<256x128xf32>
    %93 = arith.select %91, %89, %92 : vector<256x128xi1>, vector<256x128xf32>
    %94 = arith.addf %84, %93 : vector<256x128xf32>
    %c24_45 = arith.constant 24 : index
    %c0_46 = arith.constant 0 : index
    %95 = vector.load %arg9[%c24_45, %c0_46] : memref<304x128xf32, #tpu.memory_space<vmem>>, vector<256x128xf32>
    %96 = arith.truncf %95 : vector<256x128xf32> to vector<256x128xbf16>
    %c4 = arith.constant 4 : index
    %c0_47 = arith.constant 0 : index
    %c0_48 = arith.constant 0 : index
    %97 = vector.load %arg5[%c4, %c0_47, %c0_48] : memref<9x128x128xbf16, #tpu.memory_space<vmem>>, vector<1x128x128xbf16>
    %98 = vector.shape_cast %97 : vector<1x128x128xbf16> to vector<128x128xbf16>
    %cst_49 = arith.constant dense<0.000000e+00> : vector<256x128xf32>
    %99 = tpu.matmul %96, %98, %cst_49 {dimension_numbers = #tpu.dot_dimension_numbers<[1], [0], [0], [1], [0, 0, 1, 1], [], []>} : vector<256x128xbf16>, vector<128x128xbf16>, vector<256x128xf32> -> vector<256x128xf32>
    %100 = arith.addf %94, %99 : vector<256x128xf32>
    %c25 = arith.constant 25 : index
    %c0_50 = arith.constant 0 : index
    %101 = vector.load %arg9[%c25, %c0_50] : memref<304x128xf32, #tpu.memory_space<vmem>>, vector<256x128xf32>
    %102 = arith.truncf %101 : vector<256x128xf32> to vector<256x128xbf16>
    %c5 = arith.constant 5 : index
    %c0_51 = arith.constant 0 : index
    %c0_52 = arith.constant 0 : index
    %103 = vector.load %arg5[%c5, %c0_51, %c0_52] : memref<9x128x128xbf16, #tpu.memory_space<vmem>>, vector<1x128x128xbf16>
    %104 = vector.shape_cast %103 : vector<1x128x128xbf16> to vector<128x128xbf16>
    %cst_53 = arith.constant dense<0.000000e+00> : vector<256x128xf32>
    %105 = tpu.matmul %102, %104, %cst_53 {dimension_numbers = #tpu.dot_dimension_numbers<[1], [0], [0], [1], [0, 0, 1, 1], [], []>} : vector<256x128xbf16>, vector<128x128xbf16>, vector<256x128xf32> -> vector<256x128xf32>
    %cst_54 = arith.constant 0.000000e+00 : f32
    %106 = vector.shape_cast %57 : vector<256x1xi1> to vector<256x1xi1>
    %107 = vector.broadcast %106 : vector<256x1xi1> to vector<256x128xi1>
    %108 = vector.broadcast %cst_54 : f32 to vector<256x128xf32>
    %109 = arith.select %107, %105, %108 : vector<256x128xi1>, vector<256x128xf32>
    %110 = arith.addf %100, %109 : vector<256x128xf32>
    %c39 = arith.constant 39 : index
    %c0_55 = arith.constant 0 : index
    %111 = vector.load %arg9[%c39, %c0_55] : memref<304x128xf32, #tpu.memory_space<vmem>>, vector<256x128xf32>
    %112 = arith.truncf %111 : vector<256x128xf32> to vector<256x128xbf16>
    %c6 = arith.constant 6 : index
    %c0_56 = arith.constant 0 : index
    %c0_57 = arith.constant 0 : index
    %113 = vector.load %arg5[%c6, %c0_56, %c0_57] : memref<9x128x128xbf16, #tpu.memory_space<vmem>>, vector<1x128x128xbf16>
    %114 = vector.shape_cast %113 : vector<1x128x128xbf16> to vector<128x128xbf16>
    %cst_58 = arith.constant dense<0.000000e+00> : vector<256x128xf32>
    %115 = tpu.matmul %112, %114, %cst_58 {dimension_numbers = #tpu.dot_dimension_numbers<[1], [0], [0], [1], [0, 0, 1, 1], [], []>} : vector<256x128xbf16>, vector<128x128xbf16>, vector<256x128xf32> -> vector<256x128xf32>
    %cst_59 = arith.constant 0.000000e+00 : f32
    %116 = vector.shape_cast %55 : vector<256x1xi1> to vector<256x1xi1>
    %117 = vector.broadcast %116 : vector<256x1xi1> to vector<256x128xi1>
    %118 = vector.broadcast %cst_59 : f32 to vector<256x128xf32>
    %119 = arith.select %117, %115, %118 : vector<256x128xi1>, vector<256x128xf32>
    %120 = arith.addf %110, %119 : vector<256x128xf32>
    %c40 = arith.constant 40 : index
    %c0_60 = arith.constant 0 : index
    %121 = vector.load %arg9[%c40, %c0_60] : memref<304x128xf32, #tpu.memory_space<vmem>>, vector<256x128xf32>
    %122 = arith.truncf %121 : vector<256x128xf32> to vector<256x128xbf16>
    %c7_61 = arith.constant 7 : index
    %c0_62 = arith.constant 0 : index
    %c0_63 = arith.constant 0 : index
    %123 = vector.load %arg5[%c7_61, %c0_62, %c0_63] : memref<9x128x128xbf16, #tpu.memory_space<vmem>>, vector<1x128x128xbf16>
    %124 = vector.shape_cast %123 : vector<1x128x128xbf16> to vector<128x128xbf16>
    %cst_64 = arith.constant dense<0.000000e+00> : vector<256x128xf32>
    %125 = tpu.matmul %122, %124, %cst_64 {dimension_numbers = #tpu.dot_dimension_numbers<[1], [0], [0], [1], [0, 0, 1, 1], [], []>} : vector<256x128xbf16>, vector<128x128xbf16>, vector<256x128xf32> -> vector<256x128xf32>
    %126 = arith.addf %120, %125 : vector<256x128xf32>
    %c41 = arith.constant 41 : index
    %c0_65 = arith.constant 0 : index
    %127 = vector.load %arg9[%c41, %c0_65] : memref<304x128xf32, #tpu.memory_space<vmem>>, vector<256x128xf32>
    %128 = arith.truncf %127 : vector<256x128xf32> to vector<256x128xbf16>
    %c8_66 = arith.constant 8 : index
    %c0_67 = arith.constant 0 : index
    %c0_68 = arith.constant 0 : index
    %129 = vector.load %arg5[%c8_66, %c0_67, %c0_68] : memref<9x128x128xbf16, #tpu.memory_space<vmem>>, vector<1x128x128xbf16>
    %130 = vector.shape_cast %129 : vector<1x128x128xbf16> to vector<128x128xbf16>
    %cst_69 = arith.constant dense<0.000000e+00> : vector<256x128xf32>
    %131 = tpu.matmul %128, %130, %cst_69 {dimension_numbers = #tpu.dot_dimension_numbers<[1], [0], [0], [1], [0, 0, 1, 1], [], []>} : vector<256x128xbf16>, vector<128x128xbf16>, vector<256x128xf32> -> vector<256x128xf32>
    %cst_70 = arith.constant 0.000000e+00 : f32
    %132 = vector.shape_cast %57 : vector<256x1xi1> to vector<256x1xi1>
    %133 = vector.broadcast %132 : vector<256x1xi1> to vector<256x128xi1>
    %134 = vector.broadcast %cst_70 : f32 to vector<256x128xf32>
    %135 = arith.select %133, %131, %134 : vector<256x128xi1>, vector<256x128xf32>
    %136 = arith.addf %126, %135 : vector<256x128xf32>
    %137 = vector.shape_cast %136 : vector<256x128xf32> to vector<1x256x128xf32>
    %cst_71 = arith.constant dense<0.000000e+00> : vector<1xf32>
    %138 = vector.multi_reduction <add>, %137, %cst_71 [1, 2] : vector<1x256x128xf32> to vector<1xf32>
    %139 = vector.shape_cast %138 : vector<1xf32> to vector<1x1x1xf32>
    %140 = vector.extract %139[0, 0, 0] : f32 from vector<1x1x1xf32>
    %cst_72 = arith.constant 2.048000e+03 : f32
    %141 = arith.divf %140, %cst_72 : f32
    %142 = arith.mulf %136, %136 : vector<256x128xf32>
    %143 = vector.shape_cast %142 : vector<256x128xf32> to vector<1x256x128xf32>
    %cst_73 = arith.constant dense<0.000000e+00> : vector<1xf32>
    %144 = vector.multi_reduction <add>, %143, %cst_73 [1, 2] : vector<1x256x128xf32> to vector<1xf32>
    %145 = vector.shape_cast %144 : vector<1xf32> to vector<1x1x1xf32>
    %146 = vector.extract %145[0, 0, 0] : f32 from vector<1x1x1xf32>
    %cst_74 = arith.constant 2.048000e+03 : f32
    %147 = arith.divf %146, %cst_74 : f32
    %148 = arith.mulf %141, %141 : f32
    %149 = arith.subf %147, %148 : f32
    %150 = vector.broadcast %141 : f32 to vector<256x128xf32>
    %151 = arith.subf %136, %150 : vector<256x128xf32>
    %cst_75 = arith.constant 9.99999974E-6 : f32
    %152 = arith.addf %149, %cst_75 : f32
    %153 = math.rsqrt %152 : f32
    %154 = vector.broadcast %153 : f32 to vector<256x128xf32>
    %155 = arith.mulf %151, %154 : vector<256x128xf32>
    %c0_76 = arith.constant 0 : index
    %c0_77 = arith.constant 0 : index
    %156 = vector.load %arg6[%c0_76, %c0_77] : memref<1x128xf32, #tpu.memory_space<vmem>>, vector<1x128xf32>
    %157 = vector.broadcast %156 : vector<1x128xf32> to vector<256x128xf32>
    %158 = arith.mulf %155, %157 : vector<256x128xf32>
    %c0_78 = arith.constant 0 : index
    %c0_79 = arith.constant 0 : index
    %159 = vector.load %arg7[%c0_78, %c0_79] : memref<1x128xf32, #tpu.memory_space<vmem>>, vector<1x128xf32>
    %160 = vector.broadcast %159 : vector<1x128xf32> to vector<256x128xf32>
    %161 = arith.addf %158, %160 : vector<256x128xf32>
    %cst_80 = arith.constant 0.000000e+00 : f32
    %162 = vector.broadcast %cst_80 : f32 to vector<256x128xf32>
    %163 = arith.maximumf %161, %162 : vector<256x128xf32>
    %164 = arith.addf %163, %1 : vector<256x128xf32>
    %c0_81 = arith.constant 0 : index
    %c0_82 = arith.constant 0 : index
    %c0_83 = arith.constant 0 : index
    %165 = vector.load %arg8[%c0_81, %c0_82, %c0_83] : memref<1x256x128xf32, #tpu.memory_space<vmem>>, vector<1x256x128xf32>
    %166 = vector.shape_cast %165 : vector<1x256x128xf32> to vector<256x128xf32>
    %167 = vector.shape_cast %164 : vector<256x128xf32> to vector<1x256x128xf32>
    tpu.vector_store %arg8[%c0_81, %c0_82, %c0_83], %167 {strides = array<i32>} : memref<1x256x128xf32, #tpu.memory_space<vmem>>, vector<1x256x128xf32>,
    return
  }
  func.func @transform_0(%arg0: i32) -> (i32, i32, i32) {
    %c0_i32 = arith.constant 0 : i32
    %c0_i32_0 = arith.constant 0 : i32
    %c0_i32_1 = arith.constant 0 : i32
    return %arg0, %c0_i32, %c0_i32_0 : i32, i32, i32
  }
  func.func @transform_1(%arg0: i32) -> (i32, i32) {
    %c0_i32 = arith.constant 0 : i32
    %c0_i32_0 = arith.constant 0 : i32
    %c0_i32_1 = arith.constant 0 : i32
    return %c0_i32, %c0_i32_0 : i32, i32
  }
  func.func @transform_2(%arg0: i32) -> (i32, i32) {
    %c0_i32 = arith.constant 0 : i32
    %c0_i32_0 = arith.constant 0 : i32
    %c0_i32_1 = arith.constant 0 : i32
    return %c0_i32, %c0_i32_0 : i32, i32
  }
  func.func @transform_3(%arg0: i32) -> (i32, i32) {
    %c0_i32 = arith.constant 0 : i32
    %c0_i32_0 = arith.constant 0 : i32
    %c0_i32_1 = arith.constant 0 : i32
    return %c0_i32, %c0_i32_0 : i32, i32
  }
  func.func @transform_4(%arg0: i32) -> (i32, i32, i32) {
    %c0_i32 = arith.constant 0 : i32
    %c0_i32_0 = arith.constant 0 : i32
    %c0_i32_1 = arith.constant 0 : i32
    %c0_i32_2 = arith.constant 0 : i32
    return %c0_i32, %c0_i32_0, %c0_i32_1 : i32, i32, i32
  }
  func.func @transform_5(%arg0: i32) -> (i32, i32) {
    %c0_i32 = arith.constant 0 : i32
    %c0_i32_0 = arith.constant 0 : i32
    %c0_i32_1 = arith.constant 0 : i32
    return %c0_i32, %c0_i32_0 : i32, i32
  }
  func.func @transform_6(%arg0: i32) -> (i32, i32) {
    %c0_i32 = arith.constant 0 : i32
    %c0_i32_0 = arith.constant 0 : i32
    %c0_i32_1 = arith.constant 0 : i32
    return %c0_i32, %c0_i32_0 : i32, i32
  }
  func.func @transform_7(%arg0: i32) -> (i32, i32, i32) {
    %c0_i32 = arith.constant 0 : i32
    %c0_i32_0 = arith.constant 0 : i32
    %c0_i32_1 = arith.constant 0 : i32
    return %arg0, %c0_i32, %c0_i32_0 : i32, i32, i32
  }
}

</mosaic_0001>

<llo_original>
// kernel: tpu_custom_call.1
$region0: #{tpu_custom_call.1}
  #allocation0 [shape = 'u32[]', space=smem, size = 0x4, offset = 0x4, fixed_abs, tag = 'smem constant byte address 0x4 - core index']
  #allocation1 [shape = 'u32[144,128]{1,0:T(1,128)}', space=vmem, size = 0x12000, scoped, tag = 'internal scratch']
  #allocation2 [shape = 'f32[304,128]{1,0:T(8,128)}', space=vmem, size = 0x26000, scoped, tag = 'scratch operand']
  %s0 = inlined_call_operand.hbm [shape: f32[2,256,128], index: 0, kind: input, shape index: {}]
  %s1 = inlined_call_operand.hbm [shape: bf16[128,128], index: 1, kind: input, shape index: {}]
  %s2 = inlined_call_operand.vmem [shape: f32[1,128], index: 2, kind: input, shape index: {}]
  %s3 = inlined_call_operand.vmem [shape: f32[1,128], index: 3, kind: input, shape index: {}]
  %s4 = inlined_call_operand.hbm [shape: bf16[9,128,128], index: 4, kind: input, shape index: {}]
  %s5 = inlined_call_operand.vmem [shape: f32[1,128], index: 5, kind: input, shape index: {}]
  %s6 = inlined_call_operand.vmem [shape: f32[1,128], index: 6, kind: input, shape index: {}]
  %s7 = inlined_call_operand.hbm [shape: f32[2,256,128], index: 7, kind: output, shape index: {}]
  %s8 = sld [smem:[#allocation0]]
  $region73: #{tpu_custom_call.1} parent=0
    _
  %s10 = ssub.s32 1, %s8
  %s11 = scalar_select 0, %s10, %s8
  $region1: #{tpu_custom_call.1} parent=0
    #allocation3 [shape = 'u8[262144]{0}', space=vmem, size = 0x40000, scoped, tag = 'input window, operand 0']
    #allocation4 [shape = 's32[2]{0}', space=sflag, size = 0x8, scoped, tag = 'scoped memory for tpu_custom_call.1']
    #allocation5 [shape = 's32[2]{0}', space=sflag, size = 0x8, scoped, tag = 'scoped memory for tpu_custom_call.1']
    #allocation6 [shape = 'u8[32768]{0}', space=vmem, size = 0x8000, scoped, tag = 'input window, operand 1, single buffered']
    #allocation7 [shape = 's32[1]{0}', space=sflag, size = 0x4, scoped, tag = 'scoped memory for tpu_custom_call.1']
    #allocation8 [shape = 'u8[294912]{0}', space=vmem, size = 0x48000, scoped, tag = 'input window, operand 4, single buffered']
    #allocation9 [shape = 'u8[262144]{0}', space=vmem, size = 0x40000, scoped, tag = 'output window, operand 0']
    %12 = vsyncpa [#allocation4], 0
    %s13 = scalar_lea.sflag [#allocation4], 1
    %14 = vsyncpa %s13, 0
    %15 = vsyncpa [#allocation7], 0
    %16 = vsyncpa [#allocation5], 0
    %s17 = scalar_lea.sflag [#allocation5], 1
    %18 = vsyncpa %s17, 0
    loop: start=0, step=1, limit=4
    $region2: #{tpu_custom_call.1} parent=1 // loop_pre_header
      _
    $region3: #{tpu_custom_call.1} parent=1 // loop_header
      %s20 = sphi 0, %s24
      %p21 = scmp.ge.s32.totalorder %s20, 4
      %s30 = sphi 0, %s32
      %s33 = sphi 0, %s30
      %s34 = sphi 0, %s33
      %s50 = sphi 0, %s34
      %s54 = sphi 0, %s54
      %s56 = sphi 0, %s54
      %s57 = sphi 0, %s56
      %s71 = sphi 0, %s57
      %s75 = sphi 0, %s75
      %s77 = sphi 0, %s75
      %s78 = sphi 0, %s77
      %s92 = sphi 0, %s78
      %s96 = sphi 0, %s96
      %s98 = sphi 0, %s96
      %s99 = sphi 0, %s98
      %s113 = sphi 0, %s99
      %s117 = sphi 0, %s117
      %s119 = sphi 0, %s117
      %s120 = sphi 0, %s119
      %s134 = sphi 0, %s120
      %s138 = sphi 0, %s138
      %s140 = sphi 0, %s138
      %s141 = sphi 0, %s140
      %s155 = sphi 0, %s141
      %s159 = sphi 0, %s159
      %s161 = sphi 0, %s159
      %s162 = sphi 0, %s161
      %s176 = sphi 0, %s162
      %s182 = sphi 0, %s184
      %s185 = sphi 0, %s182
      %s186 = sphi 0, %s185
      %s202 = sphi 0, %s186
    $region4: #{tpu_custom_call.1} parent=1 // loop_header_branch
      %23 = sbr.rel (%p21) target = $region8
    $region5: #{tpu_custom_call.1} parent=1 // loop_body
      %s25 = ssub.s32 %s20, 1
      %s26 = ssub.s32 %s20, 2
      %s27 = sadd.s32 %s20, 1
      %s28 = ssub.s32 %s20, %s27
      %p29 = scmp.eq.s32.totalorder %s28, 0
      %s31 = sadd.s32 %s30, 1
      %s32 = scalar_select %p29, %s30, %s31
      %p35 = pneg %p29
      %p36 = scmp.eq.s32.totalorder %s20, 1
      %p37 = por %p35, %p36
      %p38 = scmp.ne.s32.totalorder %s30, %s33
      %p39 = scmp.eq.s32.totalorder %s20, 0
      %p40 = por %p38, %p39
      %p41 = scmp.ne.s32.totalorder %s30, %s33
      %p42 = scmp.eq.s32.totalorder %s25, 1
      %p43 = por %p41, %p42
      %p44 = scmp.ne.s32.totalorder %s33, %s34
      %p45 = scmp.eq.s32.totalorder %s25, 0
      %p46 = por %p44, %p45
      %p47 = scmp.ne.s32.totalorder %s33, %s34
      %p48 = scmp.eq.s32.totalorder %s26, 1
      %p49 = por %p47, %p48
      %p51 = scmp.ne.s32.totalorder %s34, %s50
      %p52 = scmp.eq.s32.totalorder %s26, 0
      %p53 = por %p51, %p52
      %s55 = sadd.s32 %s54, 1
      %p58 = scmp.eq.s32.totalorder %s20, 1
      %p59 = scmp.ne.s32.totalorder %s54, %s56
      %p60 = scmp.eq.s32.totalorder %s20, 0
      %p61 = por %p59, %p60
      %p62 = scmp.ne.s32.totalorder %s54, %s56
      %p63 = scmp.eq.s32.totalorder %s25, 1
      %p64 = por %p62, %p63
      %p65 = scmp.ne.s32.totalorder %s56, %s57
      %p66 = scmp.eq.s32.totalorder %s25, 0
      %p67 = por %p65, %p66
      %p68 = scmp.ne.s32.totalorder %s56, %s57
      %p69 = scmp.eq.s32.totalorder %s26, 1
      %p70 = por %p68, %p69
      %p72 = scmp.ne.s32.totalorder %s57, %s71
      %p73 = scmp.eq.s32.totalorder %s26, 0
      %p74 = por %p72, %p73
      %s76 = sadd.s32 %s75, 1
      %p79 = scmp.eq.s32.totalorder %s20, 1
      %p80 = scmp.ne.s32.totalorder %s75, %s77
      %p81 = scmp.eq.s32.totalorder %s20, 0
      %p82 = por %p80, %p81
      %p83 = scmp.ne.s32.totalorder %s75, %s77
      %p84 = scmp.eq.s32.totalorder %s25, 1
      %p85 = por %p83, %p84
      %p86 = scmp.ne.s32.totalorder %s77, %s78
      %p87 = scmp.eq.s32.totalorder %s25, 0
      %p88 = por %p86, %p87
      %p89 = scmp.ne.s32.totalorder %s77, %s78
      %p90 = scmp.eq.s32.totalorder %s26, 1
      %p91 = por %p89, %p90
      %p93 = scmp.ne.s32.totalorder %s78, %s92
      %p94 = scmp.eq.s32.totalorder %s26, 0
      %p95 = por %p93, %p94
      %s97 = sadd.s32 %s96, 1
      %p100 = scmp.eq.s32.totalorder %s20, 1
      %p101 = scmp.ne.s32.totalorder %s96, %s98
      %p102 = scmp.eq.s32.totalorder %s20, 0
      %p103 = por %p101, %p102
      %p104 = scmp.ne.s32.totalorder %s96, %s98
      %p105 = scmp.eq.s32.totalorder %s25, 1
      %p106 = por %p104, %p105
      %p107 = scmp.ne.s32.totalorder %s98, %s99
      %p108 = scmp.eq.s32.totalorder %s25, 0
      %p109 = por %p107, %p108
      %p110 = scmp.ne.s32.totalorder %s98, %s99
      %p111 = scmp.eq.s32.totalorder %s26, 1
      %p112 = por %p110, %p111
      %p114 = scmp.ne.s32.totalorder %s99, %s113
      %p115 = scmp.eq.s32.totalorder %s26, 0
      %p116 = por %p114, %p115
      %s118 = sadd.s32 %s117, 1
      %p121 = scmp.eq.s32.totalorder %s20, 1
      %p122 = scmp.ne.s32.totalorder %s117, %s119
      %p123 = scmp.eq.s32.totalorder %s20, 0
      %p124 = por %p122, %p123
      %p125 = scmp.ne.s32.totalorder %s117, %s119
      %p126 = scmp.eq.s32.totalorder %s25, 1
      %p127 = por %p125, %p126
      %p128 = scmp.ne.s32.totalorder %s119, %s120
      %p129 = scmp.eq.s32.totalorder %s25, 0
      %p130 = por %p128, %p129
      %p131 = scmp.ne.s32.totalorder %s119, %s120
      %p132 = scmp.eq.s32.totalorder %s26, 1
      %p133 = por %p131, %p132
      %p135 = scmp.ne.s32.totalorder %s120, %s134
      %p136 = scmp.eq.s32.totalorder %s26, 0
      %p137 = por %p135, %p136
      %s139 = sadd.s32 %s138, 1
      %p142 = scmp.eq.s32.totalorder %s20, 1
      %p143 = scmp.ne.s32.totalorder %s138, %s140
      %p144 = scmp.eq.s32.totalorder %s20, 0
      %p145 = por %p143, %p144
      %p146 = scmp.ne.s32.totalorder %s138, %s140
      %p147 = scmp.eq.s32.totalorder %s25, 1
      %p148 = por %p146, %p147
      %p149 = scmp.ne.s32.totalorder %s140, %s141
      %p150 = scmp.eq.s32.totalorder %s25, 0
      %p151 = por %p149, %p150
      %p152 = scmp.ne.s32.totalorder %s140, %s141
      %p153 = scmp.eq.s32.totalorder %s26, 1
      %p154 = por %p152, %p153
      %p156 = scmp.ne.s32.totalorder %s141, %s155
      %p157 = scmp.eq.s32.totalorder %s26, 0
      %p158 = por %p156, %p157
      %s160 = sadd.s32 %s159, 1
      %p163 = scmp.eq.s32.totalorder %s20, 1
      %p164 = scmp.ne.s32.totalorder %s159, %s161
      %p165 = scmp.eq.s32.totalorder %s20, 0
      %p166 = por %p164, %p165
      %p167 = scmp.ne.s32.totalorder %s159, %s161
      %p168 = scmp.eq.s32.totalorder %s25, 1
      %p169 = por %p167, %p168
      %p170 = scmp.ne.s32.totalorder %s161, %s162
      %p171 = scmp.eq.s32.totalorder %s25, 0
      %p172 = por %p170, %p171
      %p173 = scmp.ne.s32.totalorder %s161, %s162
      %p174 = scmp.eq.s32.totalorder %s26, 1
      %p175 = por %p173, %p174
      %p177 = scmp.ne.s32.totalorder %s162, %s176
      %p178 = scmp.eq.s32.totalorder %s26, 0
      %p179 = por %p177, %p178
      %s180 = ssub.s32 %s20, %s27
      %p181 = scmp.eq.s32.totalorder %s180, 0
      %s183 = sadd.s32 %s182, 1
      %s184 = scalar_select %p181, %s182, %s183
      %p187 = pneg %p181
      %p188 = scmp.eq.s32.totalorder %s20, 1
      %p189 = por %p187, %p188
      %p190 = scmp.ne.s32.totalorder %s182, %s185
      %p191 = scmp.eq.s32.totalorder %s20, 0
      %p192 = por %p190, %p191
      %p193 = scmp.ne.s32.totalorder %s182, %s185
      %p194 = scmp.eq.s32.totalorder %s25, 1
      %p195 = por %p193, %p194
      %p196 = scmp.ne.s32.totalorder %s185, %s186
      %p197 = scmp.eq.s32.totalorder %s25, 0
      %p198 = por %p196, %p197
      %p199 = scmp.ne.s32.totalorder %s185, %s186
      %p200 = scmp.eq.s32.totalorder %s26, 1
      %p201 = por %p199, %p200
      %p203 = scmp.ne.s32.totalorder %s186, %s202
      %p204 = scmp.eq.s32.totalorder %s26, 0
      %p205 = por %p203, %p204
      %p206 = scmp.le.s32.totalorder 1, %s20
      %p207 = scmp.lt.s32.totalorder %s20, 3
      %p208 = pnand %p206, %p207
      %p209 = pneg %p208
      // Predicated region
      $region9: #{tpu_custom_call.1} parent=5 // pred_check
        _
      $region10: #{tpu_custom_call.1} parent=5 // pred_check_branch
        %211 = sbr.rel (%p208) target = $region12
      $region11: #{tpu_custom_call.1} parent=5 // pred_region
        %s212 = ssub.s32 %s20, 1
        // Predicated region
        $region13: #{tpu_custom_call.1} parent=11 // pred_check
          %p213 = pneg %p67
        $region14: #{tpu_custom_call.1} parent=11 // pred_check_branch
          %215 = sbr.rel (%p213) target = $region16
        $region15: #{tpu_custom_call.1} parent=11 // pred_region
          %s217 = ssub.s32 1024, 1024
          %218 = vsyncadd [#allocation7], %s217
          %s219 = sshll.u32 [#allocation6], 4
          %s220 = int_to_ptr.vmem [resolvable:$true] %s219
          %225 = dma.hbm_to_vmem [thread:$0]  %s1, 1024, %s220, [#allocation7], 64, 64, 4
        $region16: #{tpu_custom_call.1} parent=11 // pred_fallthru
          _
        // Predicated region
        $region17: #{tpu_custom_call.1} parent=11 // pred_check
          %p226 = pneg %p88
        $region18: #{tpu_custom_call.1} parent=11 // pred_check_branch
          %228 = sbr.rel (%p226) target = $region20
        $region19: #{tpu_custom_call.1} parent=11 // pred_region
          _
        $region20: #{tpu_custom_call.1} parent=11 // pred_fallthru
          _
        // Predicated region
        $region21: #{tpu_custom_call.1} parent=11 // pred_check
          %p229 = pneg %p109
        $region22: #{tpu_custom_call.1} parent=11 // pred_check_branch
          %231 = sbr.rel (%p229) target = $region24
        $region23: #{tpu_custom_call.1} parent=11 // pred_region
          _
        $region24: #{tpu_custom_call.1} parent=11 // pred_fallthru
          _
        // Predicated region
        $region25: #{tpu_custom_call.1} parent=11 // pred_check
          %p232 = pneg %p130
        $region26: #{tpu_custom_call.1} parent=11 // pred_check_branch
          %234 = sbr.rel (%p232) target = $region28
        $region27: #{tpu_custom_call.1} parent=11 // pred_region
          %s236 = ssub.s32 9216, 9216
          %237 = vsyncadd [#allocation7], %s236
          %s238 = sshll.u32 [#allocation8], 4
          %s239 = int_to_ptr.vmem [resolvable:$true] %s238
          %244 = dma.hbm_to_vmem [thread:$0]  %s4, 9216, %s239, [#allocation7], 64, 64, 4
        $region28: #{tpu_custom_call.1} parent=11 // pred_fallthru
          _
        // Predicated region
        $region29: #{tpu_custom_call.1} parent=11 // pred_check
          %p245 = pneg %p151
        $region30: #{tpu_custom_call.1} parent=11 // pred_check_branch
          %247 = sbr.rel (%p245) target = $region32
        $region31: #{tpu_custom_call.1} parent=11 // pred_region
          _
        $region32: #{tpu_custom_call.1} parent=11 // pred_fallthru
          _
        // Predicated region
        $region33: #{tpu_custom_call.1} parent=11 // pred_check
          %p248 = pneg %p172
        $region34: #{tpu_custom_call.1} parent=11 // pred_check_branch
          %250 = sbr.rel (%p248) target = $region36
        $region35: #{tpu_custom_call.1} parent=11 // pred_region
          _
        $region36: #{tpu_custom_call.1} parent=11 // pred_fallthru
          _
      $region12: #{tpu_custom_call.1} parent=5 // pred_fallthru
        _
      %p251 = scmp.lt.s32.totalorder %s20, 2
      // Predicated region
      $region37: #{tpu_custom_call.1} parent=5 // pred_check
        %p252 = pneg %p251
      $region38: #{tpu_custom_call.1} parent=5 // pred_check_branch
        %254 = sbr.rel (%p252) target = $region40
      $region39: #{tpu_custom_call.1} parent=5 // pred_region
        // Predicated region
        $region41: #{tpu_custom_call.1} parent=39 // pred_check
          %p255 = pneg %p40
        $region42: #{tpu_custom_call.1} parent=39 // pred_check_branch
          %257 = sbr.rel (%p255) target = $region44
        $region43: #{tpu_custom_call.1} parent=39 // pred_region
          %s258 = sand.u32 %s30, 1
          %s259 = scalar_lea.sflag [#allocation4], %s258
          %s260 = sand.u32 %s30, 1
          %s261 = smul.addr %s260, 256
          %s262 = scalar_lea.vmem [#allocation3], %s261
          %s264 = ssub.s32 4096, 4096
          %265 = vsyncadd %s259, %s264
          %s266 = smul.addr %s20, 32
          %s267 = smul.addr %s266, 128
          %s268 = scalar_lea.hbm %s0, %s267
          %s269 = sshll.u32 %s262, 4
          %s270 = int_to_ptr.vmem [resolvable:$true] %s269
          %275 = dma.hbm_to_vmem [thread:$0]  %s268, 4096, %s270, %s259, 128, 128, 8
        $region44: #{tpu_custom_call.1} parent=39 // pred_fallthru
          _
      $region40: #{tpu_custom_call.1} parent=5 // pred_fallthru
        _
      %p276 = scmp.le.s32.totalorder 1, %s20
      %p277 = scmp.lt.s32.totalorder %s20, 3
      %p278 = pnand %p276, %p277
      %p279 = pneg %p278
      // Predicated region
      $region45: #{tpu_custom_call.1} parent=5 // pred_check
        _
      $region46: #{tpu_custom_call.1} parent=5 // pred_check_branch
        %281 = sbr.rel (%p278) target = $region48
      $region47: #{tpu_custom_call.1} parent=5 // pred_region
        %s282 = ssub.s32 %s20, 1
        %s283 = sand.u32 %s33, 1
        %s284 = scalar_lea.sflag [#allocation4], %s283
        %s285 = sand.u32 %s33, 1
        %s286 = smul.addr %s285, 256
        %s287 = scalar_lea.vmem [#allocation3], %s286
        // Predicated region
        $region49: #{tpu_custom_call.1} parent=47 // pred_check
          %p288 = pneg %p46
        $region50: #{tpu_custom_call.1} parent=47 // pred_check_branch
          %290 = sbr.rel (%p288) target = $region52
        $region51: #{tpu_custom_call.1} parent=47 // pred_region
          %291 = dma.done %s284, 4096
        $region52: #{tpu_custom_call.1} parent=47 // pred_fallthru
          _
        // Predicated region
        $region53: #{tpu_custom_call.1} parent=47 // pred_check
          %p292 = pneg %p67
        $region54: #{tpu_custom_call.1} parent=47 // pred_check_branch
          %294 = sbr.rel (%p292) target = $region56
        $region55: #{tpu_custom_call.1} parent=47 // pred_region
          %295 = dma.done [#allocation7], 1024
        $region56: #{tpu_custom_call.1} parent=47 // pred_fallthru
          _
        // Predicated region
        $region57: #{tpu_custom_call.1} parent=47 // pred_check
          %p296 = pneg %p130
        $region58: #{tpu_custom_call.1} parent=47 // pred_check_branch
          %298 = sbr.rel (%p296) target = $region60
        $region59: #{tpu_custom_call.1} parent=47 // pred_region
          %299 = dma.done [#allocation7], 9216
        $region60: #{tpu_custom_call.1} parent=47 // pred_fallthru
          _
        %s300 = sand.u32 %s33, 1
        %s301 = scalar_lea.sflag [#allocation4], %s300
        %s302 = sand.u32 %s33, 1
        %s303 = smul.addr %s302, 256
        %s304 = scalar_lea.vmem [#allocation3], %s303
        %p305 = pneg %p46
        %p306 = pneg %p43
        %p307 = pneg %p67
        %p308 = pneg %p64
        %p309 = pneg %p88
        %p310 = pneg %p85
        %p311 = pneg %p109
        %p312 = pneg %p106
        %p313 = pneg %p130
        %p314 = pneg %p127
        %p315 = pneg %p151
        %p316 = pneg %p148
        %p317 = pneg %p172
        %p318 = pneg %p169
        %p319 = pneg %p198
        %p320 = pneg %p195
        %s321 = sand.u32 %s185, 1
        %s322 = scalar_lea.sflag [#allocation5], %s321
        %s323 = sand.u32 %s185, 1
        %s324 = smul.addr %s323, 256
        %s325 = scalar_lea.vmem [#allocation9], %s324
        %v327 = vld [vmem:[%s287] sm:$0xff]
        %v328 = vld [vmem:[%s287 + $0x8] sm:$0xff]
        %v329 = vld [vmem:[%s287 + $0x10] sm:$0xff]
        %v330 = vld [vmem:[%s287 + $0x18] sm:$0xff]
        %v331 = vld [vmem:[%s287 + $0x20] sm:$0xff]
        %v332 = vld [vmem:[%s287 + $0x28] sm:$0xff]
        %v333 = vld [vmem:[%s287 + $0x30] sm:$0xff]
        %v334 = vld [vmem:[%s287 + $0x38] sm:$0xff]
        %v335 = vld [vmem:[%s287 + $0x40] sm:$0xff]
        %v336 = vld [vmem:[%s287 + $0x48] sm:$0xff]
        %v337 = vld [vmem:[%s287 + $0x50] sm:$0xff]
        %v338 = vld [vmem:[%s287 + $0x58] sm:$0xff]
        %v339 = vld [vmem:[%s287 + $0x60] sm:$0xff]
        %v340 = vld [vmem:[%s287 + $0x68] sm:$0xff]
        %v341 = vld [vmem:[%s287 + $0x70] sm:$0xff]
        %v342 = vld [vmem:[%s287 + $0x78] sm:$0xff]
        %v343 = vld [vmem:[%s287 + $0x80] sm:$0xff]
        %v344 = vld [vmem:[%s287 + $0x88] sm:$0xff]
        %v345 = vld [vmem:[%s287 + $0x90] sm:$0xff]
        %v346 = vld [vmem:[%s287 + $0x98] sm:$0xff]
        %v347 = vld [vmem:[%s287 + $0xa0] sm:$0xff]
        %v348 = vld [vmem:[%s287 + $0xa8] sm:$0xff]
        %v349 = vld [vmem:[%s287 + $0xb0] sm:$0xff]
        %v350 = vld [vmem:[%s287 + $0xb8] sm:$0xff]
        %v351 = vld [vmem:[%s287 + $0xc0] sm:$0xff]
        %v352 = vld [vmem:[%s287 + $0xc8] sm:$0xff]
        %v353 = vld [vmem:[%s287 + $0xd0] sm:$0xff]
        %v354 = vld [vmem:[%s287 + $0xd8] sm:$0xff]
        %v355 = vld [vmem:[%s287 + $0xe0] sm:$0xff]
        %v356 = vld [vmem:[%s287 + $0xe8] sm:$0xff]
        %v357 = vld [vmem:[%s287 + $0xf0] sm:$0xff]
        %v358 = vld [vmem:[%s287 + $0xf8] sm:$0xff]
        %v359 = vpack.c.bf16 %v328, %v327
        %v360 = vpack.c.bf16 %v330, %v329
        %v361 = vpack.c.bf16 %v332, %v331
        %v362 = vpack.c.bf16 %v334, %v333
        %v363 = vpack.c.bf16 %v336, %v335
        %v364 = vpack.c.bf16 %v338, %v337
        %v365 = vpack.c.bf16 %v340, %v339
        %v366 = vpack.c.bf16 %v342, %v341
        %v367 = vpack.c.bf16 %v344, %v343
        %v368 = vpack.c.bf16 %v346, %v345
        %v369 = vpack.c.bf16 %v348, %v347
        %v370 = vpack.c.bf16 %v350, %v349
        %v371 = vpack.c.bf16 %v352, %v351
        %v372 = vpack.c.bf16 %v354, %v353
        %v373 = vpack.c.bf16 %v356, %v355
        %v374 = vpack.c.bf16 %v358, %v357
        %v375 = vld [vmem:[#allocation6] sm:$0xf]
        %v376 = vld [vmem:[#allocation6 + $0x4] sm:$0xf]
        %v377 = vld [vmem:[#allocation6 + $0x8] sm:$0xf]
        %v378 = vld [vmem:[#allocation6 + $0xc] sm:$0xf]
        %v379 = vld [vmem:[#allocation6 + $0x10] sm:$0xf]
        %v380 = vld [vmem:[#allocation6 + $0x14] sm:$0xf]
        %v381 = vld [vmem:[#allocation6 + $0x18] sm:$0xf]
        %v382 = vld [vmem:[#allocation6 + $0x1c] sm:$0xf]
        %v383 = vld [vmem:[#allocation6 + $0x20] sm:$0xf]
        %v384 = vld [vmem:[#allocation6 + $0x24] sm:$0xf]
        %v385 = vld [vmem:[#allocation6 + $0x28] sm:$0xf]
        %v386 = vld [vmem:[#allocation6 + $0x2c] sm:$0xf]
        %v387 = vld [vmem:[#allocation6 + $0x30] sm:$0xf]
        %v388 = vld [vmem:[#allocation6 + $0x34] sm:$0xf]
        %v389 = vld [vmem:[#allocation6 + $0x38] sm:$0xf]
        %v390 = vld [vmem:[#allocation6 + $0x3c] sm:$0xf]
        %v407 = vunpack.c.l.b16 %v375
        %v408 = vunpack.c.l.b16 %v376
        %v409 = vunpack.c.l.b16 %v377
        %v410 = vunpack.c.l.b16 %v378
        %v411 = vunpack.c.l.b16 %v379
        %v412 = vunpack.c.l.b16 %v380
        %v413 = vunpack.c.l.b16 %v381
        %v414 = vunpack.c.l.b16 %v382
        %v415 = vunpack.c.l.b16 %v383
        %v416 = vunpack.c.l.b16 %v384
        %v417 = vunpack.c.l.b16 %v385
        %v418 = vunpack.c.l.b16 %v386
        %v419 = vunpack.c.l.b16 %v387
        %v420 = vunpack.c.l.b16 %v388
        %v421 = vunpack.c.l.b16 %v389
        %v422 = vunpack.c.l.b16 %v390
        %v423 = vpack.c.b16 %v408, %v407
        %v424 = vpack.c.b16 %v410, %v409
        %v425 = vpack.c.b16 %v412, %v411
        %v426 = vpack.c.b16 %v414, %v413
        %v427 = vpack.c.b16 %v416, %v415
        %v428 = vpack.c.b16 %v418, %v417
        %v429 = vpack.c.b16 %v420, %v419
        %v430 = vpack.c.b16 %v422, %v421
        %439 = vmatprep.subr.bf16.mxu0 0
        %440 = vmatpush1.bf16.msra.mxu0 %v423
        %441 = vmatprep.subr.bf16.mxu0 0
        %442 = vmatpush1.bf16.msra.mxu0 %v424
        %443 = vmatprep.subr.bf16.mxu0 0
        %444 = vmatpush1.bf16.msra.mxu0 %v425
        %445 = vmatprep.subr.bf16.mxu0 0
        %446 = vmatpush1.bf16.msra.mxu0 %v426
        %447 = vmatprep.subr.bf16.mxu0 0
        %448 = vmatpush1.bf16.msra.mxu0 %v427
        %449 = vmatprep.subr.bf16.mxu0 0
        %450 = vmatpush1.bf16.msra.mxu0 %v428
        %451 = vmatprep.subr.bf16.mxu0 0
        %452 = vmatpush1.bf16.msra.mxu0 %v429
        %453 = vmatprep.subr.bf16.mxu0 0
        %454 = vmatpush1.bf16.msra.mxu0 %v430
        %455 = vmatprep.subr.bf16.mxu0 0
        %456 = vmatpush1.bf16.msra.mxu0 0
        %457 = vmatprep.subr.bf16.mxu0 0
        %458 = vmatpush1.bf16.msra.mxu0 0
        %459 = vmatprep.subr.bf16.mxu0 0
        %460 = vmatpush1.bf16.msra.mxu0 0
        %461 = vmatprep.subr.bf16.mxu0 0
        %462 = vmatpush1.bf16.msra.mxu0 0
        %463 = vmatprep.subr.bf16.mxu0 0
        %464 = vmatpush1.bf16.msra.mxu0 0
        %465 = vmatprep.subr.bf16.mxu0 0
        %466 = vmatpush1.bf16.msra.mxu0 0
        %467 = vmatprep.subr.bf16.mxu0 0
        %468 = vmatpush1.bf16.msra.mxu0 0
        %469 = vmatprep.subr.bf16.mxu0 0
        %470 = vmatpush1.bf16.msra.mxu0 0
        %471 = vmatprep.mubr.bf16.mxu0 0
        %472 = vmatmul.mubr.bf16.gmra.mrb[0].mxu0 %v359
        %v473 = vpop.f32.mrb[0].mxu0
        %v474 = vadd.f32 0.0, %v473
        %v475 = vpop.f32.mrb[0].mxu0
        %v476 = vpop.f32.mrb[0].mxu0
        %v477 = vadd.f32 0.0, %v476
        %v478 = vpop.f32.mrb[0].mxu0
        %479 = vmatprep.mubr.bf16.mxu0 0
        %480 = vmatmul.mubr.bf16.gmra.mrb[0].mxu0 %v360
        %v481 = vpop.f32.mrb[0].mxu0
        %v482 = vadd.f32 0.0, %v481
        %v483 = vpop.f32.mrb[0].mxu0
        %v484 = vpop.f32.mrb[0].mxu0
        %v485 = vadd.f32 0.0, %v484
        %v486 = vpop.f32.mrb[0].mxu0
        %487 = vmatprep.mubr.bf16.mxu0 0
        %488 = vmatmul.mubr.bf16.gmra.mrb[0].mxu0 %v361
        %v489 = vpop.f32.mrb[0].mxu0
        %v490 = vadd.f32 0.0, %v489
        %v491 = vpop.f32.mrb[0].mxu0
        %v492 = vpop.f32.mrb[0].mxu0
        %v493 = vadd.f32 0.0, %v492
        %v494 = vpop.f32.mrb[0].mxu0
        %495 = vmatprep.mubr.bf16.mxu0 0
        %496 = vmatmul.mubr.bf16.gmra.mrb[0].mxu0 %v362
        %v497 = vpop.f32.mrb[0].mxu0
        %v498 = vadd.f32 0.0, %v497
        %v499 = vpop.f32.mrb[0].mxu0
        %v500 = vpop.f32.mrb[0].mxu0
        %v501 = vadd.f32 0.0, %v500
        %v502 = vpop.f32.mrb[0].mxu0
        %503 = vmatprep.mubr.bf16.mxu0 0
        %504 = vmatmul.mubr.bf16.gmra.mrb[0].mxu0 %v363
        %v505 = vpop.f32.mrb[0].mxu0
        %v506 = vadd.f32 0.0, %v505
        %v507 = vpop.f32.mrb[0].mxu0
        %v508 = vpop.f32.mrb[0].mxu0
        %v509 = vadd.f32 0.0, %v508
        %v510 = vpop.f32.mrb[0].mxu0
        %511 = vmatprep.mubr.bf16.mxu0 0
        %512 = vmatmul.mubr.bf16.gmra.mrb[0].mxu0 %v364
        %v513 = vpop.f32.mrb[0].mxu0
        %v514 = vadd.f32 0.0, %v513
        %v515 = vpop.f32.mrb[0].mxu0
        %v516 = vpop.f32.mrb[0].mxu0
        %v517 = vadd.f32 0.0, %v516
        %v518 = vpop.f32.mrb[0].mxu0
        %519 = vmatprep.mubr.bf16.mxu0 0
        %520 = vmatmul.mubr.bf16.gmra.mrb[0].mxu0 %v365
        %v521 = vpop.f32.mrb[0].mxu0
        %v522 = vadd.f32 0.0, %v521
        %v523 = vpop.f32.mrb[0].mxu0
        %v524 = vpop.f32.mrb[0].mxu0
        %v525 = vadd.f32 0.0, %v524
        %v526 = vpop.f32.mrb[0].mxu0
        %527 = vmatprep.mubr.bf16.mxu0 0
        %528 = vmatmul.mubr.bf16.gmra.mrb[0].mxu0 %v366
        %v529 = vpop.f32.mrb[0].mxu0
        %v530 = vadd.f32 0.0, %v529
        %v531 = vpop.f32.mrb[0].mxu0
        %v532 = vpop.f32.mrb[0].mxu0
        %v533 = vadd.f32 0.0, %v532
        %v534 = vpop.f32.mrb[0].mxu0
        %535 = vmatprep.mubr.bf16.mxu0 0
        %536 = vmatmul.mubr.bf16.gmra.mrb[0].mxu0 %v367
        %v537 = vpop.f32.mrb[0].mxu0
        %v538 = vadd.f32 0.0, %v537
        %v539 = vpop.f32.mrb[0].mxu0
        %v540 = vpop.f32.mrb[0].mxu0
        %v541 = vadd.f32 0.0, %v540
        %v542 = vpop.f32.mrb[0].mxu0
        %543 = vmatprep.mubr.bf16.mxu0 0
        %544 = vmatmul.mubr.bf16.gmra.mrb[0].mxu0 %v368
        %v545 = vpop.f32.mrb[0].mxu0
        %v546 = vadd.f32 0.0, %v545
        %v547 = vpop.f32.mrb[0].mxu0
        %v548 = vpop.f32.mrb[0].mxu0
        %v549 = vadd.f32 0.0, %v548
        %v550 = vpop.f32.mrb[0].mxu0
        %551 = vmatprep.mubr.bf16.mxu0 0
        %552 = vmatmul.mubr.bf16.gmra.mrb[0].mxu0 %v369
        %v553 = vpop.f32.mrb[0].mxu0
        %v554 = vadd.f32 0.0, %v553
        %v555 = vpop.f32.mrb[0].mxu0
        %v556 = vpop.f32.mrb[0].mxu0
        %v557 = vadd.f32 0.0, %v556
        %v558 = vpop.f32.mrb[0].mxu0
        %559 = vmatprep.mubr.bf16.mxu0 0
        %560 = vmatmul.mubr.bf16.gmra.mrb[0].mxu0 %v370
        %v561 = vpop.f32.mrb[0].mxu0
        %v562 = vadd.f32 0.0, %v561
        %v563 = vpop.f32.mrb[0].mxu0
        %v564 = vpop.f32.mrb[0].mxu0
        %v565 = vadd.f32 0.0, %v564
        %v566 = vpop.f32.mrb[0].mxu0
        %567 = vmatprep.mubr.bf16.mxu0 0
        %568 = vmatmul.mubr.bf16.gmra.mrb[0].mxu0 %v371
        %v569 = vpop.f32.mrb[0].mxu0
        %v570 = vadd.f32 0.0, %v569
        %v571 = vpop.f32.mrb[0].mxu0
        %v572 = vpop.f32.mrb[0].mxu0
        %v573 = vadd.f32 0.0, %v572
        %v574 = vpop.f32.mrb[0].mxu0
        %575 = vmatprep.mubr.bf16.mxu0 0
        %576 = vmatmul.mubr.bf16.gmra.mrb[0].mxu0 %v372
        %v577 = vpop.f32.mrb[0].mxu0
        %v578 = vadd.f32 0.0, %v577
        %v579 = vpop.f32.mrb[0].mxu0
        %v580 = vpop.f32.mrb[0].mxu0
        %v581 = vadd.f32 0.0, %v580
        %v582 = vpop.f32.mrb[0].mxu0
        %583 = vmatprep.mubr.bf16.mxu0 0
        %584 = vmatmul.mubr.bf16.gmra.mrb[0].mxu0 %v373
        %v585 = vpop.f32.mrb[0].mxu0
        %v586 = vadd.f32 0.0, %v585
        %v587 = vpop.f32.mrb[0].mxu0
        %v588 = vpop.f32.mrb[0].mxu0
        %v589 = vadd.f32 0.0, %v588
        %v590 = vpop.f32.mrb[0].mxu0
        %591 = vmatprep.mubr.bf16.mxu0 0
        %592 = vmatmul.mubr.bf16.gmra.mrb[0].mxu0 %v374
        %v593 = vpop.f32.mrb[0].mxu0
        %v594 = vadd.f32 0.0, %v593
        %v595 = vpop.f32.mrb[0].mxu0
        %v596 = vpop.f32.mrb[0].mxu0
        %v597 = vadd.f32 0.0, %v596
        %v598 = vpop.f32.mrb[0].mxu0
        %599 = vdwg.mxu0
        %v600 = vadd.f32 %v474, %v477
        %v601 = vadd.f32 %v600, %v482
        %v602 = vadd.f32 %v601, %v485
        %v603 = vadd.f32 %v602, %v490
        %v604 = vadd.f32 %v603, %v493
        %v605 = vadd.f32 %v604, %v498
        %v606 = vadd.f32 %v605, %v501
        %v607 = vadd.f32 %v606, %v506
        %v608 = vadd.f32 %v607, %v509
        %v609 = vadd.f32 %v608, %v514
        %v610 = vadd.f32 %v609, %v517
        %v611 = vadd.f32 %v610, %v522
        %v612 = vadd.f32 %v611, %v525
        %v613 = vadd.f32 %v612, %v530
        %v614 = vadd.f32 %v613, %v533
        %v615 = vadd.f32 %v614, %v538
        %v616 = vadd.f32 %v615, %v541
        %v617 = vadd.f32 %v616, %v546
        %v618 = vadd.f32 %v617, %v549
        %v619 = vadd.f32 %v618, %v554
        %v620 = vadd.f32 %v619, %v557
        %v621 = vadd.f32 %v620, %v562
        %v622 = vadd.f32 %v621, %v565
        %v623 = vadd.f32 %v622, %v570
        %v624 = vadd.f32 %v623, %v573
        %v625 = vadd.f32 %v624, %v578
        %v626 = vadd.f32 %v625, %v581
        %v627 = vadd.f32 %v626, %v586
        %v628 = vadd.f32 %v627, %v589
        %v629 = vadd.f32 %v628, %v594
        %v630 = vadd.f32 %v629, %v597
        %631 = vadd.xlane.f32.xlu0 %v630
        %v632 = vpop.xlane.xlu0 %631
        %v633 = vrot.slane %v632, 4
        %v634 = vadd.f32 %v632, %v633
        %v635 = vrot.slane %v634, 2
        %v636 = vadd.f32 %v634, %v635
        %v637 = vrot.slane %v636, 1
        %v638 = vadd.f32 %v636, %v637
        %s639 = vtos %v638
        %v640 = vrcp.pop 1024.0
        %s641 = vtos %v640
        %s642 = smul.f32 %s639, %s641
        %v643 = vmul.f32 %v474, %v474
        %v644 = vmul.f32 %v477, %v477
        %v645 = vmul.f32 %v482, %v482
        %v646 = vmul.f32 %v485, %v485
        %v647 = vmul.f32 %v490, %v490
        %v648 = vmul.f32 %v493, %v493
        %v649 = vmul.f32 %v498, %v498
        %v650 = vmul.f32 %v501, %v501
        %v651 = vmul.f32 %v506, %v506
        %v652 = vmul.f32 %v509, %v509
        %v653 = vmul.f32 %v514, %v514
        %v654 = vmul.f32 %v517, %v517
        %v655 = vmul.f32 %v522, %v522
        %v656 = vmul.f32 %v525, %v525
        %v657 = vmul.f32 %v530, %v530
        %v658 = vmul.f32 %v533, %v533
        %v659 = vmul.f32 %v538, %v538
        %v660 = vmul.f32 %v541, %v541
        %v661 = vmul.f32 %v546, %v546
        %v662 = vmul.f32 %v549, %v549
        %v663 = vmul.f32 %v554, %v554
        %v664 = vmul.f32 %v557, %v557
        %v665 = vmul.f32 %v562, %v562
        %v666 = vmul.f32 %v565, %v565
        %v667 = vmul.f32 %v570, %v570
        %v668 = vmul.f32 %v573, %v573
        %v669 = vmul.f32 %v578, %v578
        %v670 = vmul.f32 %v581, %v581
        %v671 = vmul.f32 %v586, %v586
        %v672 = vmul.f32 %v589, %v589
        %v673 = vmul.f32 %v594, %v594
        %v674 = vmul.f32 %v597, %v597
        %v675 = vadd.f32 %v643, %v644
        %v676 = vadd.f32 %v675, %v645
        %v677 = vadd.f32 %v676, %v646
        %v678 = vadd.f32 %v677, %v647
        %v679 = vadd.f32 %v678, %v648
        %v680 = vadd.f32 %v679, %v649
        %v681 = vadd.f32 %v680, %v650
        %v682 = vadd.f32 %v681, %v651
        %v683 = vadd.f32 %v682, %v652
        %v684 = vadd.f32 %v683, %v653
        %v685 = vadd.f32 %v684, %v654
        %v686 = vadd.f32 %v685, %v655
        %v687 = vadd.f32 %v686, %v656
        %v688 = vadd.f32 %v687, %v657
        %v689 = vadd.f32 %v688, %v658
        %v690 = vadd.f32 %v689, %v659
        %v691 = vadd.f32 %v690, %v660
        %v692 = vadd.f32 %v691, %v661
        %v693 = vadd.f32 %v692, %v662
        %v694 = vadd.f32 %v693, %v663
        %v695 = vadd.f32 %v694, %v664
        %v696 = vadd.f32 %v695, %v665
        %v697 = vadd.f32 %v696, %v666
        %v698 = vadd.f32 %v697, %v667
        %v699 = vadd.f32 %v698, %v668
        %v700 = vadd.f32 %v699, %v669
        %v701 = vadd.f32 %v700, %v670
        %v702 = vadd.f32 %v701, %v671
        %v703 = vadd.f32 %v702, %v672
        %v704 = vadd.f32 %v703, %v673
        %v705 = vadd.f32 %v704, %v674
        %706 = vadd.xlane.f32.xlu0 %v705
        %v707 = vpop.xlane.xlu0 %706
        %v708 = vrot.slane %v707, 4
        %v709 = vadd.f32 %v707, %v708
        %v710 = vrot.slane %v709, 2
        %v711 = vadd.f32 %v709, %v710
        %v712 = vrot.slane %v711, 1
        %v713 = vadd.f32 %v711, %v712
        %s714 = vtos %v713
        %v715 = vrcp.pop 1024.0
        %s716 = vtos %v715
        %s717 = smul.f32 %s714, %s716
        %s718 = smul.f32 %s642, %s642
        %s719 = ssub.f32 %s717, %s718
        %v720 = vstv %s642
        %v721 = vsub.f32 %v474, %v720
        %v722 = vsub.f32 %v477, %v720
        %v723 = vsub.f32 %v482, %v720
        %v724 = vsub.f32 %v485, %v720
        %v725 = vsub.f32 %v490, %v720
        %v726 = vsub.f32 %v493, %v720
        %v727 = vsub.f32 %v498, %v720
        %v728 = vsub.f32 %v501, %v720
        %v729 = vsub.f32 %v506, %v720
        %v730 = vsub.f32 %v509, %v720
        %v731 = vsub.f32 %v514, %v720
        %v732 = vsub.f32 %v517, %v720
        %v733 = vsub.f32 %v522, %v720
        %v734 = vsub.f32 %v525, %v720
        %v735 = vsub.f32 %v530, %v720
        %v736 = vsub.f32 %v533, %v720
        %v737 = vsub.f32 %v538, %v720
        %v738 = vsub.f32 %v541, %v720
        %v739 = vsub.f32 %v546, %v720
        %v740 = vsub.f32 %v549, %v720
        %v741 = vsub.f32 %v554, %v720
        %v742 = vsub.f32 %v557, %v720
        %v743 = vsub.f32 %v562, %v720
        %v744 = vsub.f32 %v565, %v720
        %v745 = vsub.f32 %v570, %v720
        %v746 = vsub.f32 %v573, %v720
        %v747 = vsub.f32 %v578, %v720
        %v748 = vsub.f32 %v581, %v720
        %v749 = vsub.f32 %v586, %v720
        %v750 = vsub.f32 %v589, %v720
        %v751 = vsub.f32 %v594, %v720
        %v752 = vsub.f32 %v597, %v720
        %s753 = sadd.f32 %s719, 1e-05
        %v754 = vstv %s753
        %v755 = vrsqrt.pop %v754
        %s756 = vtos %v755
        %v757 = vstv %s756
        %v758 = vmul.f32 %v721, %v757
        %v759 = vmul.f32 %v722, %v757
        %v760 = vmul.f32 %v723, %v757
        %v761 = vmul.f32 %v724, %v757
        %v762 = vmul.f32 %v725, %v757
        %v763 = vmul.f32 %v726, %v757
        %v764 = vmul.f32 %v727, %v757
        %v765 = vmul.f32 %v728, %v757
        %v766 = vmul.f32 %v729, %v757
        %v767 = vmul.f32 %v730, %v757
        %v768 = vmul.f32 %v731, %v757
        %v769 = vmul.f32 %v732, %v757
        %v770 = vmul.f32 %v733, %v757
        %v771 = vmul.f32 %v734, %v757
        %v772 = vmul.f32 %v735, %v757
        %v773 = vmul.f32 %v736, %v757
        %v774 = vmul.f32 %v737, %v757
        %v775 = vmul.f32 %v738, %v757
        %v776 = vmul.f32 %v739, %v757
        %v777 = vmul.f32 %v740, %v757
        %v778 = vmul.f32 %v741, %v757
        %v779 = vmul.f32 %v742, %v757
        %v780 = vmul.f32 %v743, %v757
        %v781 = vmul.f32 %v744, %v757
        %v782 = vmul.f32 %v745, %v757
        %v783 = vmul.f32 %v746, %v757
        %v784 = vmul.f32 %v747, %v757
        %v785 = vmul.f32 %v748, %v757
        %v786 = vmul.f32 %v749, %v757
        %v787 = vmul.f32 %v750, %v757
        %v788 = vmul.f32 %v751, %v757
        %v789 = vmul.f32 %v752, %v757
        %v790 = vld [vmem:[%s2] sm:$0x1]
        %v792 = vlaneseq
        %v793 = vshrl.u32 %v792, 7
        %v794 = vsub.s32 0, %v793
        %v795 = vrot.slane %v790, %v794
        %v797 = vmul.f32 %v758, %v795
        %v798 = vmul.f32 %v759, %v795
        %v799 = vmul.f32 %v760, %v795
        %v800 = vmul.f32 %v761, %v795
        %v801 = vmul.f32 %v762, %v795
        %v802 = vmul.f32 %v763, %v795
        %v803 = vmul.f32 %v764, %v795
        %v804 = vmul.f32 %v765, %v795
        %v805 = vmul.f32 %v766, %v795
        %v806 = vmul.f32 %v767, %v795
        %v807 = vmul.f32 %v768, %v795
        %v808 = vmul.f32 %v769, %v795
        %v809 = vmul.f32 %v770, %v795
        %v810 = vmul.f32 %v771, %v795
        %v811 = vmul.f32 %v772, %v795
        %v812 = vmul.f32 %v773, %v795
        %v813 = vmul.f32 %v774, %v795
        %v814 = vmul.f32 %v775, %v795
        %v815 = vmul.f32 %v776, %v795
        %v816 = vmul.f32 %v777, %v795
        %v817 = vmul.f32 %v778, %v795
        %v818 = vmul.f32 %v779, %v795
        %v819 = vmul.f32 %v780, %v795
        %v820 = vmul.f32 %v781, %v795
        %v821 = vmul.f32 %v782, %v795
        %v822 = vmul.f32 %v783, %v795
        %v823 = vmul.f32 %v784, %v795
        %v824 = vmul.f32 %v785, %v795
        %v825 = vmul.f32 %v786, %v795
        %v826 = vmul.f32 %v787, %v795
        %v827 = vmul.f32 %v788, %v795
        %v828 = vmul.f32 %v789, %v795
        %v829 = vld [vmem:[%s3] sm:$0x1]
        %v831 = vlaneseq
        %v832 = vshrl.u32 %v831, 7
        %v833 = vsub.s32 0, %v832
        %v834 = vrot.slane %v829, %v833
        %v836 = vadd.f32 %v797, %v834
        %v837 = vadd.f32 %v798, %v834
        %v838 = vadd.f32 %v799, %v834
        %v839 = vadd.f32 %v800, %v834
        %v840 = vadd.f32 %v801, %v834
        %v841 = vadd.f32 %v802, %v834
        %v842 = vadd.f32 %v803, %v834
        %v843 = vadd.f32 %v804, %v834
        %v844 = vadd.f32 %v805, %v834
        %v845 = vadd.f32 %v806, %v834
        %v846 = vadd.f32 %v807, %v834
        %v847 = vadd.f32 %v808, %v834
        %v848 = vadd.f32 %v809, %v834
        %v849 = vadd.f32 %v810, %v834
        %v850 = vadd.f32 %v811, %v834
        %v851 = vadd.f32 %v812, %v834
        %v852 = vadd.f32 %v813, %v834
        %v853 = vadd.f32 %v814, %v834
        %v854 = vadd.f32 %v815, %v834
        %v855 = vadd.f32 %v816, %v834
        %v856 = vadd.f32 %v817, %v834
        %v857 = vadd.f32 %v818, %v834
        %v858 = vadd.f32 %v819, %v834
        %v859 = vadd.f32 %v820, %v834
        %v860 = vadd.f32 %v821, %v834
        %v861 = vadd.f32 %v822, %v834
        %v862 = vadd.f32 %v823, %v834
        %v863 = vadd.f32 %v824, %v834
        %v864 = vadd.f32 %v825, %v834
        %v865 = vadd.f32 %v826, %v834
        %v866 = vadd.f32 %v827, %v834
        %v867 = vadd.f32 %v828, %v834
        %v868 = vmax.f32 %v836, 0.0
        %v869 = vmax.f32 %v837, 0.0
        %v870 = vmax.f32 %v838, 0.0
        %v871 = vmax.f32 %v839, 0.0
        %v872 = vmax.f32 %v840, 0.0
        %v873 = vmax.f32 %v841, 0.0
        %v874 = vmax.f32 %v842, 0.0
        %v875 = vmax.f32 %v843, 0.0
        %v876 = vmax.f32 %v844, 0.0
        %v877 = vmax.f32 %v845, 0.0
        %v878 = vmax.f32 %v846, 0.0
        %v879 = vmax.f32 %v847, 0.0
        %v880 = vmax.f32 %v848, 0.0
        %v881 = vmax.f32 %v849, 0.0
        %v882 = vmax.f32 %v850, 0.0
        %v883 = vmax.f32 %v851, 0.0
        %v884 = vmax.f32 %v852, 0.0
        %v885 = vmax.f32 %v853, 0.0
        %v886 = vmax.f32 %v854, 0.0
        %v887 = vmax.f32 %v855, 0.0
        %v888 = vmax.f32 %v856, 0.0
        %v889 = vmax.f32 %v857, 0.0
        %v890 = vmax.f32 %v858, 0.0
        %v891 = vmax.f32 %v859, 0.0
        %v892 = vmax.f32 %v860, 0.0
        %v893 = vmax.f32 %v861, 0.0
        %v894 = vmax.f32 %v862, 0.0
        %v895 = vmax.f32 %v863, 0.0
        %v896 = vmax.f32 %v864, 0.0
        %v897 = vmax.f32 %v865, 0.0
        %v898 = vmax.f32 %v866, 0.0
        %v899 = vmax.f32 %v867, 0.0
        %900 = vst [vmem:[#allocation2] sm:$0xff] 0.0
        %901 = vst [vmem:[#allocation2 + $0x8] sm:$0xff] 0.0
        %902 = vst [vmem:[#allocation2 + $0x10] sm:$0xff] 0.0
        %903 = vst [vmem:[#allocation2 + $0x118] sm:$0xff] 0.0
        %904 = vst [vmem:[#allocation2 + $0x120] sm:$0xff] 0.0
        %905 = vst [vmem:[#allocation2 + $0x128] sm:$0xff] 0.0
        %906 = vst [vmem:[#allocation2 + $0x18] sm:$0xff] %v868
        %907 = vst [vmem:[#allocation2 + $0x20] sm:$0xff] %v869
        %908 = vst [vmem:[#allocation2 + $0x28] sm:$0xff] %v870
        %909 = vst [vmem:[#allocation2 + $0x30] sm:$0xff] %v871
        %910 = vst [vmem:[#allocation2 + $0x38] sm:$0xff] %v872
        %911 = vst [vmem:[#allocation2 + $0x40] sm:$0xff] %v873
        %912 = vst [vmem:[#allocation2 + $0x48] sm:$0xff] %v874
        %913 = vst [vmem:[#allocation2 + $0x50] sm:$0xff] %v875
        %914 = vst [vmem:[#allocation2 + $0x58] sm:$0xff] %v876
        %915 = vst [vmem:[#allocation2 + $0x60] sm:$0xff] %v877
        %916 = vst [vmem:[#allocation2 + $0x68] sm:$0xff] %v878
        %917 = vst [vmem:[#allocation2 + $0x70] sm:$0xff] %v879
        %918 = vst [vmem:[#allocation2 + $0x78] sm:$0xff] %v880
        %919 = vst [vmem:[#allocation2 + $0x80] sm:$0xff] %v881
        %920 = vst [vmem:[#allocation2 + $0x88] sm:$0xff] %v882
        %921 = vst [vmem:[#allocation2 + $0x90] sm:$0xff] %v883
        %922 = vst [vmem:[#allocation2 + $0x98] sm:$0xff] %v884
        %923 = vst [vmem:[#allocation2 + $0xa0] sm:$0xff] %v885
        %924 = vst [vmem:[#allocation2 + $0xa8] sm:$0xff] %v886
        %925 = vst [vmem:[#allocation2 + $0xb0] sm:$0xff] %v887
        %926 = vst [vmem:[#allocation2 + $0xb8] sm:$0xff] %v888
        %927 = vst [vmem:[#allocation2 + $0xc0] sm:$0xff] %v889
        %928 = vst [vmem:[#allocation2 + $0xc8] sm:$0xff] %v890
        %929 = vst [vmem:[#allocation2 + $0xd0] sm:$0xff] %v891
        %930 = vst [vmem:[#allocation2 + $0xd8] sm:$0xff] %v892
        %931 = vst [vmem:[#allocation2 + $0xe0] sm:$0xff] %v893
        %932 = vst [vmem:[#allocation2 + $0xe8] sm:$0xff] %v894
        %933 = vst [vmem:[#allocation2 + $0xf0] sm:$0xff] %v895
        %934 = vst [vmem:[#allocation2 + $0xf8] sm:$0xff] %v896
        %935 = vst [vmem:[#allocation2 + $0x100] sm:$0xff] %v897
        %936 = vst [vmem:[#allocation2 + $0x108] sm:$0xff] %v898
        %937 = vst [vmem:[#allocation2 + $0x110] sm:$0xff] %v899
        %v938 = vlaneseq
        %v939 = vshrl.u32 %v938, 7
        %v940 = vadd.s32 %v939, 8
        %v941 = vadd.s32 %v939, 16
        %v942 = vadd.s32 %v939, 24
        %v943 = vadd.s32 %v939, 32
        %v944 = vadd.s32 %v939, 40
        %v945 = vadd.s32 %v939, 48
        %v946 = vadd.s32 %v939, 56
        %v947 = vadd.s32 %v939, 64
        %v948 = vadd.s32 %v939, 72
        %v949 = vadd.s32 %v939, 80
        %v950 = vadd.s32 %v939, 88
        %v951 = vadd.s32 %v939, 96
        %v952 = vadd.s32 %v939, 104
        %v953 = vadd.s32 %v939, 112
        %v954 = vadd.s32 %v939, 120
        %v955 = vadd.s32 %v939, 128
        %v956 = vadd.s32 %v939, 136
        %v957 = vadd.s32 %v939, 144
        %v958 = vadd.s32 %v939, 152
        %v959 = vadd.s32 %v939, 160
        %v960 = vadd.s32 %v939, 168
        %v961 = vadd.s32 %v939, 176
        %v962 = vadd.s32 %v939, 184
        %v963 = vadd.s32 %v939, 192
        %v964 = vadd.s32 %v939, 200
        %v965 = vadd.s32 %v939, 208
        %v966 = vadd.s32 %v939, 216
        %v967 = vadd.s32 %v939, 224
        %v968 = vadd.s32 %v939, 232
        %v969 = vadd.s32 %v939, 240
        %v970 = vadd.s32 %v939, 248
        %vm971 = vcmp.lt.s32.totalorder %v939, 0
        %v972 = vsub.s32 0, %v939
        %v973 = vsel %vm971, %v972, %v939
        %v974 = vshrl.u32 %v973, 4
        %v975 = vand.u32 %v973, 15
        %v976 = vsub.s32 0, %v975
        %v977 = vsel %vm971, %v976, %v975
        %vm978 = vcmp.lt.s32.totalorder %v940, 0
        %v979 = vsub.s32 0, %v940
        %v980 = vsel %vm978, %v979, %v940
        %v981 = vshrl.u32 %v980, 4
        %v982 = vand.u32 %v980, 15
        %v983 = vsub.s32 0, %v982
        %v984 = vsel %vm978, %v983, %v982
        %vm985 = vcmp.lt.s32.totalorder %v941, 0
        %v986 = vsub.s32 0, %v941
        %v987 = vsel %vm985, %v986, %v941
        %v988 = vshrl.u32 %v987, 4
        %v989 = vand.u32 %v987, 15
        %v990 = vsub.s32 0, %v989
        %v991 = vsel %vm985, %v990, %v989
        %vm992 = vcmp.lt.s32.totalorder %v942, 0
        %v993 = vsub.s32 0, %v942
        %v994 = vsel %vm992, %v993, %v942
        %v995 = vshrl.u32 %v994, 4
        %v996 = vand.u32 %v994, 15
        %v997 = vsub.s32 0, %v996
        %v998 = vsel %vm992, %v997, %v996
        %vm999 = vcmp.lt.s32.totalorder %v943, 0
        %v1000 = vsub.s32 0, %v943
        %v1001 = vsel %vm999, %v1000, %v943
        %v1002 = vshrl.u32 %v1001, 4
        %v1003 = vand.u32 %v1001, 15
        %v1004 = vsub.s32 0, %v1003
        %v1005 = vsel %vm999, %v1004, %v1003
        %vm1006 = vcmp.lt.s32.totalorder %v944, 0
        %v1007 = vsub.s32 0, %v944
        %v1008 = vsel %vm1006, %v1007, %v944
        %v1009 = vshrl.u32 %v1008, 4
        %v1010 = vand.u32 %v1008, 15
        %v1011 = vsub.s32 0, %v1010
        %v1012 = vsel %vm1006, %v1011, %v1010
        %vm1013 = vcmp.lt.s32.totalorder %v945, 0
        %v1014 = vsub.s32 0, %v945
        %v1015 = vsel %vm1013, %v1014, %v945
        %v1016 = vshrl.u32 %v1015, 4
        %v1017 = vand.u32 %v1015, 15
        %v1018 = vsub.s32 0, %v1017
        %v1019 = vsel %vm1013, %v1018, %v1017
        %vm1020 = vcmp.lt.s32.totalorder %v946, 0
        %v1021 = vsub.s32 0, %v946
        %v1022 = vsel %vm1020, %v1021, %v946
        %v1023 = vshrl.u32 %v1022, 4
        %v1024 = vand.u32 %v1022, 15
        %v1025 = vsub.s32 0, %v1024
        %v1026 = vsel %vm1020, %v1025, %v1024
        %vm1027 = vcmp.lt.s32.totalorder %v947, 0
        %v1028 = vsub.s32 0, %v947
        %v1029 = vsel %vm1027, %v1028, %v947
        %v1030 = vshrl.u32 %v1029, 4
        %v1031 = vand.u32 %v1029, 15
        %v1032 = vsub.s32 0, %v1031
        %v1033 = vsel %vm1027, %v1032, %v1031
        %vm1034 = vcmp.lt.s32.totalorder %v948, 0
        %v1035 = vsub.s32 0, %v948
        %v1036 = vsel %vm1034, %v1035, %v948
        %v1037 = vshrl.u32 %v1036, 4
        %v1038 = vand.u32 %v1036, 15
        %v1039 = vsub.s32 0, %v1038
        %v1040 = vsel %vm1034, %v1039, %v1038
        %vm1041 = vcmp.lt.s32.totalorder %v949, 0
        %v1042 = vsub.s32 0, %v949
        %v1043 = vsel %vm1041, %v1042, %v949
        %v1044 = vshrl.u32 %v1043, 4
        %v1045 = vand.u32 %v1043, 15
        %v1046 = vsub.s32 0, %v1045
        %v1047 = vsel %vm1041, %v1046, %v1045
        %vm1048 = vcmp.lt.s32.totalorder %v950, 0
        %v1049 = vsub.s32 0, %v950
        %v1050 = vsel %vm1048, %v1049, %v950
        %v1051 = vshrl.u32 %v1050, 4
        %v1052 = vand.u32 %v1050, 15
        %v1053 = vsub.s32 0, %v1052
        %v1054 = vsel %vm1048, %v1053, %v1052
        %vm1055 = vcmp.lt.s32.totalorder %v951, 0
        %v1056 = vsub.s32 0, %v951
        %v1057 = vsel %vm1055, %v1056, %v951
        %v1058 = vshrl.u32 %v1057, 4
        %v1059 = vand.u32 %v1057, 15
        %v1060 = vsub.s32 0, %v1059
        %v1061 = vsel %vm1055, %v1060, %v1059
        %vm1062 = vcmp.lt.s32.totalorder %v952, 0
        %v1063 = vsub.s32 0, %v952
        %v1064 = vsel %vm1062, %v1063, %v952
        %v1065 = vshrl.u32 %v1064, 4
        %v1066 = vand.u32 %v1064, 15
        %v1067 = vsub.s32 0, %v1066
        %v1068 = vsel %vm1062, %v1067, %v1066
        %vm1069 = vcmp.lt.s32.totalorder %v953, 0
        %v1070 = vsub.s32 0, %v953
        %v1071 = vsel %vm1069, %v1070, %v953
        %v1072 = vshrl.u32 %v1071, 4
        %v1073 = vand.u32 %v1071, 15
        %v1074 = vsub.s32 0, %v1073
        %v1075 = vsel %vm1069, %v1074, %v1073
        %vm1076 = vcmp.lt.s32.totalorder %v954, 0
        %v1077 = vsub.s32 0, %v954
        %v1078 = vsel %vm1076, %v1077, %v954
        %v1079 = vshrl.u32 %v1078, 4
        %v1080 = vand.u32 %v1078, 15
        %v1081 = vsub.s32 0, %v1080
        %v1082 = vsel %vm1076, %v1081, %v1080
        %vm1083 = vcmp.lt.s32.totalorder %v955, 0
        %v1084 = vsub.s32 0, %v955
        %v1085 = vsel %vm1083, %v1084, %v955
        %v1086 = vshrl.u32 %v1085, 4
        %v1087 = vand.u32 %v1085, 15
        %v1088 = vsub.s32 0, %v1087
        %v1089 = vsel %vm1083, %v1088, %v1087
        %vm1090 = vcmp.lt.s32.totalorder %v956, 0
        %v1091 = vsub.s32 0, %v956
        %v1092 = vsel %vm1090, %v1091, %v956
        %v1093 = vshrl.u32 %v1092, 4
        %v1094 = vand.u32 %v1092, 15
        %v1095 = vsub.s32 0, %v1094
        %v1096 = vsel %vm1090, %v1095, %v1094
        %vm1097 = vcmp.lt.s32.totalorder %v957, 0
        %v1098 = vsub.s32 0, %v957
        %v1099 = vsel %vm1097, %v1098, %v957
        %v1100 = vshrl.u32 %v1099, 4
        %v1101 = vand.u32 %v1099, 15
        %v1102 = vsub.s32 0, %v1101
        %v1103 = vsel %vm1097, %v1102, %v1101
        %vm1104 = vcmp.lt.s32.totalorder %v958, 0
        %v1105 = vsub.s32 0, %v958
        %v1106 = vsel %vm1104, %v1105, %v958
        %v1107 = vshrl.u32 %v1106, 4
        %v1108 = vand.u32 %v1106, 15
        %v1109 = vsub.s32 0, %v1108
        %v1110 = vsel %vm1104, %v1109, %v1108
        %vm1111 = vcmp.lt.s32.totalorder %v959, 0
        %v1112 = vsub.s32 0, %v959
        %v1113 = vsel %vm1111, %v1112, %v959
        %v1114 = vshrl.u32 %v1113, 4
        %v1115 = vand.u32 %v1113, 15
        %v1116 = vsub.s32 0, %v1115
        %v1117 = vsel %vm1111, %v1116, %v1115
        %vm1118 = vcmp.lt.s32.totalorder %v960, 0
        %v1119 = vsub.s32 0, %v960
        %v1120 = vsel %vm1118, %v1119, %v960
        %v1121 = vshrl.u32 %v1120, 4
        %v1122 = vand.u32 %v1120, 15
        %v1123 = vsub.s32 0, %v1122
        %v1124 = vsel %vm1118, %v1123, %v1122
        %vm1125 = vcmp.lt.s32.totalorder %v961, 0
        %v1126 = vsub.s32 0, %v961
        %v1127 = vsel %vm1125, %v1126, %v961
        %v1128 = vshrl.u32 %v1127, 4
        %v1129 = vand.u32 %v1127, 15
        %v1130 = vsub.s32 0, %v1129
        %v1131 = vsel %vm1125, %v1130, %v1129
        %vm1132 = vcmp.lt.s32.totalorder %v962, 0
        %v1133 = vsub.s32 0, %v962
        %v1134 = vsel %vm1132, %v1133, %v962
        %v1135 = vshrl.u32 %v1134, 4
        %v1136 = vand.u32 %v1134, 15
        %v1137 = vsub.s32 0, %v1136
        %v1138 = vsel %vm1132, %v1137, %v1136
        %vm1139 = vcmp.lt.s32.totalorder %v963, 0
        %v1140 = vsub.s32 0, %v963
        %v1141 = vsel %vm1139, %v1140, %v963
        %v1142 = vshrl.u32 %v1141, 4
        %v1143 = vand.u32 %v1141, 15
        %v1144 = vsub.s32 0, %v1143
        %v1145 = vsel %vm1139, %v1144, %v1143
        %vm1146 = vcmp.lt.s32.totalorder %v964, 0
        %v1147 = vsub.s32 0, %v964
        %v1148 = vsel %vm1146, %v1147, %v964
        %v1149 = vshrl.u32 %v1148, 4
        %v1150 = vand.u32 %v1148, 15
        %v1151 = vsub.s32 0, %v1150
        %v1152 = vsel %vm1146, %v1151, %v1150
        %vm1153 = vcmp.lt.s32.totalorder %v965, 0
        %v1154 = vsub.s32 0, %v965
        %v1155 = vsel %vm1153, %v1154, %v965
        %v1156 = vshrl.u32 %v1155, 4
        %v1157 = vand.u32 %v1155, 15
        %v1158 = vsub.s32 0, %v1157
        %v1159 = vsel %vm1153, %v1158, %v1157
        %vm1160 = vcmp.lt.s32.totalorder %v966, 0
        %v1161 = vsub.s32 0, %v966
        %v1162 = vsel %vm1160, %v1161, %v966
        %v1163 = vshrl.u32 %v1162, 4
        %v1164 = vand.u32 %v1162, 15
        %v1165 = vsub.s32 0, %v1164
        %v1166 = vsel %vm1160, %v1165, %v1164
        %vm1167 = vcmp.lt.s32.totalorder %v967, 0
        %v1168 = vsub.s32 0, %v967
        %v1169 = vsel %vm1167, %v1168, %v967
        %v1170 = vshrl.u32 %v1169, 4
        %v1171 = vand.u32 %v1169, 15
        %v1172 = vsub.s32 0, %v1171
        %v1173 = vsel %vm1167, %v1172, %v1171
        %vm1174 = vcmp.lt.s32.totalorder %v968, 0
        %v1175 = vsub.s32 0, %v968
        %v1176 = vsel %vm1174, %v1175, %v968
        %v1177 = vshrl.u32 %v1176, 4
        %v1178 = vand.u32 %v1176, 15
        %v1179 = vsub.s32 0, %v1178
        %v1180 = vsel %vm1174, %v1179, %v1178
        %vm1181 = vcmp.lt.s32.totalorder %v969, 0
        %v1182 = vsub.s32 0, %v969
        %v1183 = vsel %vm1181, %v1182, %v969
        %v1184 = vshrl.u32 %v1183, 4
        %v1185 = vand.u32 %v1183, 15
        %v1186 = vsub.s32 0, %v1185
        %v1187 = vsel %vm1181, %v1186, %v1185
        %vm1188 = vcmp.lt.s32.totalorder %v970, 0
        %v1189 = vsub.s32 0, %v970
        %v1190 = vsel %vm1188, %v1189, %v970
        %v1191 = vshrl.u32 %v1190, 4
        %v1192 = vand.u32 %v1190, 15
        %v1193 = vsub.s32 0, %v1192
        %v1194 = vsel %vm1188, %v1193, %v1192
        %vm1195 = vcmp.ne.s32.totalorder %v977, 0
        %vm1196 = vcmp.ne.s32.totalorder %v984, 0
        %vm1197 = vcmp.ne.s32.totalorder %v991, 0
        %vm1198 = vcmp.ne.s32.totalorder %v998, 0
        %vm1199 = vcmp.ne.s32.totalorder %v1005, 0
        %vm1200 = vcmp.ne.s32.totalorder %v1012, 0
        %vm1201 = vcmp.ne.s32.totalorder %v1019, 0
        %vm1202 = vcmp.ne.s32.totalorder %v1026, 0
        %vm1203 = vcmp.ne.s32.totalorder %v1033, 0
        %vm1204 = vcmp.ne.s32.totalorder %v1040, 0
        %vm1205 = vcmp.ne.s32.totalorder %v1047, 0
        %vm1206 = vcmp.ne.s32.totalorder %v1054, 0
        %vm1207 = vcmp.ne.s32.totalorder %v1061, 0
        %vm1208 = vcmp.ne.s32.totalorder %v1068, 0
        %vm1209 = vcmp.ne.s32.totalorder %v1075, 0
        %vm1210 = vcmp.ne.s32.totalorder %v1082, 0
        %vm1211 = vcmp.ne.s32.totalorder %v1089, 0
        %vm1212 = vcmp.ne.s32.totalorder %v1096, 0
        %vm1213 = vcmp.ne.s32.totalorder %v1103, 0
        %vm1214 = vcmp.ne.s32.totalorder %v1110, 0
        %vm1215 = vcmp.ne.s32.totalorder %v1117, 0
        %vm1216 = vcmp.ne.s32.totalorder %v1124, 0
        %vm1217 = vcmp.ne.s32.totalorder %v1131, 0
        %vm1218 = vcmp.ne.s32.totalorder %v1138, 0
        %vm1219 = vcmp.ne.s32.totalorder %v1145, 0
        %vm1220 = vcmp.ne.s32.totalorder %v1152, 0
        %vm1221 = vcmp.ne.s32.totalorder %v1159, 0
        %vm1222 = vcmp.ne.s32.totalorder %v1166, 0
        %vm1223 = vcmp.ne.s32.totalorder %v1173, 0
        %vm1224 = vcmp.ne.s32.totalorder %v1180, 0
        %vm1225 = vcmp.ne.s32.totalorder %v1187, 0
        %vm1226 = vcmp.ne.s32.totalorder %v1194, 0
        %vm1227 = vcmp.lt.s32.totalorder %v977, 0
        %vm1228 = vcmp.lt.s32.totalorder %v984, 0
        %vm1229 = vcmp.lt.s32.totalorder %v991, 0
        %vm1230 = vcmp.lt.s32.totalorder %v998, 0
        %vm1231 = vcmp.lt.s32.totalorder %v1005, 0
        %vm1232 = vcmp.lt.s32.totalorder %v1012, 0
        %vm1233 = vcmp.lt.s32.totalorder %v1019, 0
        %vm1234 = vcmp.lt.s32.totalorder %v1026, 0
        %vm1235 = vcmp.lt.s32.totalorder %v1033, 0
        %vm1236 = vcmp.lt.s32.totalorder %v1040, 0
        %vm1237 = vcmp.lt.s32.totalorder %v1047, 0
        %vm1238 = vcmp.lt.s32.totalorder %v1054, 0
        %vm1239 = vcmp.lt.s32.totalorder %v1061, 0
        %vm1240 = vcmp.lt.s32.totalorder %v1068, 0
        %vm1241 = vcmp.lt.s32.totalorder %v1075, 0
        %vm1242 = vcmp.lt.s32.totalorder %v1082, 0
        %vm1243 = vcmp.lt.s32.totalorder %v1089, 0
        %vm1244 = vcmp.lt.s32.totalorder %v1096, 0
        %vm1245 = vcmp.lt.s32.totalorder %v1103, 0
        %vm1246 = vcmp.lt.s32.totalorder %v1110, 0
        %vm1247 = vcmp.lt.s32.totalorder %v1117, 0
        %vm1248 = vcmp.lt.s32.totalorder %v1124, 0
        %vm1249 = vcmp.lt.s32.totalorder %v1131, 0
        %vm1250 = vcmp.lt.s32.totalorder %v1138, 0
        %vm1251 = vcmp.lt.s32.totalorder %v1145, 0
        %vm1252 = vcmp.lt.s32.totalorder %v1152, 0
        %vm1253 = vcmp.lt.s32.totalorder %v1159, 0
        %vm1254 = vcmp.lt.s32.totalorder %v1166, 0
        %vm1255 = vcmp.lt.s32.totalorder %v1173, 0
        %vm1256 = vcmp.lt.s32.totalorder %v1180, 0
        %vm1257 = vcmp.lt.s32.totalorder %v1187, 0
        %vm1258 = vcmp.lt.s32.totalorder %v1194, 0
        %vm1259 = vmand %vm1227, %vm1195
        %vm1260 = vmand %vm1228, %vm1196
        %vm1261 = vmand %vm1229, %vm1197
        %vm1262 = vmand %vm1230, %vm1198
        %vm1263 = vmand %vm1231, %vm1199
        %vm1264 = vmand %vm1232, %vm1200
        %vm1265 = vmand %vm1233, %vm1201
        %vm1266 = vmand %vm1234, %vm1202
        %vm1267 = vmand %vm1235, %vm1203
        %vm1268 = vmand %vm1236, %vm1204
        %vm1269 = vmand %vm1237, %vm1205
        %vm1270 = vmand %vm1238, %vm1206
        %vm1271 = vmand %vm1239, %vm1207
        %vm1272 = vmand %vm1240, %vm1208
        %vm1273 = vmand %vm1241, %vm1209
        %vm1274 = vmand %vm1242, %vm1210
        %vm1275 = vmand %vm1243, %vm1211
        %vm1276 = vmand %vm1244, %vm1212
        %vm1277 = vmand %vm1245, %vm1213
        %vm1278 = vmand %vm1246, %vm1214
        %vm1279 = vmand %vm1247, %vm1215
        %vm1280 = vmand %vm1248, %vm1216
        %vm1281 = vmand %vm1249, %vm1217
        %vm1282 = vmand %vm1250, %vm1218
        %vm1283 = vmand %vm1251, %vm1219
        %vm1284 = vmand %vm1252, %vm1220
        %vm1285 = vmand %vm1253, %vm1221
        %vm1286 = vmand %vm1254, %vm1222
        %vm1287 = vmand %vm1255, %vm1223
        %vm1288 = vmand %vm1256, %vm1224
        %vm1289 = vmand %vm1257, %vm1225
        %vm1290 = vmand %vm1258, %vm1226
        %v1291 = vadd.s32 %v977, 16
        %v1292 = vadd.s32 %v984, 16
        %v1293 = vadd.s32 %v991, 16
        %v1294 = vadd.s32 %v998, 16
        %v1295 = vadd.s32 %v1005, 16
        %v1296 = vadd.s32 %v1012, 16
        %v1297 = vadd.s32 %v1019, 16
        %v1298 = vadd.s32 %v1026, 16
        %v1299 = vadd.s32 %v1033, 16
        %v1300 = vadd.s32 %v1040, 16
        %v1301 = vadd.s32 %v1047, 16
        %v1302 = vadd.s32 %v1054, 16
        %v1303 = vadd.s32 %v1061, 16
        %v1304 = vadd.s32 %v1068, 16
        %v1305 = vadd.s32 %v1075, 16
        %v1306 = vadd.s32 %v1082, 16
        %v1307 = vadd.s32 %v1089, 16
        %v1308 = vadd.s32 %v1096, 16
        %v1309 = vadd.s32 %v1103, 16
        %v1310 = vadd.s32 %v1110, 16
        %v1311 = vadd.s32 %v1117, 16
        %v1312 = vadd.s32 %v1124, 16
        %v1313 = vadd.s32 %v1131, 16
        %v1314 = vadd.s32 %v1138, 16
        %v1315 = vadd.s32 %v1145, 16
        %v1316 = vadd.s32 %v1152, 16
        %v1317 = vadd.s32 %v1159, 16
        %v1318 = vadd.s32 %v1166, 16
        %v1319 = vadd.s32 %v1173, 16
        %v1320 = vadd.s32 %v1180, 16
        %v1321 = vadd.s32 %v1187, 16
        %v1322 = vadd.s32 %v1194, 16
        %v1323 = vsel %vm1259, %v1291, %v977
        %v1324 = vsel %vm1260, %v1292, %v984
        %v1325 = vsel %vm1261, %v1293, %v991
        %v1326 = vsel %vm1262, %v1294, %v998
        %v1327 = vsel %vm1263, %v1295, %v1005
        %v1328 = vsel %vm1264, %v1296, %v1012
        %v1329 = vsel %vm1265, %v1297, %v1019
        %v1330 = vsel %vm1266, %v1298, %v1026
        %v1331 = vsel %vm1267, %v1299, %v1033
        %v1332 = vsel %vm1268, %v1300, %v1040
        %v1333 = vsel %vm1269, %v1301, %v1047
        %v1334 = vsel %vm1270, %v1302, %v1054
        %v1335 = vsel %vm1271, %v1303, %v1061
        %v1336 = vsel %vm1272, %v1304, %v1068
        %v1337 = vsel %vm1273, %v1305, %v1075
        %v1338 = vsel %vm1274, %v1306, %v1082
        %v1339 = vsel %vm1275, %v1307, %v1089
        %v1340 = vsel %vm1276, %v1308, %v1096
        %v1341 = vsel %vm1277, %v1309, %v1103
        %v1342 = vsel %vm1278, %v1310, %v1110
        %v1343 = vsel %vm1279, %v1311, %v1117
        %v1344 = vsel %vm1280, %v1312, %v1124
        %v1345 = vsel %vm1281, %v1313, %v1131
        %v1346 = vsel %vm1282, %v1314, %v1138
        %v1347 = vsel %vm1283, %v1315, %v1145
        %v1348 = vsel %vm1284, %v1316, %v1152
        %v1349 = vsel %vm1285, %v1317, %v1159
        %v1350 = vsel %vm1286, %v1318, %v1166
        %v1351 = vsel %vm1287, %v1319, %v1173
        %v1352 = vsel %vm1288, %v1320, %v1180
        %v1353 = vsel %vm1289, %v1321, %v1187
        %v1354 = vsel %vm1290, %v1322, %v1194
        %vm1355 = vcmp.ne.s32.totalorder %v1323, 0
        %vm1356 = vcmp.ne.s32.totalorder %v1324, 0
        %vm1357 = vcmp.ne.s32.totalorder %v1325, 0
        %vm1358 = vcmp.ne.s32.totalorder %v1326, 0
        %vm1359 = vcmp.ne.s32.totalorder %v1327, 0
        %vm1360 = vcmp.ne.s32.totalorder %v1328, 0
        %vm1361 = vcmp.ne.s32.totalorder %v1329, 0
        %vm1362 = vcmp.ne.s32.totalorder %v1330, 0
        %vm1363 = vcmp.ne.s32.totalorder %v1331, 0
        %vm1364 = vcmp.ne.s32.totalorder %v1332, 0
        %vm1365 = vcmp.ne.s32.totalorder %v1333, 0
        %vm1366 = vcmp.ne.s32.totalorder %v1334, 0
        %vm1367 = vcmp.ne.s32.totalorder %v1335, 0
        %vm1368 = vcmp.ne.s32.totalorder %v1336, 0
        %vm1369 = vcmp.ne.s32.totalorder %v1337, 0
        %vm1370 = vcmp.ne.s32.totalorder %v1338, 0
        %vm1371 = vcmp.ne.s32.totalorder %v1339, 0
        %vm1372 = vcmp.ne.s32.totalorder %v1340, 0
        %vm1373 = vcmp.ne.s32.totalorder %v1341, 0
        %vm1374 = vcmp.ne.s32.totalorder %v1342, 0
        %vm1375 = vcmp.ne.s32.totalorder %v1343, 0
        %vm1376 = vcmp.ne.s32.totalorder %v1344, 0
        %vm1377 = vcmp.ne.s32.totalorder %v1345, 0
        %vm1378 = vcmp.ne.s32.totalorder %v1346, 0
        %vm1379 = vcmp.ne.s32.totalorder %v1347, 0
        %vm1380 = vcmp.ne.s32.totalorder %v1348, 0
        %vm1381 = vcmp.ne.s32.totalorder %v1349, 0
        %vm1382 = vcmp.ne.s32.totalorder %v1350, 0
        %vm1383 = vcmp.ne.s32.totalorder %v1351, 0
        %vm1384 = vcmp.ne.s32.totalorder %v1352, 0
        %vm1385 = vcmp.ne.s32.totalorder %v1353, 0
        %vm1386 = vcmp.ne.s32.totalorder %v1354, 0
        %vm1387 = vcmp.ne.s32.totalorder %v1323, 15
        %vm1388 = vcmp.ne.s32.totalorder %v1324, 15
        %vm1389 = vcmp.ne.s32.totalorder %v1325, 15
        %vm1390 = vcmp.ne.s32.totalorder %v1326, 15
        %vm1391 = vcmp.ne.s32.totalorder %v1327, 15
        %vm1392 = vcmp.ne.s32.totalorder %v1328, 15
        %vm1393 = vcmp.ne.s32.totalorder %v1329, 15
        %vm1394 = vcmp.ne.s32.totalorder %v1330, 15
        %vm1395 = vcmp.ne.s32.totalorder %v1331, 15
        %vm1396 = vcmp.ne.s32.totalorder %v1332, 15
        %vm1397 = vcmp.ne.s32.totalorder %v1333, 15
        %vm1398 = vcmp.ne.s32.totalorder %v1334, 15
        %vm1399 = vcmp.ne.s32.totalorder %v1335, 15
        %vm1400 = vcmp.ne.s32.totalorder %v1336, 15
        %vm1401 = vcmp.ne.s32.totalorder %v1337, 15
        %vm1402 = vcmp.ne.s32.totalorder %v1338, 15
        %vm1403 = vcmp.ne.s32.totalorder %v1339, 15
        %vm1404 = vcmp.ne.s32.totalorder %v1340, 15
        %vm1405 = vcmp.ne.s32.totalorder %v1341, 15
        %vm1406 = vcmp.ne.s32.totalorder %v1342, 15
        %vm1407 = vcmp.ne.s32.totalorder %v1343, 15
        %vm1408 = vcmp.ne.s32.totalorder %v1344, 15
        %vm1409 = vcmp.ne.s32.totalorder %v1345, 15
        %vm1410 = vcmp.ne.s32.totalorder %v1346, 15
        %vm1411 = vcmp.ne.s32.totalorder %v1347, 15
        %vm1412 = vcmp.ne.s32.totalorder %v1348, 15
        %vm1413 = vcmp.ne.s32.totalorder %v1349, 15
        %vm1414 = vcmp.ne.s32.totalorder %v1350, 15
        %vm1415 = vcmp.ne.s32.totalorder %v1351, 15
        %vm1416 = vcmp.ne.s32.totalorder %v1352, 15
        %vm1417 = vcmp.ne.s32.totalorder %v1353, 15
        %vm1418 = vcmp.ne.s32.totalorder %v1354, 15
        %v1419 = vld [vmem:[#allocation2 + $0x7] sm:$0xff]
        %v1420 = vld [vmem:[#allocation2 + $0xf] sm:$0xff]
        %v1421 = vld [vmem:[#allocation2 + $0x17] sm:$0xff]
        %v1422 = vld [vmem:[#allocation2 + $0x1f] sm:$0xff]
        %v1423 = vld [vmem:[#allocation2 + $0x27] sm:$0xff]
        %v1424 = vld [vmem:[#allocation2 + $0x2f] sm:$0xff]
        %v1425 = vld [vmem:[#allocation2 + $0x37] sm:$0xff]
        %v1426 = vld [vmem:[#allocation2 + $0x3f] sm:$0xff]
        %v1427 = vld [vmem:[#allocation2 + $0x47] sm:$0xff]
        %v1428 = vld [vmem:[#allocation2 + $0x4f] sm:$0xff]
        %v1429 = vld [vmem:[#allocation2 + $0x57] sm:$0xff]
        %v1430 = vld [vmem:[#allocation2 + $0x5f] sm:$0xff]
        %v1431 = vld [vmem:[#allocation2 + $0x67] sm:$0xff]
        %v1432 = vld [vmem:[#allocation2 + $0x6f] sm:$0xff]
        %v1433 = vld [vmem:[#allocation2 + $0x77] sm:$0xff]
        %v1434 = vld [vmem:[#allocation2 + $0x7f] sm:$0xff]
        %v1435 = vld [vmem:[#allocation2 + $0x87] sm:$0xff]
        %v1436 = vld [vmem:[#allocation2 + $0x8f] sm:$0xff]
        %v1437 = vld [vmem:[#allocation2 + $0x97] sm:$0xff]
        %v1438 = vld [vmem:[#allocation2 + $0x9f] sm:$0xff]
        %v1439 = vld [vmem:[#allocation2 + $0xa7] sm:$0xff]
        %v1440 = vld [vmem:[#allocation2 + $0xaf] sm:$0xff]
        %v1441 = vld [vmem:[#allocation2 + $0xb7] sm:$0xff]
        %v1442 = vld [vmem:[#allocation2 + $0xbf] sm:$0xff]
        %v1443 = vld [vmem:[#allocation2 + $0xc7] sm:$0xff]
        %v1444 = vld [vmem:[#allocation2 + $0xcf] sm:$0xff]
        %v1445 = vld [vmem:[#allocation2 + $0xd7] sm:$0xff]
        %v1446 = vld [vmem:[#allocation2 + $0xdf] sm:$0xff]
        %v1447 = vld [vmem:[#allocation2 + $0xe7] sm:$0xff]
        %v1448 = vld [vmem:[#allocation2 + $0xef] sm:$0xff]
        %v1449 = vld [vmem:[#allocation2 + $0xf7] sm:$0xff]
        %v1450 = vld [vmem:[#allocation2 + $0xff] sm:$0xff]
        %v1451 = vpack.c.bf16 %v1420, %v1419
        %v1452 = vpack.c.bf16 %v1422, %v1421
        %v1453 = vpack.c.bf16 %v1424, %v1423
        %v1454 = vpack.c.bf16 %v1426, %v1425
        %v1455 = vpack.c.bf16 %v1428, %v1427
        %v1456 = vpack.c.bf16 %v1430, %v1429
        %v1457 = vpack.c.bf16 %v1432, %v1431
        %v1458 = vpack.c.bf16 %v1434, %v1433
        %v1459 = vpack.c.bf16 %v1436, %v1435
        %v1460 = vpack.c.bf16 %v1438, %v1437
        %v1461 = vpack.c.bf16 %v1440, %v1439
        %v1462 = vpack.c.bf16 %v1442, %v1441
        %v1463 = vpack.c.bf16 %v1444, %v1443
        %v1464 = vpack.c.bf16 %v1446, %v1445
        %v1465 = vpack.c.bf16 %v1448, %v1447
        %v1466 = vpack.c.bf16 %v1450, %v1449
        %v1467 = vld [vmem:[#allocation8] sm:$0xf]
        %v1468 = vld [vmem:[#allocation8 + $0x4] sm:$0xf]
        %v1469 = vld [vmem:[#allocation8 + $0x8] sm:$0xf]
        %v1470 = vld [vmem:[#allocation8 + $0xc] sm:$0xf]
        %v1471 = vld [vmem:[#allocation8 + $0x10] sm:$0xf]
        %v1472 = vld [vmem:[#allocation8 + $0x14] sm:$0xf]
        %v1473 = vld [vmem:[#allocation8 + $0x18] sm:$0xf]
        %v1474 = vld [vmem:[#allocation8 + $0x1c] sm:$0xf]
        %v1475 = vld [vmem:[#allocation8 + $0x20] sm:$0xf]
        %v1476 = vld [vmem:[#allocation8 + $0x24] sm:$0xf]
        %v1477 = vld [vmem:[#allocation8 + $0x28] sm:$0xf]
        %v1478 = vld [vmem:[#allocation8 + $0x2c] sm:$0xf]
        %v1479 = vld [vmem:[#allocation8 + $0x30] sm:$0xf]
        %v1480 = vld [vmem:[#allocation8 + $0x34] sm:$0xf]
        %v1481 = vld [vmem:[#allocation8 + $0x38] sm:$0xf]
        %v1482 = vld [vmem:[#allocation8 + $0x3c] sm:$0xf]
        %v1499 = vunpack.c.l.b16 %v1467
        %v1500 = vunpack.c.l.b16 %v1468
        %v1501 = vunpack.c.l.b16 %v1469
        %v1502 = vunpack.c.l.b16 %v1470
        %v1503 = vunpack.c.l.b16 %v1471
        %v1504 = vunpack.c.l.b16 %v1472
        %v1505 = vunpack.c.l.b16 %v1473
        %v1506 = vunpack.c.l.b16 %v1474
        %v1507 = vunpack.c.l.b16 %v1475
        %v1508 = vunpack.c.l.b16 %v1476
        %v1509 = vunpack.c.l.b16 %v1477
        %v1510 = vunpack.c.l.b16 %v1478
        %v1511 = vunpack.c.l.b16 %v1479
        %v1512 = vunpack.c.l.b16 %v1480
        %v1513 = vunpack.c.l.b16 %v1481
        %v1514 = vunpack.c.l.b16 %v1482
        %v1515 = vpack.c.b16 %v1500, %v1499
        %v1516 = vpack.c.b16 %v1502, %v1501
        %v1517 = vpack.c.b16 %v1504, %v1503
        %v1518 = vpack.c.b16 %v1506, %v1505
        %v1519 = vpack.c.b16 %v1508, %v1507
        %v1520 = vpack.c.b16 %v1510, %v1509
        %v1521 = vpack.c.b16 %v1512, %v1511
        %v1522 = vpack.c.b16 %v1514, %v1513
        %1531 = vmatprep.subr.bf16.mxu0 0
        %1532 = vmatpush1.bf16.msra.mxu0 %v1515
        %1533 = vmatprep.subr.bf16.mxu0 0
        %1534 = vmatpush1.bf16.msra.mxu0 %v1516
        %1535 = vmatprep.subr.bf16.mxu0 0
        %1536 = vmatpush1.bf16.msra.mxu0 %v1517
        %1537 = vmatprep.subr.bf16.mxu0 0
        %1538 = vmatpush1.bf16.msra.mxu0 %v1518
        %1539 = vmatprep.subr.bf16.mxu0 0
        %1540 = vmatpush1.bf16.msra.mxu0 %v1519
        %1541 = vmatprep.subr.bf16.mxu0 0
        %1542 = vmatpush1.bf16.msra.mxu0 %v1520
        %1543 = vmatprep.subr.bf16.mxu0 0
        %1544 = vmatpush1.bf16.msra.mxu0 %v1521
        %1545 = vmatprep.subr.bf16.mxu0 0
        %1546 = vmatpush1.bf16.msra.mxu0 %v1522
        %1547 = vmatprep.subr.bf16.mxu0 0
        %1548 = vmatpush1.bf16.msra.mxu0 0
        %1549 = vmatprep.subr.bf16.mxu0 0
        %1550 = vmatpush1.bf16.msra.mxu0 0
        %1551 = vmatprep.subr.bf16.mxu0 0
        %1552 = vmatpush1.bf16.msra.mxu0 0
        %1553 = vmatprep.subr.bf16.mxu0 0
        %1554 = vmatpush1.bf16.msra.mxu0 0
        %1555 = vmatprep.subr.bf16.mxu0 0
        %1556 = vmatpush1.bf16.msra.mxu0 0
        %1557 = vmatprep.subr.bf16.mxu0 0
        %1558 = vmatpush1.bf16.msra.mxu0 0
        %1559 = vmatprep.subr.bf16.mxu0 0
        %1560 = vmatpush1.bf16.msra.mxu0 0
        %1561 = vmatprep.subr.bf16.mxu0 0
        %1562 = vmatpush1.bf16.msra.mxu0 0
        %1563 = vmatprep.mubr.bf16.mxu0 0
        %1564 = vmatmul.mubr.bf16.gmra.mrb[0].mxu0 %v1451
        %v1565 = vpop.f32.mrb[0].mxu0
        %v1566 = vadd.f32 0.0, %v1565
        %v1567 = vpop.f32.mrb[0].mxu0
        %v1568 = vpop.f32.mrb[0].mxu0
        %v1569 = vadd.f32 0.0, %v1568
        %v1570 = vpop.f32.mrb[0].mxu0
        %1571 = vmatprep.mubr.bf16.mxu0 0
        %1572 = vmatmul.mubr.bf16.gmra.mrb[0].mxu0 %v1452
        %v1573 = vpop.f32.mrb[0].mxu0
        %v1574 = vadd.f32 0.0, %v1573
        %v1575 = vpop.f32.mrb[0].mxu0
        %v1576 = vpop.f32.mrb[0].mxu0
        %v1577 = vadd.f32 0.0, %v1576
        %v1578 = vpop.f32.mrb[0].mxu0
        %1579 = vmatprep.mubr.bf16.mxu0 0
        %1580 = vmatmul.mubr.bf16.gmra.mrb[0].mxu0 %v1453
        %v1581 = vpop.f32.mrb[0].mxu0
        %v1582 = vadd.f32 0.0, %v1581
        %v1583 = vpop.f32.mrb[0].mxu0
        %v1584 = vpop.f32.mrb[0].mxu0
        %v1585 = vadd.f32 0.0, %v1584
        %v1586 = vpop.f32.mrb[0].mxu0
        %1587 = vmatprep.mubr.bf16.mxu0 0
        %1588 = vmatmul.mubr.bf16.gmra.mrb[0].mxu0 %v1454
        %v1589 = vpop.f32.mrb[0].mxu0
        %v1590 = vadd.f32 0.0, %v1589
        %v1591 = vpop.f32.mrb[0].mxu0
        %v1592 = vpop.f32.mrb[0].mxu0
        %v1593 = vadd.f32 0.0, %v1592
        %v1594 = vpop.f32.mrb[0].mxu0
        %1595 = vmatprep.mubr.bf16.mxu0 0
        %1596 = vmatmul.mubr.bf16.gmra.mrb[0].mxu0 %v1455
        %v1597 = vpop.f32.mrb[0].mxu0
        %v1598 = vadd.f32 0.0, %v1597
        %v1599 = vpop.f32.mrb[0].mxu0
        %v1600 = vpop.f32.mrb[0].mxu0
        %v1601 = vadd.f32 0.0, %v1600
        %v1602 = vpop.f32.mrb[0].mxu0
        %1603 = vmatprep.mubr.bf16.mxu0 0
        %1604 = vmatmul.mubr.bf16.gmra.mrb[0].mxu0 %v1456
        %v1605 = vpop.f32.mrb[0].mxu0
        %v1606 = vadd.f32 0.0, %v1605
        %v1607 = vpop.f32.mrb[0].mxu0
        %v1608 = vpop.f32.mrb[0].mxu0
        %v1609 = vadd.f32 0.0, %v1608
        %v1610 = vpop.f32.mrb[0].mxu0
        %1611 = vmatprep.mubr.bf16.mxu0 0
        %1612 = vmatmul.mubr.bf16.gmra.mrb[0].mxu0 %v1457
        %v1613 = vpop.f32.mrb[0].mxu0
        %v1614 = vadd.f32 0.0, %v1613
        %v1615 = vpop.f32.mrb[0].mxu0
        %v1616 = vpop.f32.mrb[0].mxu0
        %v1617 = vadd.f32 0.0, %v1616
        %v1618 = vpop.f32.mrb[0].mxu0
        %1619 = vmatprep.mubr.bf16.mxu0 0
        %1620 = vmatmul.mubr.bf16.gmra.mrb[0].mxu0 %v1458
        %v1621 = vpop.f32.mrb[0].mxu0
        %v1622 = vadd.f32 0.0, %v1621
        %v1623 = vpop.f32.mrb[0].mxu0
        %v1624 = vpop.f32.mrb[0].mxu0
        %v1625 = vadd.f32 0.0, %v1624
        %v1626 = vpop.f32.mrb[0].mxu0
        %1627 = vmatprep.mubr.bf16.mxu0 0
        %1628 = vmatmul.mubr.bf16.gmra.mrb[0].mxu0 %v1459
        %v1629 = vpop.f32.mrb[0].mxu0
        %v1630 = vadd.f32 0.0, %v1629
        %v1631 = vpop.f32.mrb[0].mxu0
        %v1632 = vpop.f32.mrb[0].mxu0
        %v1633 = vadd.f32 0.0, %v1632
        %v1634 = vpop.f32.mrb[0].mxu0
        %1635 = vmatprep.mubr.bf16.mxu0 0
        %1636 = vmatmul.mubr.bf16.gmra.mrb[0].mxu0 %v1460
        %v1637 = vpop.f32.mrb[0].mxu0
        %v1638 = vadd.f32 0.0, %v1637
        %v1639 = vpop.f32.mrb[0].mxu0
        %v1640 = vpop.f32.mrb[0].mxu0
        %v1641 = vadd.f32 0.0, %v1640
        %v1642 = vpop.f32.mrb[0].mxu0
        %1643 = vmatprep.mubr.bf16.mxu0 0
        %1644 = vmatmul.mubr.bf16.gmra.mrb[0].mxu0 %v1461
        %v1645 = vpop.f32.mrb[0].mxu0
        %v1646 = vadd.f32 0.0, %v1645
        %v1647 = vpop.f32.mrb[0].mxu0
        %v1648 = vpop.f32.mrb[0].mxu0
        %v1649 = vadd.f32 0.0, %v1648
        %v1650 = vpop.f32.mrb[0].mxu0
        %1651 = vmatprep.mubr.bf16.mxu0 0
        %1652 = vmatmul.mubr.bf16.gmra.mrb[0].mxu0 %v1462
        %v1653 = vpop.f32.mrb[0].mxu0
        %v1654 = vadd.f32 0.0, %v1653
        %v1655 = vpop.f32.mrb[0].mxu0
        %v1656 = vpop.f32.mrb[0].mxu0
        %v1657 = vadd.f32 0.0, %v1656
        %v1658 = vpop.f32.mrb[0].mxu0
        %1659 = vmatprep.mubr.bf16.mxu0 0
        %1660 = vmatmul.mubr.bf16.gmra.mrb[0].mxu0 %v1463
        %v1661 = vpop.f32.mrb[0].mxu0
        %v1662 = vadd.f32 0.0, %v1661
        %v1663 = vpop.f32.mrb[0].mxu0
        %v1664 = vpop.f32.mrb[0].mxu0
        %v1665 = vadd.f32 0.0, %v1664
        %v1666 = vpop.f32.mrb[0].mxu0
        %1667 = vmatprep.mubr.bf16.mxu0 0
        %1668 = vmatmul.mubr.bf16.gmra.mrb[0].mxu0 %v1464
        %v1669 = vpop.f32.mrb[0].mxu0
        %v1670 = vadd.f32 0.0, %v1669
        %v1671 = vpop.f32.mrb[0].mxu0
        %v1672 = vpop.f32.mrb[0].mxu0
        %v1673 = vadd.f32 0.0, %v1672
        %v1674 = vpop.f32.mrb[0].mxu0
        %1675 = vmatprep.mubr.bf16.mxu0 0
        %1676 = vmatmul.mubr.bf16.gmra.mrb[0].mxu0 %v1465
        %v1677 = vpop.f32.mrb[0].mxu0
        %v1678 = vadd.f32 0.0, %v1677
        %v1679 = vpop.f32.mrb[0].mxu0
        %v1680 = vpop.f32.mrb[0].mxu0
        %v1681 = vadd.f32 0.0, %v1680
        %v1682 = vpop.f32.mrb[0].mxu0
        %1683 = vmatprep.mubr.bf16.mxu0 0
        %1684 = vmatmul.mubr.bf16.gmra.mrb[0].mxu0 %v1466
        %v1685 = vpop.f32.mrb[0].mxu0
        %v1686 = vadd.f32 0.0, %v1685
        %v1687 = vpop.f32.mrb[0].mxu0
        %v1688 = vpop.f32.mrb[0].mxu0
        %v1689 = vadd.f32 0.0, %v1688
        %v1690 = vpop.f32.mrb[0].mxu0
        %1691 = vdwg.mxu0
        %v1692 = vsel %vm1355, 1, 0
        %v1693 = vsel %vm1356, 1, 0
        %v1694 = vsel %vm1357, 1, 0
        %v1695 = vsel %vm1358, 1, 0
        %v1696 = vsel %vm1359, 1, 0
        %v1697 = vsel %vm1360, 1, 0
        %v1698 = vsel %vm1361, 1, 0
        %v1699 = vsel %vm1362, 1, 0
        %v1700 = vsel %vm1363, 1, 0
        %v1701 = vsel %vm1364, 1, 0
        %v1702 = vsel %vm1365, 1, 0
        %v1703 = vsel %vm1366, 1, 0
        %v1704 = vsel %vm1367, 1, 0
        %v1705 = vsel %vm1368, 1, 0
        %v1706 = vsel %vm1369, 1, 0
        %v1707 = vsel %vm1370, 1, 0
        %v1708 = vsel %vm1371, 1, 0
        %v1709 = vsel %vm1372, 1, 0
        %v1710 = vsel %vm1373, 1, 0
        %v1711 = vsel %vm1374, 1, 0
        %v1712 = vsel %vm1375, 1, 0
        %v1713 = vsel %vm1376, 1, 0
        %v1714 = vsel %vm1377, 1, 0
        %v1715 = vsel %vm1378, 1, 0
        %v1716 = vsel %vm1379, 1, 0
        %v1717 = vsel %vm1380, 1, 0
        %v1718 = vsel %vm1381, 1, 0
        %v1719 = vsel %vm1382, 1, 0
        %v1720 = vsel %vm1383, 1, 0
        %v1721 = vsel %vm1384, 1, 0
        %v1722 = vsel %vm1385, 1, 0
        %v1723 = vsel %vm1386, 1, 0
        %vm1724 = vcmp.eq.s32.totalorder %v1692, 1
        %vm1725 = vcmp.eq.s32.totalorder %v1693, 1
        %vm1726 = vcmp.eq.s32.totalorder %v1694, 1
        %vm1727 = vcmp.eq.s32.totalorder %v1695, 1
        %vm1728 = vcmp.eq.s32.totalorder %v1696, 1
        %vm1729 = vcmp.eq.s32.totalorder %v1697, 1
        %vm1730 = vcmp.eq.s32.totalorder %v1698, 1
        %vm1731 = vcmp.eq.s32.totalorder %v1699, 1
        %vm1732 = vcmp.eq.s32.totalorder %v1700, 1
        %vm1733 = vcmp.eq.s32.totalorder %v1701, 1
        %vm1734 = vcmp.eq.s32.totalorder %v1702, 1
        %vm1735 = vcmp.eq.s32.totalorder %v1703, 1
        %vm1736 = vcmp.eq.s32.totalorder %v1704, 1
        %vm1737 = vcmp.eq.s32.totalorder %v1705, 1
        %vm1738 = vcmp.eq.s32.totalorder %v1706, 1
        %vm1739 = vcmp.eq.s32.totalorder %v1707, 1
        %vm1740 = vcmp.eq.s32.totalorder %v1708, 1
        %vm1741 = vcmp.eq.s32.totalorder %v1709, 1
        %vm1742 = vcmp.eq.s32.totalorder %v1710, 1
        %vm1743 = vcmp.eq.s32.totalorder %v1711, 1
        %vm1744 = vcmp.eq.s32.totalorder %v1712, 1
        %vm1745 = vcmp.eq.s32.totalorder %v1713, 1
        %vm1746 = vcmp.eq.s32.totalorder %v1714, 1
        %vm1747 = vcmp.eq.s32.totalorder %v1715, 1
        %vm1748 = vcmp.eq.s32.totalorder %v1716, 1
        %vm1749 = vcmp.eq.s32.totalorder %v1717, 1
        %vm1750 = vcmp.eq.s32.totalorder %v1718, 1
        %vm1751 = vcmp.eq.s32.totalorder %v1719, 1
        %vm1752 = vcmp.eq.s32.totalorder %v1720, 1
        %vm1753 = vcmp.eq.s32.totalorder %v1721, 1
        %vm1754 = vcmp.eq.s32.totalorder %v1722, 1
        %vm1755 = vcmp.eq.s32.totalorder %v1723, 1
        %v1756 = vsel %vm1724, %v1566, 0.0
        %v1757 = vsel %vm1725, %v1569, 0.0
        %v1758 = vsel %vm1726, %v1574, 0.0
        %v1759 = vsel %vm1727, %v1577, 0.0
        %v1760 = vsel %vm1728, %v1582, 0.0
        %v1761 = vsel %vm1729, %v1585, 0.0
        %v1762 = vsel %vm1730, %v1590, 0.0
        %v1763 = vsel %vm1731, %v1593, 0.0
        %v1764 = vsel %vm1732, %v1598, 0.0
        %v1765 = vsel %vm1733, %v1601, 0.0
        %v1766 = vsel %vm1734, %v1606, 0.0
        %v1767 = vsel %vm1735, %v1609, 0.0
        %v1768 = vsel %vm1736, %v1614, 0.0
        %v1769 = vsel %vm1737, %v1617, 0.0
        %v1770 = vsel %vm1738, %v1622, 0.0
        %v1771 = vsel %vm1739, %v1625, 0.0
        %v1772 = vsel %vm1740, %v1630, 0.0
        %v1773 = vsel %vm1741, %v1633, 0.0
        %v1774 = vsel %vm1742, %v1638, 0.0
        %v1775 = vsel %vm1743, %v1641, 0.0
        %v1776 = vsel %vm1744, %v1646, 0.0
        %v1777 = vsel %vm1745, %v1649, 0.0
        %v1778 = vsel %vm1746, %v1654, 0.0
        %v1779 = vsel %vm1747, %v1657, 0.0
        %v1780 = vsel %vm1748, %v1662, 0.0
        %v1781 = vsel %vm1749, %v1665, 0.0
        %v1782 = vsel %vm1750, %v1670, 0.0
        %v1783 = vsel %vm1751, %v1673, 0.0
        %v1784 = vsel %vm1752, %v1678, 0.0
        %v1785 = vsel %vm1753, %v1681, 0.0
        %v1786 = vsel %vm1754, %v1686, 0.0
        %v1787 = vsel %vm1755, %v1689, 0.0
        %v1788 = vadd.f32 %v1756, 0.0
        %v1789 = vadd.f32 %v1757, 0.0
        %v1790 = vadd.f32 %v1758, 0.0
        %v1791 = vadd.f32 %v1759, 0.0
        %v1792 = vadd.f32 %v1760, 0.0
        %v1793 = vadd.f32 %v1761, 0.0
        %v1794 = vadd.f32 %v1762, 0.0
        %v1795 = vadd.f32 %v1763, 0.0
        %v1796 = vadd.f32 %v1764, 0.0
        %v1797 = vadd.f32 %v1765, 0.0
        %v1798 = vadd.f32 %v1766, 0.0
        %v1799 = vadd.f32 %v1767, 0.0
        %v1800 = vadd.f32 %v1768, 0.0
        %v1801 = vadd.f32 %v1769, 0.0
        %v1802 = vadd.f32 %v1770, 0.0
        %v1803 = vadd.f32 %v1771, 0.0
        %v1804 = vadd.f32 %v1772, 0.0
        %v1805 = vadd.f32 %v1773, 0.0
        %v1806 = vadd.f32 %v1774, 0.0
        %v1807 = vadd.f32 %v1775, 0.0
        %v1808 = vadd.f32 %v1776, 0.0
        %v1809 = vadd.f32 %v1777, 0.0
        %v1810 = vadd.f32 %v1778, 0.0
        %v1811 = vadd.f32 %v1779, 0.0
        %v1812 = vadd.f32 %v1780, 0.0
        %v1813 = vadd.f32 %v1781, 0.0
        %v1814 = vadd.f32 %v1782, 0.0
        %v1815 = vadd.f32 %v1783, 0.0
        %v1816 = vadd.f32 %v1784, 0.0
        %v1817 = vadd.f32 %v1785, 0.0
        %v1818 = vadd.f32 %v1786, 0.0
        %v1819 = vadd.f32 %v1787, 0.0
        %v1820 = vld [vmem:[#allocation2 + $0x8] sm:$0xff]
        %v1821 = vld [vmem:[#allocation2 + $0x10] sm:$0xff]
        %v1822 = vld [vmem:[#allocation2 + $0x18] sm:$0xff]
        %v1823 = vld [vmem:[#allocation2 + $0x20] sm:$0xff]
        %v1824 = vld [vmem:[#allocation2 + $0x28] sm:$0xff]
        %v1825 = vld [vmem:[#allocation2 + $0x30] sm:$0xff]
        %v1826 = vld [vmem:[#allocation2 + $0x38] sm:$0xff]
        %v1827 = vld [vmem:[#allocation2 + $0x40] sm:$0xff]
        %v1828 = vld [vmem:[#allocation2 + $0x48] sm:$0xff]
        %v1829 = vld [vmem:[#allocation2 + $0x50] sm:$0xff]
        %v1830 = vld [vmem:[#allocation2 + $0x58] sm:$0xff]
        %v1831 = vld [vmem:[#allocation2 + $0x60] sm:$0xff]
        %v1832 = vld [vmem:[#allocation2 + $0x68] sm:$0xff]
        %v1833 = vld [vmem:[#allocation2 + $0x70] sm:$0xff]
        %v1834 = vld [vmem:[#allocation2 + $0x78] sm:$0xff]
        %v1835 = vld [vmem:[#allocation2 + $0x80] sm:$0xff]
        %v1836 = vld [vmem:[#allocation2 + $0x88] sm:$0xff]
        %v1837 = vld [vmem:[#allocation2 + $0x90] sm:$0xff]
        %v1838 = vld [vmem:[#allocation2 + $0x98] sm:$0xff]
        %v1839 = vld [vmem:[#allocation2 + $0xa0] sm:$0xff]
        %v1840 = vld [vmem:[#allocation2 + $0xa8] sm:$0xff]
        %v1841 = vld [vmem:[#allocation2 + $0xb0] sm:$0xff]
        %v1842 = vld [vmem:[#allocation2 + $0xb8] sm:$0xff]
        %v1843 = vld [vmem:[#allocation2 + $0xc0] sm:$0xff]
        %v1844 = vld [vmem:[#allocation2 + $0xc8] sm:$0xff]
        %v1845 = vld [vmem:[#allocation2 + $0xd0] sm:$0xff]
        %v1846 = vld [vmem:[#allocation2 + $0xd8] sm:$0xff]
        %v1847 = vld [vmem:[#allocation2 + $0xe0] sm:$0xff]
        %v1848 = vld [vmem:[#allocation2 + $0xe8] sm:$0xff]
        %v1849 = vld [vmem:[#allocation2 + $0xf0] sm:$0xff]
        %v1850 = vld [vmem:[#allocation2 + $0xf8] sm:$0xff]
        %v1851 = vld [vmem:[#allocation2 + $0x100] sm:$0xff]
        %v1852 = vpack.c.bf16 %v1821, %v1820
        %v1853 = vpack.c.bf16 %v1823, %v1822
        %v1854 = vpack.c.bf16 %v1825, %v1824
        %v1855 = vpack.c.bf16 %v1827, %v1826
        %v1856 = vpack.c.bf16 %v1829, %v1828
        %v1857 = vpack.c.bf16 %v1831, %v1830
        %v1858 = vpack.c.bf16 %v1833, %v1832
        %v1859 = vpack.c.bf16 %v1835, %v1834
        %v1860 = vpack.c.bf16 %v1837, %v1836
        %v1861 = vpack.c.bf16 %v1839, %v1838
        %v1862 = vpack.c.bf16 %v1841, %v1840
        %v1863 = vpack.c.bf16 %v1843, %v1842
        %v1864 = vpack.c.bf16 %v1845, %v1844
        %v1865 = vpack.c.bf16 %v1847, %v1846
        %v1866 = vpack.c.bf16 %v1849, %v1848
        %v1867 = vpack.c.bf16 %v1851, %v1850
        %s1868 = scalar_lea.vmem [#allocation8], 64
        %v1869 = vld [vmem:[%s1868] sm:$0xf]
        %v1870 = vld [vmem:[%s1868 + $0x4] sm:$0xf]
        %v1871 = vld [vmem:[%s1868 + $0x8] sm:$0xf]
        %v1872 = vld [vmem:[%s1868 + $0xc] sm:$0xf]
        %v1873 = vld [vmem:[%s1868 + $0x10] sm:$0xf]
        %v1874 = vld [vmem:[%s1868 + $0x14] sm:$0xf]
        %v1875 = vld [vmem:[%s1868 + $0x18] sm:$0xf]
        %v1876 = vld [vmem:[%s1868 + $0x1c] sm:$0xf]
        %v1877 = vld [vmem:[%s1868 + $0x20] sm:$0xf]
        %v1878 = vld [vmem:[%s1868 + $0x24] sm:$0xf]
        %v1879 = vld [vmem:[%s1868 + $0x28] sm:$0xf]
        %v1880 = vld [vmem:[%s1868 + $0x2c] sm:$0xf]
        %v1881 = vld [vmem:[%s1868 + $0x30] sm:$0xf]
        %v1882 = vld [vmem:[%s1868 + $0x34] sm:$0xf]
        %v1883 = vld [vmem:[%s1868 + $0x38] sm:$0xf]
        %v1884 = vld [vmem:[%s1868 + $0x3c] sm:$0xf]
        %v1901 = vunpack.c.l.b16 %v1869
        %v1902 = vunpack.c.l.b16 %v1870
        %v1903 = vunpack.c.l.b16 %v1871
        %v1904 = vunpack.c.l.b16 %v1872
        %v1905 = vunpack.c.l.b16 %v1873
        %v1906 = vunpack.c.l.b16 %v1874
        %v1907 = vunpack.c.l.b16 %v1875
        %v1908 = vunpack.c.l.b16 %v1876
        %v1909 = vunpack.c.l.b16 %v1877
        %v1910 = vunpack.c.l.b16 %v1878
        %v1911 = vunpack.c.l.b16 %v1879
        %v1912 = vunpack.c.l.b16 %v1880
        %v1913 = vunpack.c.l.b16 %v1881
        %v1914 = vunpack.c.l.b16 %v1882
        %v1915 = vunpack.c.l.b16 %v1883
        %v1916 = vunpack.c.l.b16 %v1884
        %v1917 = vpack.c.b16 %v1902, %v1901
        %v1918 = vpack.c.b16 %v1904, %v1903
        %v1919 = vpack.c.b16 %v1906, %v1905
        %v1920 = vpack.c.b16 %v1908, %v1907
        %v1921 = vpack.c.b16 %v1910, %v1909
        %v1922 = vpack.c.b16 %v1912, %v1911
        %v1923 = vpack.c.b16 %v1914, %v1913
        %v1924 = vpack.c.b16 %v1916, %v1915
        %1933 = vmatprep.subr.bf16.mxu0 0
        %1934 = vmatpush1.bf16.msra.mxu0 %v1917
        %1935 = vmatprep.subr.bf16.mxu0 0
        %1936 = vmatpush1.bf16.msra.mxu0 %v1918
        %1937 = vmatprep.subr.bf16.mxu0 0
        %1938 = vmatpush1.bf16.msra.mxu0 %v1919
        %1939 = vmatprep.subr.bf16.mxu0 0
        %1940 = vmatpush1.bf16.msra.mxu0 %v1920
        %1941 = vmatprep.subr.bf16.mxu0 0
        %1942 = vmatpush1.bf16.msra.mxu0 %v1921
        %1943 = vmatprep.subr.bf16.mxu0 0
        %1944 = vmatpush1.bf16.msra.mxu0 %v1922
        %1945 = vmatprep.subr.bf16.mxu0 0
        %1946 = vmatpush1.bf16.msra.mxu0 %v1923
        %1947 = vmatprep.subr.bf16.mxu0 0
        %1948 = vmatpush1.bf16.msra.mxu0 %v1924
        %1949 = vmatprep.subr.bf16.mxu0 0
        %1950 = vmatpush1.bf16.msra.mxu0 0
        %1951 = vmatprep.subr.bf16.mxu0 0
        %1952 = vmatpush1.bf16.msra.mxu0 0
        %1953 = vmatprep.subr.bf16.mxu0 0
        %1954 = vmatpush1.bf16.msra.mxu0 0
        %1955 = vmatprep.subr.bf16.mxu0 0
        %1956 = vmatpush1.bf16.msra.mxu0 0
        %1957 = vmatprep.subr.bf16.mxu0 0
        %1958 = vmatpush1.bf16.msra.mxu0 0
        %1959 = vmatprep.subr.bf16.mxu0 0
        %1960 = vmatpush1.bf16.msra.mxu0 0
        %1961 = vmatprep.subr.bf16.mxu0 0
        %1962 = vmatpush1.bf16.msra.mxu0 0
        %1963 = vmatprep.subr.bf16.mxu0 0
        %1964 = vmatpush1.bf16.msra.mxu0 0
        %1965 = vmatprep.mubr.bf16.mxu0 0
        %1966 = vmatmul.mubr.bf16.gmra.mrb[0].mxu0 %v1852
        %v1967 = vpop.f32.mrb[0].mxu0
        %v1968 = vadd.f32 0.0, %v1967
        %v1969 = vpop.f32.mrb[0].mxu0
        %v1970 = vpop.f32.mrb[0].mxu0
        %v1971 = vadd.f32 0.0, %v1970
        %v1972 = vpop.f32.mrb[0].mxu0
        %1973 = vmatprep.mubr.bf16.mxu0 0
        %1974 = vmatmul.mubr.bf16.gmra.mrb[0].mxu0 %v1853
        %v1975 = vpop.f32.mrb[0].mxu0
        %v1976 = vadd.f32 0.0, %v1975
        %v1977 = vpop.f32.mrb[0].mxu0
        %v1978 = vpop.f32.mrb[0].mxu0
        %v1979 = vadd.f32 0.0, %v1978
        %v1980 = vpop.f32.mrb[0].mxu0
        %1981 = vmatprep.mubr.bf16.mxu0 0
        %1982 = vmatmul.mubr.bf16.gmra.mrb[0].mxu0 %v1854
        %v1983 = vpop.f32.mrb[0].mxu0
        %v1984 = vadd.f32 0.0, %v1983
        %v1985 = vpop.f32.mrb[0].mxu0
        %v1986 = vpop.f32.mrb[0].mxu0
        %v1987 = vadd.f32 0.0, %v1986
        %v1988 = vpop.f32.mrb[0].mxu0
        %1989 = vmatprep.mubr.bf16.mxu0 0
        %1990 = vmatmul.mubr.bf16.gmra.mrb[0].mxu0 %v1855
        %v1991 = vpop.f32.mrb[0].mxu0
        %v1992 = vadd.f32 0.0, %v1991
        %v1993 = vpop.f32.mrb[0].mxu0
        %v1994 = vpop.f32.mrb[0].mxu0
        %v1995 = vadd.f32 0.0, %v1994
        %v1996 = vpop.f32.mrb[0].mxu0
        %1997 = vmatprep.mubr.bf16.mxu0 0
        %1998 = vmatmul.mubr.bf16.gmra.mrb[0].mxu0 %v1856
        %v1999 = vpop.f32.mrb[0].mxu0
        %v2000 = vadd.f32 0.0, %v1999
        %v2001 = vpop.f32.mrb[0].mxu0
        %v2002 = vpop.f32.mrb[0].mxu0
        %v2003 = vadd.f32 0.0, %v2002
        %v2004 = vpop.f32.mrb[0].mxu0
        %2005 = vmatprep.mubr.bf16.mxu0 0
        %2006 = vmatmul.mubr.bf16.gmra.mrb[0].mxu0 %v1857
        %v2007 = vpop.f32.mrb[0].mxu0
        %v2008 = vadd.f32 0.0, %v2007
        %v2009 = vpop.f32.mrb[0].mxu0
        %v2010 = vpop.f32.mrb[0].mxu0
        %v2011 = vadd.f32 0.0, %v2010
        %v2012 = vpop.f32.mrb[0].mxu0
        %2013 = vmatprep.mubr.bf16.mxu0 0
        %2014 = vmatmul.mubr.bf16.gmra.mrb[0].mxu0 %v1858
        %v2015 = vpop.f32.mrb[0].mxu0
        %v2016 = vadd.f32 0.0, %v2015
        %v2017 = vpop.f32.mrb[0].mxu0
        %v2018 = vpop.f32.mrb[0].mxu0
        %v2019 = vadd.f32 0.0, %v2018
        %v2020 = vpop.f32.mrb[0].mxu0
        %2021 = vmatprep.mubr.bf16.mxu0 0
        %2022 = vmatmul.mubr.bf16.gmra.mrb[0].mxu0 %v1859
        %v2023 = vpop.f32.mrb[0].mxu0
        %v2024 = vadd.f32 0.0, %v2023
        %v2025 = vpop.f32.mrb[0].mxu0
        %v2026 = vpop.f32.mrb[0].mxu0
        %v2027 = vadd.f32 0.0, %v2026
        %v2028 = vpop.f32.mrb[0].mxu0
        %2029 = vmatprep.mubr.bf16.mxu0 0
        %2030 = vmatmul.mubr.bf16.gmra.mrb[0].mxu0 %v1860
        %v2031 = vpop.f32.mrb[0].mxu0
        %v2032 = vadd.f32 0.0, %v2031
        %v2033 = vpop.f32.mrb[0].mxu0
        %v2034 = vpop.f32.mrb[0].mxu0
        %v2035 = vadd.f32 0.0, %v2034
        %v2036 = vpop.f32.mrb[0].mxu0
        %2037 = vmatprep.mubr.bf16.mxu0 0
        %2038 = vmatmul.mubr.bf16.gmra.mrb[0].mxu0 %v1861
        %v2039 = vpop.f32.mrb[0].mxu0
        %v2040 = vadd.f32 0.0, %v2039
        %v2041 = vpop.f32.mrb[0].mxu0
        %v2042 = vpop.f32.mrb[0].mxu0
        %v2043 = vadd.f32 0.0, %v2042
        %v2044 = vpop.f32.mrb[0].mxu0
        %2045 = vmatprep.mubr.bf16.mxu0 0
        %2046 = vmatmul.mubr.bf16.gmra.mrb[0].mxu0 %v1862
        %v2047 = vpop.f32.mrb[0].mxu0
        %v2048 = vadd.f32 0.0, %v2047
        %v2049 = vpop.f32.mrb[0].mxu0
        %v2050 = vpop.f32.mrb[0].mxu0
        %v2051 = vadd.f32 0.0, %v2050
        %v2052 = vpop.f32.mrb[0].mxu0
        %2053 = vmatprep.mubr.bf16.mxu0 0
        %2054 = vmatmul.mubr.bf16.gmra.mrb[0].mxu0 %v1863
        %v2055 = vpop.f32.mrb[0].mxu0
        %v2056 = vadd.f32 0.0, %v2055
        %v2057 = vpop.f32.mrb[0].mxu0
        %v2058 = vpop.f32.mrb[0].mxu0
        %v2059 = vadd.f32 0.0, %v2058
        %v2060 = vpop.f32.mrb[0].mxu0
        %2061 = vmatprep.mubr.bf16.mxu0 0
        %2062 = vmatmul.mubr.bf16.gmra.mrb[0].mxu0 %v1864
        %v2063 = vpop.f32.mrb[0].mxu0
        %v2064 = vadd.f32 0.0, %v2063
        %v2065 = vpop.f32.mrb[0].mxu0
        %v2066 = vpop.f32.mrb[0].mxu0
        %v2067 = vadd.f32 0.0, %v2066
        %v2068 = vpop.f32.mrb[0].mxu0
        %2069 = vmatprep.mubr.bf16.mxu0 0
        %2070 = vmatmul.mubr.bf16.gmra.mrb[0].mxu0 %v1865
        %v2071 = vpop.f32.mrb[0].mxu0
        %v2072 = vadd.f32 0.0, %v2071
        %v2073 = vpop.f32.mrb[0].mxu0
        %v2074 = vpop.f32.mrb[0].mxu0
        %v2075 = vadd.f32 0.0, %v2074
        %v2076 = vpop.f32.mrb[0].mxu0
        %2077 = vmatprep.mubr.bf16.mxu0 0
        %2078 = vmatmul.mubr.bf16.gmra.mrb[0].mxu0 %v1866
        %v2079 = vpop.f32.mrb[0].mxu0
        %v2080 = vadd.f32 0.0, %v2079
        %v2081 = vpop.f32.mrb[0].mxu0
        %v2082 = vpop.f32.mrb[0].mxu0
        %v2083 = vadd.f32 0.0, %v2082
        %v2084 = vpop.f32.mrb[0].mxu0
        %2085 = vmatprep.mubr.bf16.mxu0 0
        %2086 = vmatmul.mubr.bf16.gmra.mrb[0].mxu0 %v1867
        %v2087 = vpop.f32.mrb[0].mxu0
        %v2088 = vadd.f32 0.0, %v2087
        %v2089 = vpop.f32.mrb[0].mxu0
        %v2090 = vpop.f32.mrb[0].mxu0
        %v2091 = vadd.f32 0.0, %v2090
        %v2092 = vpop.f32.mrb[0].mxu0
        %2093 = vdwg.mxu0
        %v2094 = vadd.f32 %v1788, %v1968
        %v2095 = vadd.f32 %v1789, %v1971
        %v2096 = vadd.f32 %v1790, %v1976
        %v2097 = vadd.f32 %v1791, %v1979
        %v2098 = vadd.f32 %v1792, %v1984
        %v2099 = vadd.f32 %v1793, %v1987
        %v2100 = vadd.f32 %v1794, %v1992
        %v2101 = vadd.f32 %v1795, %v1995
        %v2102 = vadd.f32 %v1796, %v2000
        %v2103 = vadd.f32 %v1797, %v2003
        %v2104 = vadd.f32 %v1798, %v2008
        %v2105 = vadd.f32 %v1799, %v2011
        %v2106 = vadd.f32 %v1800, %v2016
        %v2107 = vadd.f32 %v1801, %v2019
        %v2108 = vadd.f32 %v1802, %v2024
        %v2109 = vadd.f32 %v1803, %v2027
        %v2110 = vadd.f32 %v1804, %v2032
        %v2111 = vadd.f32 %v1805, %v2035
        %v2112 = vadd.f32 %v1806, %v2040
        %v2113 = vadd.f32 %v1807, %v2043
        %v2114 = vadd.f32 %v1808, %v2048
        %v2115 = vadd.f32 %v1809, %v2051
        %v2116 = vadd.f32 %v1810, %v2056
        %v2117 = vadd.f32 %v1811, %v2059
        %v2118 = vadd.f32 %v1812, %v2064
        %v2119 = vadd.f32 %v1813, %v2067
        %v2120 = vadd.f32 %v1814, %v2072
        %v2121 = vadd.f32 %v1815, %v2075
        %v2122 = vadd.f32 %v1816, %v2080
        %v2123 = vadd.f32 %v1817, %v2083
        %v2124 = vadd.f32 %v1818, %v2088
        %v2125 = vadd.f32 %v1819, %v2091
        %v2126 = vld [vmem:[#allocation2 + $0x9] sm:$0xff]
        %v2127 = vld [vmem:[#allocation2 + $0x11] sm:$0xff]
        %v2128 = vld [vmem:[#allocation2 + $0x19] sm:$0xff]
        %v2129 = vld [vmem:[#allocation2 + $0x21] sm:$0xff]
        %v2130 = vld [vmem:[#allocation2 + $0x29] sm:$0xff]
        %v2131 = vld [vmem:[#allocation2 + $0x31] sm:$0xff]
        %v2132 = vld [vmem:[#allocation2 + $0x39] sm:$0xff]
        %v2133 = vld [vmem:[#allocation2 + $0x41] sm:$0xff]
        %v2134 = vld [vmem:[#allocation2 + $0x49] sm:$0xff]
        %v2135 = vld [vmem:[#allocation2 + $0x51] sm:$0xff]
        %v2136 = vld [vmem:[#allocation2 + $0x59] sm:$0xff]
        %v2137 = vld [vmem:[#allocation2 + $0x61] sm:$0xff]
        %v2138 = vld [vmem:[#allocation2 + $0x69] sm:$0xff]
        %v2139 = vld [vmem:[#allocation2 + $0x71] sm:$0xff]
        %v2140 = vld [vmem:[#allocation2 + $0x79] sm:$0xff]
        %v2141 = vld [vmem:[#allocation2 + $0x81] sm:$0xff]
        %v2142 = vld [vmem:[#allocation2 + $0x89] sm:$0xff]
        %v2143 = vld [vmem:[#allocation2 + $0x91] sm:$0xff]
        %v2144 = vld [vmem:[#allocation2 + $0x99] sm:$0xff]
        %v2145 = vld [vmem:[#allocation2 + $0xa1] sm:$0xff]
        %v2146 = vld [vmem:[#allocation2 + $0xa9] sm:$0xff]
        %v2147 = vld [vmem:[#allocation2 + $0xb1] sm:$0xff]
        %v2148 = vld [vmem:[#allocation2 + $0xb9] sm:$0xff]
        %v2149 = vld [vmem:[#allocation2 + $0xc1] sm:$0xff]
        %v2150 = vld [vmem:[#allocation2 + $0xc9] sm:$0xff]
        %v2151 = vld [vmem:[#allocation2 + $0xd1] sm:$0xff]
        %v2152 = vld [vmem:[#allocation2 + $0xd9] sm:$0xff]
        %v2153 = vld [vmem:[#allocation2 + $0xe1] sm:$0xff]
        %v2154 = vld [vmem:[#allocation2 + $0xe9] sm:$0xff]
        %v2155 = vld [vmem:[#allocation2 + $0xf1] sm:$0xff]
        %v2156 = vld [vmem:[#allocation2 + $0xf9] sm:$0xff]
        %v2157 = vld [vmem:[#allocation2 + $0x101] sm:$0xff]
        %v2158 = vpack.c.bf16 %v2127, %v2126
        %v2159 = vpack.c.bf16 %v2129, %v2128
        %v2160 = vpack.c.bf16 %v2131, %v2130
        %v2161 = vpack.c.bf16 %v2133, %v2132
        %v2162 = vpack.c.bf16 %v2135, %v2134
        %v2163 = vpack.c.bf16 %v2137, %v2136
        %v2164 = vpack.c.bf16 %v2139, %v2138
        %v2165 = vpack.c.bf16 %v2141, %v2140
        %v2166 = vpack.c.bf16 %v2143, %v2142
        %v2167 = vpack.c.bf16 %v2145, %v2144
        %v2168 = vpack.c.bf16 %v2147, %v2146
        %v2169 = vpack.c.bf16 %v2149, %v2148
        %v2170 = vpack.c.bf16 %v2151, %v2150
        %v2171 = vpack.c.bf16 %v2153, %v2152
        %v2172 = vpack.c.bf16 %v2155, %v2154
        %v2173 = vpack.c.bf16 %v2157, %v2156
        %s2174 = scalar_lea.vmem [#allocation8], 128
        %v2175 = vld [vmem:[%s2174] sm:$0xf]
        %v2176 = vld [vmem:[%s2174 + $0x4] sm:$0xf]
        %v2177 = vld [vmem:[%s2174 + $0x8] sm:$0xf]
        %v2178 = vld [vmem:[%s2174 + $0xc] sm:$0xf]
        %v2179 = vld [vmem:[%s2174 + $0x10] sm:$0xf]
        %v2180 = vld [vmem:[%s2174 + $0x14] sm:$0xf]
        %v2181 = vld [vmem:[%s2174 + $0x18] sm:$0xf]
        %v2182 = vld [vmem:[%s2174 + $0x1c] sm:$0xf]
        %v2183 = vld [vmem:[%s2174 + $0x20] sm:$0xf]
        %v2184 = vld [vmem:[%s2174 + $0x24] sm:$0xf]
        %v2185 = vld [vmem:[%s2174 + $0x28] sm:$0xf]
        %v2186 = vld [vmem:[%s2174 + $0x2c] sm:$0xf]
        %v2187 = vld [vmem:[%s2174 + $0x30] sm:$0xf]
        %v2188 = vld [vmem:[%s2174 + $0x34] sm:$0xf]
        %v2189 = vld [vmem:[%s2174 + $0x38] sm:$0xf]
        %v2190 = vld [vmem:[%s2174 + $0x3c] sm:$0xf]
        %v2207 = vunpack.c.l.b16 %v2175
        %v2208 = vunpack.c.l.b16 %v2176
        %v2209 = vunpack.c.l.b16 %v2177
        %v2210 = vunpack.c.l.b16 %v2178
        %v2211 = vunpack.c.l.b16 %v2179
        %v2212 = vunpack.c.l.b16 %v2180
        %v2213 = vunpack.c.l.b16 %v2181
        %v2214 = vunpack.c.l.b16 %v2182
        %v2215 = vunpack.c.l.b16 %v2183
        %v2216 = vunpack.c.l.b16 %v2184
        %v2217 = vunpack.c.l.b16 %v2185
        %v2218 = vunpack.c.l.b16 %v2186
        %v2219 = vunpack.c.l.b16 %v2187
        %v2220 = vunpack.c.l.b16 %v2188
        %v2221 = vunpack.c.l.b16 %v2189
        %v2222 = vunpack.c.l.b16 %v2190
        %v2223 = vpack.c.b16 %v2208, %v2207
        %v2224 = vpack.c.b16 %v2210, %v2209
        %v2225 = vpack.c.b16 %v2212, %v2211
        %v2226 = vpack.c.b16 %v2214, %v2213
        %v2227 = vpack.c.b16 %v2216, %v2215
        %v2228 = vpack.c.b16 %v2218, %v2217
        %v2229 = vpack.c.b16 %v2220, %v2219
        %v2230 = vpack.c.b16 %v2222, %v2221
        %2239 = vmatprep.subr.bf16.mxu0 0
        %2240 = vmatpush1.bf16.msra.mxu0 %v2223
        %2241 = vmatprep.subr.bf16.mxu0 0
        %2242 = vmatpush1.bf16.msra.mxu0 %v2224
        %2243 = vmatprep.subr.bf16.mxu0 0
        %2244 = vmatpush1.bf16.msra.mxu0 %v2225
        %2245 = vmatprep.subr.bf16.mxu0 0
        %2246 = vmatpush1.bf16.msra.mxu0 %v2226
        %2247 = vmatprep.subr.bf16.mxu0 0
        %2248 = vmatpush1.bf16.msra.mxu0 %v2227
        %2249 = vmatprep.subr.bf16.mxu0 0
        %2250 = vmatpush1.bf16.msra.mxu0 %v2228
        %2251 = vmatprep.subr.bf16.mxu0 0
        %2252 = vmatpush1.bf16.msra.mxu0 %v2229
        %2253 = vmatprep.subr.bf16.mxu0 0
        %2254 = vmatpush1.bf16.msra.mxu0 %v2230
        %2255 = vmatprep.subr.bf16.mxu0 0
        %2256 = vmatpush1.bf16.msra.mxu0 0
        %2257 = vmatprep.subr.bf16.mxu0 0
        %2258 = vmatpush1.bf16.msra.mxu0 0
        %2259 = vmatprep.subr.bf16.mxu0 0
        %2260 = vmatpush1.bf16.msra.mxu0 0
        %2261 = vmatprep.subr.bf16.mxu0 0
        %2262 = vmatpush1.bf16.msra.mxu0 0
        %2263 = vmatprep.subr.bf16.mxu0 0
        %2264 = vmatpush1.bf16.msra.mxu0 0
        %2265 = vmatprep.subr.bf16.mxu0 0
        %2266 = vmatpush1.bf16.msra.mxu0 0
        %2267 = vmatprep.subr.bf16.mxu0 0
        %2268 = vmatpush1.bf16.msra.mxu0 0
        %2269 = vmatprep.subr.bf16.mxu0 0
        %2270 = vmatpush1.bf16.msra.mxu0 0
        %2271 = vmatprep.mubr.bf16.mxu0 0
        %2272 = vmatmul.mubr.bf16.gmra.mrb[0].mxu0 %v2158
        %v2273 = vpop.f32.mrb[0].mxu0
        %v2274 = vadd.f32 0.0, %v2273
        %v2275 = vpop.f32.mrb[0].mxu0
        %v2276 = vpop.f32.mrb[0].mxu0
        %v2277 = vadd.f32 0.0, %v2276
        %v2278 = vpop.f32.mrb[0].mxu0
        %2279 = vmatprep.mubr.bf16.mxu0 0
        %2280 = vmatmul.mubr.bf16.gmra.mrb[0].mxu0 %v2159
        %v2281 = vpop.f32.mrb[0].mxu0
        %v2282 = vadd.f32 0.0, %v2281
        %v2283 = vpop.f32.mrb[0].mxu0
        %v2284 = vpop.f32.mrb[0].mxu0
        %v2285 = vadd.f32 0.0, %v2284
        %v2286 = vpop.f32.mrb[0].mxu0
        %2287 = vmatprep.mubr.bf16.mxu0 0
        %2288 = vmatmul.mubr.bf16.gmra.mrb[0].mxu0 %v2160
        %v2289 = vpop.f32.mrb[0].mxu0
        %v2290 = vadd.f32 0.0, %v2289
        %v2291 = vpop.f32.mrb[0].mxu0
        %v2292 = vpop.f32.mrb[0].mxu0
        %v2293 = vadd.f32 0.0, %v2292
        %v2294 = vpop.f32.mrb[0].mxu0
        %2295 = vmatprep.mubr.bf16.mxu0 0
        %2296 = vmatmul.mubr.bf16.gmra.mrb[0].mxu0 %v2161
        %v2297 = vpop.f32.mrb[0].mxu0
        %v2298 = vadd.f32 0.0, %v2297
        %v2299 = vpop.f32.mrb[0].mxu0
        %v2300 = vpop.f32.mrb[0].mxu0
        %v2301 = vadd.f32 0.0, %v2300
        %v2302 = vpop.f32.mrb[0].mxu0
        %2303 = vmatprep.mubr.bf16.mxu0 0
        %2304 = vmatmul.mubr.bf16.gmra.mrb[0].mxu0 %v2162
        %v2305 = vpop.f32.mrb[0].mxu0
        %v2306 = vadd.f32 0.0, %v2305
        %v2307 = vpop.f32.mrb[0].mxu0
        %v2308 = vpop.f32.mrb[0].mxu0
        %v2309 = vadd.f32 0.0, %v2308
        %v2310 = vpop.f32.mrb[0].mxu0
        %2311 = vmatprep.mubr.bf16.mxu0 0
        %2312 = vmatmul.mubr.bf16.gmra.mrb[0].mxu0 %v2163
        %v2313 = vpop.f32.mrb[0].mxu0
        %v2314 = vadd.f32 0.0, %v2313
        %v2315 = vpop.f32.mrb[0].mxu0
        %v2316 = vpop.f32.mrb[0].mxu0
        %v2317 = vadd.f32 0.0, %v2316
        %v2318 = vpop.f32.mrb[0].mxu0
        %2319 = vmatprep.mubr.bf16.mxu0 0
        %2320 = vmatmul.mubr.bf16.gmra.mrb[0].mxu0 %v2164
        %v2321 = vpop.f32.mrb[0].mxu0
        %v2322 = vadd.f32 0.0, %v2321
        %v2323 = vpop.f32.mrb[0].mxu0
        %v2324 = vpop.f32.mrb[0].mxu0
        %v2325 = vadd.f32 0.0, %v2324
        %v2326 = vpop.f32.mrb[0].mxu0
        %2327 = vmatprep.mubr.bf16.mxu0 0
        %2328 = vmatmul.mubr.bf16.gmra.mrb[0].mxu0 %v2165
        %v2329 = vpop.f32.mrb[0].mxu0
        %v2330 = vadd.f32 0.0, %v2329
        %v2331 = vpop.f32.mrb[0].mxu0
        %v2332 = vpop.f32.mrb[0].mxu0
        %v2333 = vadd.f32 0.0, %v2332
        %v2334 = vpop.f32.mrb[0].mxu0
        %2335 = vmatprep.mubr.bf16.mxu0 0
        %2336 = vmatmul.mubr.bf16.gmra.mrb[0].mxu0 %v2166
        %v2337 = vpop.f32.mrb[0].mxu0
        %v2338 = vadd.f32 0.0, %v2337
        %v2339 = vpop.f32.mrb[0].mxu0
        %v2340 = vpop.f32.mrb[0].mxu0
        %v2341 = vadd.f32 0.0, %v2340
        %v2342 = vpop.f32.mrb[0].mxu0
        %2343 = vmatprep.mubr.bf16.mxu0 0
        %2344 = vmatmul.mubr.bf16.gmra.mrb[0].mxu0 %v2167
        %v2345 = vpop.f32.mrb[0].mxu0
        %v2346 = vadd.f32 0.0, %v2345
        %v2347 = vpop.f32.mrb[0].mxu0
        %v2348 = vpop.f32.mrb[0].mxu0
        %v2349 = vadd.f32 0.0, %v2348
        %v2350 = vpop.f32.mrb[0].mxu0
        %2351 = vmatprep.mubr.bf16.mxu0 0
        %2352 = vmatmul.mubr.bf16.gmra.mrb[0].mxu0 %v2168
        %v2353 = vpop.f32.mrb[0].mxu0
        %v2354 = vadd.f32 0.0, %v2353
        %v2355 = vpop.f32.mrb[0].mxu0
        %v2356 = vpop.f32.mrb[0].mxu0
        %v2357 = vadd.f32 0.0, %v2356
        %v2358 = vpop.f32.mrb[0].mxu0
        %2359 = vmatprep.mubr.bf16.mxu0 0
        %2360 = vmatmul.mubr.bf16.gmra.mrb[0].mxu0 %v2169
        %v2361 = vpop.f32.mrb[0].mxu0
        %v2362 = vadd.f32 0.0, %v2361
        %v2363 = vpop.f32.mrb[0].mxu0
        %v2364 = vpop.f32.mrb[0].mxu0
        %v2365 = vadd.f32 0.0, %v2364
        %v2366 = vpop.f32.mrb[0].mxu0
        %2367 = vmatprep.mubr.bf16.mxu0 0
        %2368 = vmatmul.mubr.bf16.gmra.mrb[0].mxu0 %v2170
        %v2369 = vpop.f32.mrb[0].mxu0
        %v2370 = vadd.f32 0.0, %v2369
        %v2371 = vpop.f32.mrb[0].mxu0
        %v2372 = vpop.f32.mrb[0].mxu0
        %v2373 = vadd.f32 0.0, %v2372
        %v2374 = vpop.f32.mrb[0].mxu0
        %2375 = vmatprep.mubr.bf16.mxu0 0
        %2376 = vmatmul.mubr.bf16.gmra.mrb[0].mxu0 %v2171
        %v2377 = vpop.f32.mrb[0].mxu0
        %v2378 = vadd.f32 0.0, %v2377
        %v2379 = vpop.f32.mrb[0].mxu0
        %v2380 = vpop.f32.mrb[0].mxu0
        %v2381 = vadd.f32 0.0, %v2380
        %v2382 = vpop.f32.mrb[0].mxu0
        %2383 = vmatprep.mubr.bf16.mxu0 0
        %2384 = vmatmul.mubr.bf16.gmra.mrb[0].mxu0 %v2172
        %v2385 = vpop.f32.mrb[0].mxu0
        %v2386 = vadd.f32 0.0, %v2385
        %v2387 = vpop.f32.mrb[0].mxu0
        %v2388 = vpop.f32.mrb[0].mxu0
        %v2389 = vadd.f32 0.0, %v2388
        %v2390 = vpop.f32.mrb[0].mxu0
        %2391 = vmatprep.mubr.bf16.mxu0 0
        %2392 = vmatmul.mubr.bf16.gmra.mrb[0].mxu0 %v2173
        %v2393 = vpop.f32.mrb[0].mxu0
        %v2394 = vadd.f32 0.0, %v2393
        %v2395 = vpop.f32.mrb[0].mxu0
        %v2396 = vpop.f32.mrb[0].mxu0
        %v2397 = vadd.f32 0.0, %v2396
        %v2398 = vpop.f32.mrb[0].mxu0
        %2399 = vdwg.mxu0
        %v2400 = vsel %vm1387, 1, 0
        %v2401 = vsel %vm1388, 1, 0
        %v2402 = vsel %vm1389, 1, 0
        %v2403 = vsel %vm1390, 1, 0
        %v2404 = vsel %vm1391, 1, 0
        %v2405 = vsel %vm1392, 1, 0
        %v2406 = vsel %vm1393, 1, 0
        %v2407 = vsel %vm1394, 1, 0
        %v2408 = vsel %vm1395, 1, 0
        %v2409 = vsel %vm1396, 1, 0
        %v2410 = vsel %vm1397, 1, 0
        %v2411 = vsel %vm1398, 1, 0
        %v2412 = vsel %vm1399, 1, 0
        %v2413 = vsel %vm1400, 1, 0
        %v2414 = vsel %vm1401, 1, 0
        %v2415 = vsel %vm1402, 1, 0
        %v2416 = vsel %vm1403, 1, 0
        %v2417 = vsel %vm1404, 1, 0
        %v2418 = vsel %vm1405, 1, 0
        %v2419 = vsel %vm1406, 1, 0
        %v2420 = vsel %vm1407, 1, 0
        %v2421 = vsel %vm1408, 1, 0
        %v2422 = vsel %vm1409, 1, 0
        %v2423 = vsel %vm1410, 1, 0
        %v2424 = vsel %vm1411, 1, 0
        %v2425 = vsel %vm1412, 1, 0
        %v2426 = vsel %vm1413, 1, 0
        %v2427 = vsel %vm1414, 1, 0
        %v2428 = vsel %vm1415, 1, 0
        %v2429 = vsel %vm1416, 1, 0
        %v2430 = vsel %vm1417, 1, 0
        %v2431 = vsel %vm1418, 1, 0
        %vm2432 = vcmp.eq.s32.totalorder %v2400, 1
        %vm2433 = vcmp.eq.s32.totalorder %v2401, 1
        %vm2434 = vcmp.eq.s32.totalorder %v2402, 1
        %vm2435 = vcmp.eq.s32.totalorder %v2403, 1
        %vm2436 = vcmp.eq.s32.totalorder %v2404, 1
        %vm2437 = vcmp.eq.s32.totalorder %v2405, 1
        %vm2438 = vcmp.eq.s32.totalorder %v2406, 1
        %vm2439 = vcmp.eq.s32.totalorder %v2407, 1
        %vm2440 = vcmp.eq.s32.totalorder %v2408, 1
        %vm2441 = vcmp.eq.s32.totalorder %v2409, 1
        %vm2442 = vcmp.eq.s32.totalorder %v2410, 1
        %vm2443 = vcmp.eq.s32.totalorder %v2411, 1
        %vm2444 = vcmp.eq.s32.totalorder %v2412, 1
        %vm2445 = vcmp.eq.s32.totalorder %v2413, 1
        %vm2446 = vcmp.eq.s32.totalorder %v2414, 1
        %vm2447 = vcmp.eq.s32.totalorder %v2415, 1
        %vm2448 = vcmp.eq.s32.totalorder %v2416, 1
        %vm2449 = vcmp.eq.s32.totalorder %v2417, 1
        %vm2450 = vcmp.eq.s32.totalorder %v2418, 1
        %vm2451 = vcmp.eq.s32.totalorder %v2419, 1
        %vm2452 = vcmp.eq.s32.totalorder %v2420, 1
        %vm2453 = vcmp.eq.s32.totalorder %v2421, 1
        %vm2454 = vcmp.eq.s32.totalorder %v2422, 1
        %vm2455 = vcmp.eq.s32.totalorder %v2423, 1
        %vm2456 = vcmp.eq.s32.totalorder %v2424, 1
        %vm2457 = vcmp.eq.s32.totalorder %v2425, 1
        %vm2458 = vcmp.eq.s32.totalorder %v2426, 1
        %vm2459 = vcmp.eq.s32.totalorder %v2427, 1
        %vm2460 = vcmp.eq.s32.totalorder %v2428, 1
        %vm2461 = vcmp.eq.s32.totalorder %v2429, 1
        %vm2462 = vcmp.eq.s32.totalorder %v2430, 1
        %vm2463 = vcmp.eq.s32.totalorder %v2431, 1
        %v2464 = vsel %vm2432, %v2274, 0.0
        %v2465 = vsel %vm2433, %v2277, 0.0
        %v2466 = vsel %vm2434, %v2282, 0.0
        %v2467 = vsel %vm2435, %v2285, 0.0
        %v2468 = vsel %vm2436, %v2290, 0.0
        %v2469 = vsel %vm2437, %v2293, 0.0
        %v2470 = vsel %vm2438, %v2298, 0.0
        %v2471 = vsel %vm2439, %v2301, 0.0
        %v2472 = vsel %vm2440, %v2306, 0.0
        %v2473 = vsel %vm2441, %v2309, 0.0
        %v2474 = vsel %vm2442, %v2314, 0.0
        %v2475 = vsel %vm2443, %v2317, 0.0
        %v2476 = vsel %vm2444, %v2322, 0.0
        %v2477 = vsel %vm2445, %v2325, 0.0
        %v2478 = vsel %vm2446, %v2330, 0.0
        %v2479 = vsel %vm2447, %v2333, 0.0
        %v2480 = vsel %vm2448, %v2338, 0.0
        %v2481 = vsel %vm2449, %v2341, 0.0
        %v2482 = vsel %vm2450, %v2346, 0.0
        %v2483 = vsel %vm2451, %v2349, 0.0
        %v2484 = vsel %vm2452, %v2354, 0.0
        %v2485 = vsel %vm2453, %v2357, 0.0
        %v2486 = vsel %vm2454, %v2362, 0.0
        %v2487 = vsel %vm2455, %v2365, 0.0
        %v2488 = vsel %vm2456, %v2370, 0.0
        %v2489 = vsel %vm2457, %v2373, 0.0
        %v2490 = vsel %vm2458, %v2378, 0.0
        %v2491 = vsel %vm2459, %v2381, 0.0
        %v2492 = vsel %vm2460, %v2386, 0.0
        %v2493 = vsel %vm2461, %v2389, 0.0
        %v2494 = vsel %vm2462, %v2394, 0.0
        %v2495 = vsel %vm2463, %v2397, 0.0
        %v2496 = vadd.f32 %v2094, %v2464
        %v2497 = vadd.f32 %v2095, %v2465
        %v2498 = vadd.f32 %v2096, %v2466
        %v2499 = vadd.f32 %v2097, %v2467
        %v2500 = vadd.f32 %v2098, %v2468
        %v2501 = vadd.f32 %v2099, %v2469
        %v2502 = vadd.f32 %v2100, %v2470
        %v2503 = vadd.f32 %v2101, %v2471
        %v2504 = vadd.f32 %v2102, %v2472
        %v2505 = vadd.f32 %v2103, %v2473
        %v2506 = vadd.f32 %v2104, %v2474
        %v2507 = vadd.f32 %v2105, %v2475
        %v2508 = vadd.f32 %v2106, %v2476
        %v2509 = vadd.f32 %v2107, %v2477
        %v2510 = vadd.f32 %v2108, %v2478
        %v2511 = vadd.f32 %v2109, %v2479
        %v2512 = vadd.f32 %v2110, %v2480
        %v2513 = vadd.f32 %v2111, %v2481
        %v2514 = vadd.f32 %v2112, %v2482
        %v2515 = vadd.f32 %v2113, %v2483
        %v2516 = vadd.f32 %v2114, %v2484
        %v2517 = vadd.f32 %v2115, %v2485
        %v2518 = vadd.f32 %v2116, %v2486
        %v2519 = vadd.f32 %v2117, %v2487
        %v2520 = vadd.f32 %v2118, %v2488
        %v2521 = vadd.f32 %v2119, %v2489
        %v2522 = vadd.f32 %v2120, %v2490
        %v2523 = vadd.f32 %v2121, %v2491
        %v2524 = vadd.f32 %v2122, %v2492
        %v2525 = vadd.f32 %v2123, %v2493
        %v2526 = vadd.f32 %v2124, %v2494
        %v2527 = vadd.f32 %v2125, %v2495
        %v2528 = vld [vmem:[#allocation2 + $0x17] sm:$0xff]
        %v2529 = vld [vmem:[#allocation2 + $0x1f] sm:$0xff]
        %v2530 = vld [vmem:[#allocation2 + $0x27] sm:$0xff]
        %v2531 = vld [vmem:[#allocation2 + $0x2f] sm:$0xff]
        %v2532 = vld [vmem:[#allocation2 + $0x37] sm:$0xff]
        %v2533 = vld [vmem:[#allocation2 + $0x3f] sm:$0xff]
        %v2534 = vld [vmem:[#allocation2 + $0x47] sm:$0xff]
        %v2535 = vld [vmem:[#allocation2 + $0x4f] sm:$0xff]
        %v2536 = vld [vmem:[#allocation2 + $0x57] sm:$0xff]
        %v2537 = vld [vmem:[#allocation2 + $0x5f] sm:$0xff]
        %v2538 = vld [vmem:[#allocation2 + $0x67] sm:$0xff]
        %v2539 = vld [vmem:[#allocation2 + $0x6f] sm:$0xff]
        %v2540 = vld [vmem:[#allocation2 + $0x77] sm:$0xff]
        %v2541 = vld [vmem:[#allocation2 + $0x7f] sm:$0xff]
        %v2542 = vld [vmem:[#allocation2 + $0x87] sm:$0xff]
        %v2543 = vld [vmem:[#allocation2 + $0x8f] sm:$0xff]
        %v2544 = vld [vmem:[#allocation2 + $0x97] sm:$0xff]
        %v2545 = vld [vmem:[#allocation2 + $0x9f] sm:$0xff]
        %v2546 = vld [vmem:[#allocation2 + $0xa7] sm:$0xff]
        %v2547 = vld [vmem:[#allocation2 + $0xaf] sm:$0xff]
        %v2548 = vld [vmem:[#allocation2 + $0xb7] sm:$0xff]
        %v2549 = vld [vmem:[#allocation2 + $0xbf] sm:$0xff]
        %v2550 = vld [vmem:[#allocation2 + $0xc7] sm:$0xff]
        %v2551 = vld [vmem:[#allocation2 + $0xcf] sm:$0xff]
        %v2552 = vld [vmem:[#allocation2 + $0xd7] sm:$0xff]
        %v2553 = vld [vmem:[#allocation2 + $0xdf] sm:$0xff]
        %v2554 = vld [vmem:[#allocation2 + $0xe7] sm:$0xff]
        %v2555 = vld [vmem:[#allocation2 + $0xef] sm:$0xff]
        %v2556 = vld [vmem:[#allocation2 + $0xf7] sm:$0xff]
        %v2557 = vld [vmem:[#allocation2 + $0xff] sm:$0xff]
        %v2558 = vld [vmem:[#allocation2 + $0x107] sm:$0xff]
        %v2559 = vld [vmem:[#allocation2 + $0x10f] sm:$0xff]
        %v2560 = vpack.c.bf16 %v2529, %v2528
        %v2561 = vpack.c.bf16 %v2531, %v2530
        %v2562 = vpack.c.bf16 %v2533, %v2532
        %v2563 = vpack.c.bf16 %v2535, %v2534
        %v2564 = vpack.c.bf16 %v2537, %v2536
        %v2565 = vpack.c.bf16 %v2539, %v2538
        %v2566 = vpack.c.bf16 %v2541, %v2540
        %v2567 = vpack.c.bf16 %v2543, %v2542
        %v2568 = vpack.c.bf16 %v2545, %v2544
        %v2569 = vpack.c.bf16 %v2547, %v2546
        %v2570 = vpack.c.bf16 %v2549, %v2548
        %v2571 = vpack.c.bf16 %v2551, %v2550
        %v2572 = vpack.c.bf16 %v2553, %v2552
        %v2573 = vpack.c.bf16 %v2555, %v2554
        %v2574 = vpack.c.bf16 %v2557, %v2556
        %v2575 = vpack.c.bf16 %v2559, %v2558
        %s2576 = scalar_lea.vmem [#allocation8], 192
        %v2577 = vld [vmem:[%s2576] sm:$0xf]
        %v2578 = vld [vmem:[%s2576 + $0x4] sm:$0xf]
        %v2579 = vld [vmem:[%s2576 + $0x8] sm:$0xf]
        %v2580 = vld [vmem:[%s2576 + $0xc] sm:$0xf]
        %v2581 = vld [vmem:[%s2576 + $0x10] sm:$0xf]
        %v2582 = vld [vmem:[%s2576 + $0x14] sm:$0xf]
        %v2583 = vld [vmem:[%s2576 + $0x18] sm:$0xf]
        %v2584 = vld [vmem:[%s2576 + $0x1c] sm:$0xf]
        %v2585 = vld [vmem:[%s2576 + $0x20] sm:$0xf]
        %v2586 = vld [vmem:[%s2576 + $0x24] sm:$0xf]
        %v2587 = vld [vmem:[%s2576 + $0x28] sm:$0xf]
        %v2588 = vld [vmem:[%s2576 + $0x2c] sm:$0xf]
        %v2589 = vld [vmem:[%s2576 + $0x30] sm:$0xf]
        %v2590 = vld [vmem:[%s2576 + $0x34] sm:$0xf]
        %v2591 = vld [vmem:[%s2576 + $0x38] sm:$0xf]
        %v2592 = vld [vmem:[%s2576 + $0x3c] sm:$0xf]
        %v2609 = vunpack.c.l.b16 %v2577
        %v2610 = vunpack.c.l.b16 %v2578
        %v2611 = vunpack.c.l.b16 %v2579
        %v2612 = vunpack.c.l.b16 %v2580
        %v2613 = vunpack.c.l.b16 %v2581
        %v2614 = vunpack.c.l.b16 %v2582
        %v2615 = vunpack.c.l.b16 %v2583
        %v2616 = vunpack.c.l.b16 %v2584
        %v2617 = vunpack.c.l.b16 %v2585
        %v2618 = vunpack.c.l.b16 %v2586
        %v2619 = vunpack.c.l.b16 %v2587
        %v2620 = vunpack.c.l.b16 %v2588
        %v2621 = vunpack.c.l.b16 %v2589
        %v2622 = vunpack.c.l.b16 %v2590
        %v2623 = vunpack.c.l.b16 %v2591
        %v2624 = vunpack.c.l.b16 %v2592
        %v2625 = vpack.c.b16 %v2610, %v2609
        %v2626 = vpack.c.b16 %v2612, %v2611
        %v2627 = vpack.c.b16 %v2614, %v2613
        %v2628 = vpack.c.b16 %v2616, %v2615
        %v2629 = vpack.c.b16 %v2618, %v2617
        %v2630 = vpack.c.b16 %v2620, %v2619
        %v2631 = vpack.c.b16 %v2622, %v2621
        %v2632 = vpack.c.b16 %v2624, %v2623
        %2641 = vmatprep.subr.bf16.mxu0 0
        %2642 = vmatpush1.bf16.msra.mxu0 %v2625
        %2643 = vmatprep.subr.bf16.mxu0 0
        %2644 = vmatpush1.bf16.msra.mxu0 %v2626
        %2645 = vmatprep.subr.bf16.mxu0 0
        %2646 = vmatpush1.bf16.msra.mxu0 %v2627
        %2647 = vmatprep.subr.bf16.mxu0 0
        %2648 = vmatpush1.bf16.msra.mxu0 %v2628
        %2649 = vmatprep.subr.bf16.mxu0 0
        %2650 = vmatpush1.bf16.msra.mxu0 %v2629
        %2651 = vmatprep.subr.bf16.mxu0 0
        %2652 = vmatpush1.bf16.msra.mxu0 %v2630
        %2653 = vmatprep.subr.bf16.mxu0 0
        %2654 = vmatpush1.bf16.msra.mxu0 %v2631
        %2655 = vmatprep.subr.bf16.mxu0 0
        %2656 = vmatpush1.bf16.msra.mxu0 %v2632
        %2657 = vmatprep.subr.bf16.mxu0 0
        %2658 = vmatpush1.bf16.msra.mxu0 0
        %2659 = vmatprep.subr.bf16.mxu0 0
        %2660 = vmatpush1.bf16.msra.mxu0 0
        %2661 = vmatprep.subr.bf16.mxu0 0
        %2662 = vmatpush1.bf16.msra.mxu0 0
        %2663 = vmatprep.subr.bf16.mxu0 0
        %2664 = vmatpush1.bf16.msra.mxu0 0
        %2665 = vmatprep.subr.bf16.mxu0 0
        %2666 = vmatpush1.bf16.msra.mxu0 0
        %2667 = vmatprep.subr.bf16.mxu0 0
        %2668 = vmatpush1.bf16.msra.mxu0 0
        %2669 = vmatprep.subr.bf16.mxu0 0
        %2670 = vmatpush1.bf16.msra.mxu0 0
        %2671 = vmatprep.subr.bf16.mxu0 0
        %2672 = vmatpush1.bf16.msra.mxu0 0
        %2673 = vmatprep.mubr.bf16.mxu0 0
        %2674 = vmatmul.mubr.bf16.gmra.mrb[0].mxu0 %v2560
        %v2675 = vpop.f32.mrb[0].mxu0
        %v2676 = vadd.f32 0.0, %v2675
        %v2677 = vpop.f32.mrb[0].mxu0
        %v2678 = vpop.f32.mrb[0].mxu0
        %v2679 = vadd.f32 0.0, %v2678
        %v2680 = vpop.f32.mrb[0].mxu0
        %2681 = vmatprep.mubr.bf16.mxu0 0
        %2682 = vmatmul.mubr.bf16.gmra.mrb[0].mxu0 %v2561
        %v2683 = vpop.f32.mrb[0].mxu0
        %v2684 = vadd.f32 0.0, %v2683
        %v2685 = vpop.f32.mrb[0].mxu0
        %v2686 = vpop.f32.mrb[0].mxu0
        %v2687 = vadd.f32 0.0, %v2686
        %v2688 = vpop.f32.mrb[0].mxu0
        %2689 = vmatprep.mubr.bf16.mxu0 0
        %2690 = vmatmul.mubr.bf16.gmra.mrb[0].mxu0 %v2562
        %v2691 = vpop.f32.mrb[0].mxu0
        %v2692 = vadd.f32 0.0, %v2691
        %v2693 = vpop.f32.mrb[0].mxu0
        %v2694 = vpop.f32.mrb[0].mxu0
        %v2695 = vadd.f32 0.0, %v2694
        %v2696 = vpop.f32.mrb[0].mxu0
        %2697 = vmatprep.mubr.bf16.mxu0 0
        %2698 = vmatmul.mubr.bf16.gmra.mrb[0].mxu0 %v2563
        %v2699 = vpop.f32.mrb[0].mxu0
        %v2700 = vadd.f32 0.0, %v2699
        %v2701 = vpop.f32.mrb[0].mxu0
        %v2702 = vpop.f32.mrb[0].mxu0
        %v2703 = vadd.f32 0.0, %v2702
        %v2704 = vpop.f32.mrb[0].mxu0
        %2705 = vmatprep.mubr.bf16.mxu0 0
        %2706 = vmatmul.mubr.bf16.gmra.mrb[0].mxu0 %v2564
        %v2707 = vpop.f32.mrb[0].mxu0
        %v2708 = vadd.f32 0.0, %v2707
        %v2709 = vpop.f32.mrb[0].mxu0
        %v2710 = vpop.f32.mrb[0].mxu0
        %v2711 = vadd.f32 0.0, %v2710
        %v2712 = vpop.f32.mrb[0].mxu0
        %2713 = vmatprep.mubr.bf16.mxu0 0
        %2714 = vmatmul.mubr.bf16.gmra.mrb[0].mxu0 %v2565
        %v2715 = vpop.f32.mrb[0].mxu0
        %v2716 = vadd.f32 0.0, %v2715
        %v2717 = vpop.f32.mrb[0].mxu0
        %v2718 = vpop.f32.mrb[0].mxu0
        %v2719 = vadd.f32 0.0, %v2718
        %v2720 = vpop.f32.mrb[0].mxu0
        %2721 = vmatprep.mubr.bf16.mxu0 0
        %2722 = vmatmul.mubr.bf16.gmra.mrb[0].mxu0 %v2566
        %v2723 = vpop.f32.mrb[0].mxu0
        %v2724 = vadd.f32 0.0, %v2723
        %v2725 = vpop.f32.mrb[0].mxu0
        %v2726 = vpop.f32.mrb[0].mxu0
        %v2727 = vadd.f32 0.0, %v2726
        %v2728 = vpop.f32.mrb[0].mxu0
        %2729 = vmatprep.mubr.bf16.mxu0 0
        %2730 = vmatmul.mubr.bf16.gmra.mrb[0].mxu0 %v2567
        %v2731 = vpop.f32.mrb[0].mxu0
        %v2732 = vadd.f32 0.0, %v2731
        %v2733 = vpop.f32.mrb[0].mxu0
        %v2734 = vpop.f32.mrb[0].mxu0
        %v2735 = vadd.f32 0.0, %v2734
        %v2736 = vpop.f32.mrb[0].mxu0
        %2737 = vmatprep.mubr.bf16.mxu0 0
        %2738 = vmatmul.mubr.bf16.gmra.mrb[0].mxu0 %v2568
        %v2739 = vpop.f32.mrb[0].mxu0
        %v2740 = vadd.f32 0.0, %v2739
        %v2741 = vpop.f32.mrb[0].mxu0
        %v2742 = vpop.f32.mrb[0].mxu0
        %v2743 = vadd.f32 0.0, %v2742
        %v2744 = vpop.f32.mrb[0].mxu0
        %2745 = vmatprep.mubr.bf16.mxu0 0
        %2746 = vmatmul.mubr.bf16.gmra.mrb[0].mxu0 %v2569
        %v2747 = vpop.f32.mrb[0].mxu0
        %v2748 = vadd.f32 0.0, %v2747
        %v2749 = vpop.f32.mrb[0].mxu0
        %v2750 = vpop.f32.mrb[0].mxu0
        %v2751 = vadd.f32 0.0, %v2750
        %v2752 = vpop.f32.mrb[0].mxu0
        %2753 = vmatprep.mubr.bf16.mxu0 0
        %2754 = vmatmul.mubr.bf16.gmra.mrb[0].mxu0 %v2570
        %v2755 = vpop.f32.mrb[0].mxu0
        %v2756 = vadd.f32 0.0, %v2755
        %v2757 = vpop.f32.mrb[0].mxu0
        %v2758 = vpop.f32.mrb[0].mxu0
        %v2759 = vadd.f32 0.0, %v2758
        %v2760 = vpop.f32.mrb[0].mxu0
        %2761 = vmatprep.mubr.bf16.mxu0 0
        %2762 = vmatmul.mubr.bf16.gmra.mrb[0].mxu0 %v2571
        %v2763 = vpop.f32.mrb[0].mxu0
        %v2764 = vadd.f32 0.0, %v2763
        %v2765 = vpop.f32.mrb[0].mxu0
        %v2766 = vpop.f32.mrb[0].mxu0
        %v2767 = vadd.f32 0.0, %v2766
        %v2768 = vpop.f32.mrb[0].mxu0
        %2769 = vmatprep.mubr.bf16.mxu0 0
        %2770 = vmatmul.mubr.bf16.gmra.mrb[0].mxu0 %v2572
        %v2771 = vpop.f32.mrb[0].mxu0
        %v2772 = vadd.f32 0.0, %v2771
        %v2773 = vpop.f32.mrb[0].mxu0
        %v2774 = vpop.f32.mrb[0].mxu0
        %v2775 = vadd.f32 0.0, %v2774
        %v2776 = vpop.f32.mrb[0].mxu0
        %2777 = vmatprep.mubr.bf16.mxu0 0
        %2778 = vmatmul.mubr.bf16.gmra.mrb[0].mxu0 %v2573
        %v2779 = vpop.f32.mrb[0].mxu0
        %v2780 = vadd.f32 0.0, %v2779
        %v2781 = vpop.f32.mrb[0].mxu0
        %v2782 = vpop.f32.mrb[0].mxu0
        %v2783 = vadd.f32 0.0, %v2782
        %v2784 = vpop.f32.mrb[0].mxu0
        %2785 = vmatprep.mubr.bf16.mxu0 0
        %2786 = vmatmul.mubr.bf16.gmra.mrb[0].mxu0 %v2574
        %v2787 = vpop.f32.mrb[0].mxu0
        %v2788 = vadd.f32 0.0, %v2787
        %v2789 = vpop.f32.mrb[0].mxu0
        %v2790 = vpop.f32.mrb[0].mxu0
        %v2791 = vadd.f32 0.0, %v2790
        %v2792 = vpop.f32.mrb[0].mxu0
        %2793 = vmatprep.mubr.bf16.mxu0 0
        %2794 = vmatmul.mubr.bf16.gmra.mrb[0].mxu0 %v2575
        %v2795 = vpop.f32.mrb[0].mxu0
        %v2796 = vadd.f32 0.0, %v2795
        %v2797 = vpop.f32.mrb[0].mxu0
        %v2798 = vpop.f32.mrb[0].mxu0
        %v2799 = vadd.f32 0.0, %v2798
        %v2800 = vpop.f32.mrb[0].mxu0
        %2801 = vdwg.mxu0
        %v2802 = vsel %vm1724, %v2676, 0.0
        %v2803 = vsel %vm1725, %v2679, 0.0
        %v2804 = vsel %vm1726, %v2684, 0.0
        %v2805 = vsel %vm1727, %v2687, 0.0
        %v2806 = vsel %vm1728, %v2692, 0.0
        %v2807 = vsel %vm1729, %v2695, 0.0
        %v2808 = vsel %vm1730, %v2700, 0.0
        %v2809 = vsel %vm1731, %v2703, 0.0
        %v2810 = vsel %vm1732, %v2708, 0.0
        %v2811 = vsel %vm1733, %v2711, 0.0
        %v2812 = vsel %vm1734, %v2716, 0.0
        %v2813 = vsel %vm1735, %v2719, 0.0
        %v2814 = vsel %vm1736, %v2724, 0.0
        %v2815 = vsel %vm1737, %v2727, 0.0
        %v2816 = vsel %vm1738, %v2732, 0.0
        %v2817 = vsel %vm1739, %v2735, 0.0
        %v2818 = vsel %vm1740, %v2740, 0.0
        %v2819 = vsel %vm1741, %v2743, 0.0
        %v2820 = vsel %vm1742, %v2748, 0.0
        %v2821 = vsel %vm1743, %v2751, 0.0
        %v2822 = vsel %vm1744, %v2756, 0.0
        %v2823 = vsel %vm1745, %v2759, 0.0
        %v2824 = vsel %vm1746, %v2764, 0.0
        %v2825 = vsel %vm1747, %v2767, 0.0
        %v2826 = vsel %vm1748, %v2772, 0.0
        %v2827 = vsel %vm1749, %v2775, 0.0
        %v2828 = vsel %vm1750, %v2780, 0.0
        %v2829 = vsel %vm1751, %v2783, 0.0
        %v2830 = vsel %vm1752, %v2788, 0.0
        %v2831 = vsel %vm1753, %v2791, 0.0
        %v2832 = vsel %vm1754, %v2796, 0.0
        %v2833 = vsel %vm1755, %v2799, 0.0
        %v2834 = vadd.f32 %v2496, %v2802
        %v2835 = vadd.f32 %v2497, %v2803
        %v2836 = vadd.f32 %v2498, %v2804
        %v2837 = vadd.f32 %v2499, %v2805
        %v2838 = vadd.f32 %v2500, %v2806
        %v2839 = vadd.f32 %v2501, %v2807
        %v2840 = vadd.f32 %v2502, %v2808
        %v2841 = vadd.f32 %v2503, %v2809
        %v2842 = vadd.f32 %v2504, %v2810
        %v2843 = vadd.f32 %v2505, %v2811
        %v2844 = vadd.f32 %v2506, %v2812
        %v2845 = vadd.f32 %v2507, %v2813
        %v2846 = vadd.f32 %v2508, %v2814
        %v2847 = vadd.f32 %v2509, %v2815
        %v2848 = vadd.f32 %v2510, %v2816
        %v2849 = vadd.f32 %v2511, %v2817
        %v2850 = vadd.f32 %v2512, %v2818
        %v2851 = vadd.f32 %v2513, %v2819
        %v2852 = vadd.f32 %v2514, %v2820
        %v2853 = vadd.f32 %v2515, %v2821
        %v2854 = vadd.f32 %v2516, %v2822
        %v2855 = vadd.f32 %v2517, %v2823
        %v2856 = vadd.f32 %v2518, %v2824
        %v2857 = vadd.f32 %v2519, %v2825
        %v2858 = vadd.f32 %v2520, %v2826
        %v2859 = vadd.f32 %v2521, %v2827
        %v2860 = vadd.f32 %v2522, %v2828
        %v2861 = vadd.f32 %v2523, %v2829
        %v2862 = vadd.f32 %v2524, %v2830
        %v2863 = vadd.f32 %v2525, %v2831
        %v2864 = vadd.f32 %v2526, %v2832
        %v2865 = vadd.f32 %v2527, %v2833
        %v2866 = vld [vmem:[#allocation2 + $0x18] sm:$0xff]
        %v2867 = vld [vmem:[#allocation2 + $0x20] sm:$0xff]
        %v2868 = vld [vmem:[#allocation2 + $0x28] sm:$0xff]
        %v2869 = vld [vmem:[#allocation2 + $0x30] sm:$0xff]
        %v2870 = vld [vmem:[#allocation2 + $0x38] sm:$0xff]
        %v2871 = vld [vmem:[#allocation2 + $0x40] sm:$0xff]
        %v2872 = vld [vmem:[#allocation2 + $0x48] sm:$0xff]
        %v2873 = vld [vmem:[#allocation2 + $0x50] sm:$0xff]
        %v2874 = vld [vmem:[#allocation2 + $0x58] sm:$0xff]
        %v2875 = vld [vmem:[#allocation2 + $0x60] sm:$0xff]
        %v2876 = vld [vmem:[#allocation2 + $0x68] sm:$0xff]
        %v2877 = vld [vmem:[#allocation2 + $0x70] sm:$0xff]
        %v2878 = vld [vmem:[#allocation2 + $0x78] sm:$0xff]
        %v2879 = vld [vmem:[#allocation2 + $0x80] sm:$0xff]
        %v2880 = vld [vmem:[#allocation2 + $0x88] sm:$0xff]
        %v2881 = vld [vmem:[#allocation2 + $0x90] sm:$0xff]
        %v2882 = vld [vmem:[#allocation2 + $0x98] sm:$0xff]
        %v2883 = vld [vmem:[#allocation2 + $0xa0] sm:$0xff]
        %v2884 = vld [vmem:[#allocation2 + $0xa8] sm:$0xff]
        %v2885 = vld [vmem:[#allocation2 + $0xb0] sm:$0xff]
        %v2886 = vld [vmem:[#allocation2 + $0xb8] sm:$0xff]
        %v2887 = vld [vmem:[#allocation2 + $0xc0] sm:$0xff]
        %v2888 = vld [vmem:[#allocation2 + $0xc8] sm:$0xff]
        %v2889 = vld [vmem:[#allocation2 + $0xd0] sm:$0xff]
        %v2890 = vld [vmem:[#allocation2 + $0xd8] sm:$0xff]
        %v2891 = vld [vmem:[#allocation2 + $0xe0] sm:$0xff]
        %v2892 = vld [vmem:[#allocation2 + $0xe8] sm:$0xff]
        %v2893 = vld [vmem:[#allocation2 + $0xf0] sm:$0xff]
        %v2894 = vld [vmem:[#allocation2 + $0xf8] sm:$0xff]
        %v2895 = vld [vmem:[#allocation2 + $0x100] sm:$0xff]
        %v2896 = vld [vmem:[#allocation2 + $0x108] sm:$0xff]
        %v2897 = vld [vmem:[#allocation2 + $0x110] sm:$0xff]
        %v2898 = vpack.c.bf16 %v2867, %v2866
        %v2899 = vpack.c.bf16 %v2869, %v2868
        %v2900 = vpack.c.bf16 %v2871, %v2870
        %v2901 = vpack.c.bf16 %v2873, %v2872
        %v2902 = vpack.c.bf16 %v2875, %v2874
        %v2903 = vpack.c.bf16 %v2877, %v2876
        %v2904 = vpack.c.bf16 %v2879, %v2878
        %v2905 = vpack.c.bf16 %v2881, %v2880
        %v2906 = vpack.c.bf16 %v2883, %v2882
        %v2907 = vpack.c.bf16 %v2885, %v2884
        %v2908 = vpack.c.bf16 %v2887, %v2886
        %v2909 = vpack.c.bf16 %v2889, %v2888
        %v2910 = vpack.c.bf16 %v2891, %v2890
        %v2911 = vpack.c.bf16 %v2893, %v2892
        %v2912 = vpack.c.bf16 %v2895, %v2894
        %v2913 = vpack.c.bf16 %v2897, %v2896
        %s2914 = scalar_lea.vmem [#allocation8], 256
        %v2915 = vld [vmem:[%s2914] sm:$0xf]
        %v2916 = vld [vmem:[%s2914 + $0x4] sm:$0xf]
        %v2917 = vld [vmem:[%s2914 + $0x8] sm:$0xf]
        %v2918 = vld [vmem:[%s2914 + $0xc] sm:$0xf]
        %v2919 = vld [vmem:[%s2914 + $0x10] sm:$0xf]
        %v2920 = vld [vmem:[%s2914 + $0x14] sm:$0xf]
        %v2921 = vld [vmem:[%s2914 + $0x18] sm:$0xf]
        %v2922 = vld [vmem:[%s2914 + $0x1c] sm:$0xf]
        %v2923 = vld [vmem:[%s2914 + $0x20] sm:$0xf]
        %v2924 = vld [vmem:[%s2914 + $0x24] sm:$0xf]
        %v2925 = vld [vmem:[%s2914 + $0x28] sm:$0xf]
        %v2926 = vld [vmem:[%s2914 + $0x2c] sm:$0xf]
        %v2927 = vld [vmem:[%s2914 + $0x30] sm:$0xf]
        %v2928 = vld [vmem:[%s2914 + $0x34] sm:$0xf]
        %v2929 = vld [vmem:[%s2914 + $0x38] sm:$0xf]
        %v2930 = vld [vmem:[%s2914 + $0x3c] sm:$0xf]
        %v2947 = vunpack.c.l.b16 %v2915
        %v2948 = vunpack.c.l.b16 %v2916
        %v2949 = vunpack.c.l.b16 %v2917
        %v2950 = vunpack.c.l.b16 %v2918
        %v2951 = vunpack.c.l.b16 %v2919
        %v2952 = vunpack.c.l.b16 %v2920
        %v2953 = vunpack.c.l.b16 %v2921
        %v2954 = vunpack.c.l.b16 %v2922
        %v2955 = vunpack.c.l.b16 %v2923
        %v2956 = vunpack.c.l.b16 %v2924
        %v2957 = vunpack.c.l.b16 %v2925
        %v2958 = vunpack.c.l.b16 %v2926
        %v2959 = vunpack.c.l.b16 %v2927
        %v2960 = vunpack.c.l.b16 %v2928
        %v2961 = vunpack.c.l.b16 %v2929
        %v2962 = vunpack.c.l.b16 %v2930
        %v2963 = vpack.c.b16 %v2948, %v2947
        %v2964 = vpack.c.b16 %v2950, %v2949
        %v2965 = vpack.c.b16 %v2952, %v2951
        %v2966 = vpack.c.b16 %v2954, %v2953
        %v2967 = vpack.c.b16 %v2956, %v2955
        %v2968 = vpack.c.b16 %v2958, %v2957
        %v2969 = vpack.c.b16 %v2960, %v2959
        %v2970 = vpack.c.b16 %v2962, %v2961
        %2979 = vmatprep.subr.bf16.mxu0 0
        %2980 = vmatpush1.bf16.msra.mxu0 %v2963
        %2981 = vmatprep.subr.bf16.mxu0 0
        %2982 = vmatpush1.bf16.msra.mxu0 %v2964
        %2983 = vmatprep.subr.bf16.mxu0 0
        %2984 = vmatpush1.bf16.msra.mxu0 %v2965
        %2985 = vmatprep.subr.bf16.mxu0 0
        %2986 = vmatpush1.bf16.msra.mxu0 %v2966
        %2987 = vmatprep.subr.bf16.mxu0 0
        %2988 = vmatpush1.bf16.msra.mxu0 %v2967
        %2989 = vmatprep.subr.bf16.mxu0 0
        %2990 = vmatpush1.bf16.msra.mxu0 %v2968
        %2991 = vmatprep.subr.bf16.mxu0 0
        %2992 = vmatpush1.bf16.msra.mxu0 %v2969
        %2993 = vmatprep.subr.bf16.mxu0 0
        %2994 = vmatpush1.bf16.msra.mxu0 %v2970
        %2995 = vmatprep.subr.bf16.mxu0 0
        %2996 = vmatpush1.bf16.msra.mxu0 0
        %2997 = vmatprep.subr.bf16.mxu0 0
        %2998 = vmatpush1.bf16.msra.mxu0 0
        %2999 = vmatprep.subr.bf16.mxu0 0
        %3000 = vmatpush1.bf16.msra.mxu0 0
        %3001 = vmatprep.subr.bf16.mxu0 0
        %3002 = vmatpush1.bf16.msra.mxu0 0
        %3003 = vmatprep.subr.bf16.mxu0 0
        %3004 = vmatpush1.bf16.msra.mxu0 0
        %3005 = vmatprep.subr.bf16.mxu0 0
        %3006 = vmatpush1.bf16.msra.mxu0 0
        %3007 = vmatprep.subr.bf16.mxu0 0
        %3008 = vmatpush1.bf16.msra.mxu0 0
        %3009 = vmatprep.subr.bf16.mxu0 0
        %3010 = vmatpush1.bf16.msra.mxu0 0
        %3011 = vmatprep.mubr.bf16.mxu0 0
        %3012 = vmatmul.mubr.bf16.gmra.mrb[0].mxu0 %v2898
        %v3013 = vpop.f32.mrb[0].mxu0
        %v3014 = vadd.f32 0.0, %v3013
        %v3015 = vpop.f32.mrb[0].mxu0
        %v3016 = vpop.f32.mrb[0].mxu0
        %v3017 = vadd.f32 0.0, %v3016
        %v3018 = vpop.f32.mrb[0].mxu0
        %3019 = vmatprep.mubr.bf16.mxu0 0
        %3020 = vmatmul.mubr.bf16.gmra.mrb[0].mxu0 %v2899
        %v3021 = vpop.f32.mrb[0].mxu0
        %v3022 = vadd.f32 0.0, %v3021
        %v3023 = vpop.f32.mrb[0].mxu0
        %v3024 = vpop.f32.mrb[0].mxu0
        %v3025 = vadd.f32 0.0, %v3024
        %v3026 = vpop.f32.mrb[0].mxu0
        %3027 = vmatprep.mubr.bf16.mxu0 0
        %3028 = vmatmul.mubr.bf16.gmra.mrb[0].mxu0 %v2900
        %v3029 = vpop.f32.mrb[0].mxu0
        %v3030 = vadd.f32 0.0, %v3029
        %v3031 = vpop.f32.mrb[0].mxu0
        %v3032 = vpop.f32.mrb[0].mxu0
        %v3033 = vadd.f32 0.0, %v3032
        %v3034 = vpop.f32.mrb[0].mxu0
        %3035 = vmatprep.mubr.bf16.mxu0 0
        %3036 = vmatmul.mubr.bf16.gmra.mrb[0].mxu0 %v2901
        %v3037 = vpop.f32.mrb[0].mxu0
        %v3038 = vadd.f32 0.0, %v3037
        %v3039 = vpop.f32.mrb[0].mxu0
        %v3040 = vpop.f32.mrb[0].mxu0
        %v3041 = vadd.f32 0.0, %v3040
        %v3042 = vpop.f32.mrb[0].mxu0
        %3043 = vmatprep.mubr.bf16.mxu0 0
        %3044 = vmatmul.mubr.bf16.gmra.mrb[0].mxu0 %v2902
        %v3045 = vpop.f32.mrb[0].mxu0
        %v3046 = vadd.f32 0.0, %v3045
        %v3047 = vpop.f32.mrb[0].mxu0
        %v3048 = vpop.f32.mrb[0].mxu0
        %v3049 = vadd.f32 0.0, %v3048
        %v3050 = vpop.f32.mrb[0].mxu0
        %3051 = vmatprep.mubr.bf16.mxu0 0
        %3052 = vmatmul.mubr.bf16.gmra.mrb[0].mxu0 %v2903
        %v3053 = vpop.f32.mrb[0].mxu0
        %v3054 = vadd.f32 0.0, %v3053
        %v3055 = vpop.f32.mrb[0].mxu0
        %v3056 = vpop.f32.mrb[0].mxu0
        %v3057 = vadd.f32 0.0, %v3056
        %v3058 = vpop.f32.mrb[0].mxu0
        %3059 = vmatprep.mubr.bf16.mxu0 0
        %3060 = vmatmul.mubr.bf16.gmra.mrb[0].mxu0 %v2904
        %v3061 = vpop.f32.mrb[0].mxu0
        %v3062 = vadd.f32 0.0, %v3061
        %v3063 = vpop.f32.mrb[0].mxu0
        %v3064 = vpop.f32.mrb[0].mxu0
        %v3065 = vadd.f32 0.0, %v3064
        %v3066 = vpop.f32.mrb[0].mxu0
        %3067 = vmatprep.mubr.bf16.mxu0 0
        %3068 = vmatmul.mubr.bf16.gmra.mrb[0].mxu0 %v2905
        %v3069 = vpop.f32.mrb[0].mxu0
        %v3070 = vadd.f32 0.0, %v3069
        %v3071 = vpop.f32.mrb[0].mxu0
        %v3072 = vpop.f32.mrb[0].mxu0
        %v3073 = vadd.f32 0.0, %v3072
        %v3074 = vpop.f32.mrb[0].mxu0
        %3075 = vmatprep.mubr.bf16.mxu0 0
        %3076 = vmatmul.mubr.bf16.gmra.mrb[0].mxu0 %v2906
        %v3077 = vpop.f32.mrb[0].mxu0
        %v3078 = vadd.f32 0.0, %v3077
        %v3079 = vpop.f32.mrb[0].mxu0
        %v3080 = vpop.f32.mrb[0].mxu0
        %v3081 = vadd.f32 0.0, %v3080
        %v3082 = vpop.f32.mrb[0].mxu0
        %3083 = vmatprep.mubr.bf16.mxu0 0
        %3084 = vmatmul.mubr.bf16.gmra.mrb[0].mxu0 %v2907
        %v3085 = vpop.f32.mrb[0].mxu0
        %v3086 = vadd.f32 0.0, %v3085
        %v3087 = vpop.f32.mrb[0].mxu0
        %v3088 = vpop.f32.mrb[0].mxu0
        %v3089 = vadd.f32 0.0, %v3088
        %v3090 = vpop.f32.mrb[0].mxu0
        %3091 = vmatprep.mubr.bf16.mxu0 0
        %3092 = vmatmul.mubr.bf16.gmra.mrb[0].mxu0 %v2908
        %v3093 = vpop.f32.mrb[0].mxu0
        %v3094 = vadd.f32 0.0, %v3093
        %v3095 = vpop.f32.mrb[0].mxu0
        %v3096 = vpop.f32.mrb[0].mxu0
        %v3097 = vadd.f32 0.0, %v3096
        %v3098 = vpop.f32.mrb[0].mxu0
        %3099 = vmatprep.mubr.bf16.mxu0 0
        %3100 = vmatmul.mubr.bf16.gmra.mrb[0].mxu0 %v2909
        %v3101 = vpop.f32.mrb[0].mxu0
        %v3102 = vadd.f32 0.0, %v3101
        %v3103 = vpop.f32.mrb[0].mxu0
        %v3104 = vpop.f32.mrb[0].mxu0
        %v3105 = vadd.f32 0.0, %v3104
        %v3106 = vpop.f32.mrb[0].mxu0
        %3107 = vmatprep.mubr.bf16.mxu0 0
        %3108 = vmatmul.mubr.bf16.gmra.mrb[0].mxu0 %v2910
        %v3109 = vpop.f32.mrb[0].mxu0
        %v3110 = vadd.f32 0.0, %v3109
        %v3111 = vpop.f32.mrb[0].mxu0
        %v3112 = vpop.f32.mrb[0].mxu0
        %v3113 = vadd.f32 0.0, %v3112
        %v3114 = vpop.f32.mrb[0].mxu0
        %3115 = vmatprep.mubr.bf16.mxu0 0
        %3116 = vmatmul.mubr.bf16.gmra.mrb[0].mxu0 %v2911
        %v3117 = vpop.f32.mrb[0].mxu0
        %v3118 = vadd.f32 0.0, %v3117
        %v3119 = vpop.f32.mrb[0].mxu0
        %v3120 = vpop.f32.mrb[0].mxu0
        %v3121 = vadd.f32 0.0, %v3120
        %v3122 = vpop.f32.mrb[0].mxu0
        %3123 = vmatprep.mubr.bf16.mxu0 0
        %3124 = vmatmul.mubr.bf16.gmra.mrb[0].mxu0 %v2912
        %v3125 = vpop.f32.mrb[0].mxu0
        %v3126 = vadd.f32 0.0, %v3125
        %v3127 = vpop.f32.mrb[0].mxu0
        %v3128 = vpop.f32.mrb[0].mxu0
        %v3129 = vadd.f32 0.0, %v3128
        %v3130 = vpop.f32.mrb[0].mxu0
        %3131 = vmatprep.mubr.bf16.mxu0 0
        %3132 = vmatmul.mubr.bf16.gmra.mrb[0].mxu0 %v2913
        %v3133 = vpop.f32.mrb[0].mxu0
        %v3134 = vadd.f32 0.0, %v3133
        %v3135 = vpop.f32.mrb[0].mxu0
        %v3136 = vpop.f32.mrb[0].mxu0
        %v3137 = vadd.f32 0.0, %v3136
        %v3138 = vpop.f32.mrb[0].mxu0
        %3139 = vdwg.mxu0
        %v3140 = vadd.f32 %v2834, %v3014
        %v3141 = vadd.f32 %v2835, %v3017
        %v3142 = vadd.f32 %v2836, %v3022
        %v3143 = vadd.f32 %v2837, %v3025
        %v3144 = vadd.f32 %v2838, %v3030
        %v3145 = vadd.f32 %v2839, %v3033
        %v3146 = vadd.f32 %v2840, %v3038
        %v3147 = vadd.f32 %v2841, %v3041
        %v3148 = vadd.f32 %v2842, %v3046
        %v3149 = vadd.f32 %v2843, %v3049
        %v3150 = vadd.f32 %v2844, %v3054
        %v3151 = vadd.f32 %v2845, %v3057
        %v3152 = vadd.f32 %v2846, %v3062
        %v3153 = vadd.f32 %v2847, %v3065
        %v3154 = vadd.f32 %v2848, %v3070
        %v3155 = vadd.f32 %v2849, %v3073
        %v3156 = vadd.f32 %v2850, %v3078
        %v3157 = vadd.f32 %v2851, %v3081
        %v3158 = vadd.f32 %v2852, %v3086
        %v3159 = vadd.f32 %v2853, %v3089
        %v3160 = vadd.f32 %v2854, %v3094
        %v3161 = vadd.f32 %v2855, %v3097
        %v3162 = vadd.f32 %v2856, %v3102
        %v3163 = vadd.f32 %v2857, %v3105
        %v3164 = vadd.f32 %v2858, %v3110
        %v3165 = vadd.f32 %v2859, %v3113
        %v3166 = vadd.f32 %v2860, %v3118
        %v3167 = vadd.f32 %v2861, %v3121
        %v3168 = vadd.f32 %v2862, %v3126
        %v3169 = vadd.f32 %v2863, %v3129
        %v3170 = vadd.f32 %v2864, %v3134
        %v3171 = vadd.f32 %v2865, %v3137
        %v3172 = vld [vmem:[#allocation2 + $0x19] sm:$0xff]
        %v3173 = vld [vmem:[#allocation2 + $0x21] sm:$0xff]
        %v3174 = vld [vmem:[#allocation2 + $0x29] sm:$0xff]
        %v3175 = vld [vmem:[#allocation2 + $0x31] sm:$0xff]
        %v3176 = vld [vmem:[#allocation2 + $0x39] sm:$0xff]
        %v3177 = vld [vmem:[#allocation2 + $0x41] sm:$0xff]
        %v3178 = vld [vmem:[#allocation2 + $0x49] sm:$0xff]
        %v3179 = vld [vmem:[#allocation2 + $0x51] sm:$0xff]
        %v3180 = vld [vmem:[#allocation2 + $0x59] sm:$0xff]
        %v3181 = vld [vmem:[#allocation2 + $0x61] sm:$0xff]
        %v3182 = vld [vmem:[#allocation2 + $0x69] sm:$0xff]
        %v3183 = vld [vmem:[#allocation2 + $0x71] sm:$0xff]
        %v3184 = vld [vmem:[#allocation2 + $0x79] sm:$0xff]
        %v3185 = vld [vmem:[#allocation2 + $0x81] sm:$0xff]
        %v3186 = vld [vmem:[#allocation2 + $0x89] sm:$0xff]
        %v3187 = vld [vmem:[#allocation2 + $0x91] sm:$0xff]
        %v3188 = vld [vmem:[#allocation2 + $0x99] sm:$0xff]
        %v3189 = vld [vmem:[#allocation2 + $0xa1] sm:$0xff]
        %v3190 = vld [vmem:[#allocation2 + $0xa9] sm:$0xff]
        %v3191 = vld [vmem:[#allocation2 + $0xb1] sm:$0xff]
        %v3192 = vld [vmem:[#allocation2 + $0xb9] sm:$0xff]
        %v3193 = vld [vmem:[#allocation2 + $0xc1] sm:$0xff]
        %v3194 = vld [vmem:[#allocation2 + $0xc9] sm:$0xff]
        %v3195 = vld [vmem:[#allocation2 + $0xd1] sm:$0xff]
        %v3196 = vld [vmem:[#allocation2 + $0xd9] sm:$0xff]
        %v3197 = vld [vmem:[#allocation2 + $0xe1] sm:$0xff]
        %v3198 = vld [vmem:[#allocation2 + $0xe9] sm:$0xff]
        %v3199 = vld [vmem:[#allocation2 + $0xf1] sm:$0xff]
        %v3200 = vld [vmem:[#allocation2 + $0xf9] sm:$0xff]
        %v3201 = vld [vmem:[#allocation2 + $0x101] sm:$0xff]
        %v3202 = vld [vmem:[#allocation2 + $0x109] sm:$0xff]
        %v3203 = vld [vmem:[#allocation2 + $0x111] sm:$0xff]
        %v3204 = vpack.c.bf16 %v3173, %v3172
        %v3205 = vpack.c.bf16 %v3175, %v3174
        %v3206 = vpack.c.bf16 %v3177, %v3176
        %v3207 = vpack.c.bf16 %v3179, %v3178
        %v3208 = vpack.c.bf16 %v3181, %v3180
        %v3209 = vpack.c.bf16 %v3183, %v3182
        %v3210 = vpack.c.bf16 %v3185, %v3184
        %v3211 = vpack.c.bf16 %v3187, %v3186
        %v3212 = vpack.c.bf16 %v3189, %v3188
        %v3213 = vpack.c.bf16 %v3191, %v3190
        %v3214 = vpack.c.bf16 %v3193, %v3192
        %v3215 = vpack.c.bf16 %v3195, %v3194
        %v3216 = vpack.c.bf16 %v3197, %v3196
        %v3217 = vpack.c.bf16 %v3199, %v3198
        %v3218 = vpack.c.bf16 %v3201, %v3200
        %v3219 = vpack.c.bf16 %v3203, %v3202
        %s3220 = scalar_lea.vmem [#allocation8], 320
        %v3221 = vld [vmem:[%s3220] sm:$0xf]
        %v3222 = vld [vmem:[%s3220 + $0x4] sm:$0xf]
        %v3223 = vld [vmem:[%s3220 + $0x8] sm:$0xf]
        %v3224 = vld [vmem:[%s3220 + $0xc] sm:$0xf]
        %v3225 = vld [vmem:[%s3220 + $0x10] sm:$0xf]
        %v3226 = vld [vmem:[%s3220 + $0x14] sm:$0xf]
        %v3227 = vld [vmem:[%s3220 + $0x18] sm:$0xf]
        %v3228 = vld [vmem:[%s3220 + $0x1c] sm:$0xf]
        %v3229 = vld [vmem:[%s3220 + $0x20] sm:$0xf]
        %v3230 = vld [vmem:[%s3220 + $0x24] sm:$0xf]
        %v3231 = vld [vmem:[%s3220 + $0x28] sm:$0xf]
        %v3232 = vld [vmem:[%s3220 + $0x2c] sm:$0xf]
        %v3233 = vld [vmem:[%s3220 + $0x30] sm:$0xf]
        %v3234 = vld [vmem:[%s3220 + $0x34] sm:$0xf]
        %v3235 = vld [vmem:[%s3220 + $0x38] sm:$0xf]
        %v3236 = vld [vmem:[%s3220 + $0x3c] sm:$0xf]
        %v3253 = vunpack.c.l.b16 %v3221
        %v3254 = vunpack.c.l.b16 %v3222
        %v3255 = vunpack.c.l.b16 %v3223
        %v3256 = vunpack.c.l.b16 %v3224
        %v3257 = vunpack.c.l.b16 %v3225
        %v3258 = vunpack.c.l.b16 %v3226
        %v3259 = vunpack.c.l.b16 %v3227
        %v3260 = vunpack.c.l.b16 %v3228
        %v3261 = vunpack.c.l.b16 %v3229
        %v3262 = vunpack.c.l.b16 %v3230
        %v3263 = vunpack.c.l.b16 %v3231
        %v3264 = vunpack.c.l.b16 %v3232
        %v3265 = vunpack.c.l.b16 %v3233
        %v3266 = vunpack.c.l.b16 %v3234
        %v3267 = vunpack.c.l.b16 %v3235
        %v3268 = vunpack.c.l.b16 %v3236
        %v3269 = vpack.c.b16 %v3254, %v3253
        %v3270 = vpack.c.b16 %v3256, %v3255
        %v3271 = vpack.c.b16 %v3258, %v3257
        %v3272 = vpack.c.b16 %v3260, %v3259
        %v3273 = vpack.c.b16 %v3262, %v3261
        %v3274 = vpack.c.b16 %v3264, %v3263
        %v3275 = vpack.c.b16 %v3266, %v3265
        %v3276 = vpack.c.b16 %v3268, %v3267
        %3285 = vmatprep.subr.bf16.mxu0 0
        %3286 = vmatpush1.bf16.msra.mxu0 %v3269
        %3287 = vmatprep.subr.bf16.mxu0 0
        %3288 = vmatpush1.bf16.msra.mxu0 %v3270
        %3289 = vmatprep.subr.bf16.mxu0 0
        %3290 = vmatpush1.bf16.msra.mxu0 %v3271
        %3291 = vmatprep.subr.bf16.mxu0 0
        %3292 = vmatpush1.bf16.msra.mxu0 %v3272
        %3293 = vmatprep.subr.bf16.mxu0 0
        %3294 = vmatpush1.bf16.msra.mxu0 %v3273
        %3295 = vmatprep.subr.bf16.mxu0 0
        %3296 = vmatpush1.bf16.msra.mxu0 %v3274
        %3297 = vmatprep.subr.bf16.mxu0 0
        %3298 = vmatpush1.bf16.msra.mxu0 %v3275
        %3299 = vmatprep.subr.bf16.mxu0 0
        %3300 = vmatpush1.bf16.msra.mxu0 %v3276
        %3301 = vmatprep.subr.bf16.mxu0 0
        %3302 = vmatpush1.bf16.msra.mxu0 0
        %3303 = vmatprep.subr.bf16.mxu0 0
        %3304 = vmatpush1.bf16.msra.mxu0 0
        %3305 = vmatprep.subr.bf16.mxu0 0
        %3306 = vmatpush1.bf16.msra.mxu0 0
        %3307 = vmatprep.subr.bf16.mxu0 0
        %3308 = vmatpush1.bf16.msra.mxu0 0
        %3309 = vmatprep.subr.bf16.mxu0 0
        %3310 = vmatpush1.bf16.msra.mxu0 0
        %3311 = vmatprep.subr.bf16.mxu0 0
        %3312 = vmatpush1.bf16.msra.mxu0 0
        %3313 = vmatprep.subr.bf16.mxu0 0
        %3314 = vmatpush1.bf16.msra.mxu0 0
        %3315 = vmatprep.subr.bf16.mxu0 0
        %3316 = vmatpush1.bf16.msra.mxu0 0
        %3317 = vmatprep.mubr.bf16.mxu0 0
        %3318 = vmatmul.mubr.bf16.gmra.mrb[0].mxu0 %v3204
        %v3319 = vpop.f32.mrb[0].mxu0
        %v3320 = vadd.f32 0.0, %v3319
        %v3321 = vpop.f32.mrb[0].mxu0
        %v3322 = vpop.f32.mrb[0].mxu0
        %v3323 = vadd.f32 0.0, %v3322
        %v3324 = vpop.f32.mrb[0].mxu0
        %3325 = vmatprep.mubr.bf16.mxu0 0
        %3326 = vmatmul.mubr.bf16.gmra.mrb[0].mxu0 %v3205
        %v3327 = vpop.f32.mrb[0].mxu0
        %v3328 = vadd.f32 0.0, %v3327
        %v3329 = vpop.f32.mrb[0].mxu0
        %v3330 = vpop.f32.mrb[0].mxu0
        %v3331 = vadd.f32 0.0, %v3330
        %v3332 = vpop.f32.mrb[0].mxu0
        %3333 = vmatprep.mubr.bf16.mxu0 0
        %3334 = vmatmul.mubr.bf16.gmra.mrb[0].mxu0 %v3206
        %v3335 = vpop.f32.mrb[0].mxu0
        %v3336 = vadd.f32 0.0, %v3335
        %v3337 = vpop.f32.mrb[0].mxu0
        %v3338 = vpop.f32.mrb[0].mxu0
        %v3339 = vadd.f32 0.0, %v3338
        %v3340 = vpop.f32.mrb[0].mxu0
        %3341 = vmatprep.mubr.bf16.mxu0 0
        %3342 = vmatmul.mubr.bf16.gmra.mrb[0].mxu0 %v3207
        %v3343 = vpop.f32.mrb[0].mxu0
        %v3344 = vadd.f32 0.0, %v3343
        %v3345 = vpop.f32.mrb[0].mxu0
        %v3346 = vpop.f32.mrb[0].mxu0
        %v3347 = vadd.f32 0.0, %v3346
        %v3348 = vpop.f32.mrb[0].mxu0
        %3349 = vmatprep.mubr.bf16.mxu0 0
        %3350 = vmatmul.mubr.bf16.gmra.mrb[0].mxu0 %v3208
        %v3351 = vpop.f32.mrb[0].mxu0
        %v3352 = vadd.f32 0.0, %v3351
        %v3353 = vpop.f32.mrb[0].mxu0
        %v3354 = vpop.f32.mrb[0].mxu0
        %v3355 = vadd.f32 0.0, %v3354
        %v3356 = vpop.f32.mrb[0].mxu0
        %3357 = vmatprep.mubr.bf16.mxu0 0
        %3358 = vmatmul.mubr.bf16.gmra.mrb[0].mxu0 %v3209
        %v3359 = vpop.f32.mrb[0].mxu0
        %v3360 = vadd.f32 0.0, %v3359
        %v3361 = vpop.f32.mrb[0].mxu0
        %v3362 = vpop.f32.mrb[0].mxu0
        %v3363 = vadd.f32 0.0, %v3362
        %v3364 = vpop.f32.mrb[0].mxu0
        %3365 = vmatprep.mubr.bf16.mxu0 0
        %3366 = vmatmul.mubr.bf16.gmra.mrb[0].mxu0 %v3210
        %v3367 = vpop.f32.mrb[0].mxu0
        %v3368 = vadd.f32 0.0, %v3367
        %v3369 = vpop.f32.mrb[0].mxu0
        %v3370 = vpop.f32.mrb[0].mxu0
        %v3371 = vadd.f32 0.0, %v3370
        %v3372 = vpop.f32.mrb[0].mxu0
        %3373 = vmatprep.mubr.bf16.mxu0 0
        %3374 = vmatmul.mubr.bf16.gmra.mrb[0].mxu0 %v3211
        %v3375 = vpop.f32.mrb[0].mxu0
        %v3376 = vadd.f32 0.0, %v3375
        %v3377 = vpop.f32.mrb[0].mxu0
        %v3378 = vpop.f32.mrb[0].mxu0
        %v3379 = vadd.f32 0.0, %v3378
        %v3380 = vpop.f32.mrb[0].mxu0
        %3381 = vmatprep.mubr.bf16.mxu0 0
        %3382 = vmatmul.mubr.bf16.gmra.mrb[0].mxu0 %v3212
        %v3383 = vpop.f32.mrb[0].mxu0
        %v3384 = vadd.f32 0.0, %v3383
        %v3385 = vpop.f32.mrb[0].mxu0
        %v3386 = vpop.f32.mrb[0].mxu0
        %v3387 = vadd.f32 0.0, %v3386
        %v3388 = vpop.f32.mrb[0].mxu0
        %3389 = vmatprep.mubr.bf16.mxu0 0
        %3390 = vmatmul.mubr.bf16.gmra.mrb[0].mxu0 %v3213
        %v3391 = vpop.f32.mrb[0].mxu0
        %v3392 = vadd.f32 0.0, %v3391
        %v3393 = vpop.f32.mrb[0].mxu0
        %v3394 = vpop.f32.mrb[0].mxu0
        %v3395 = vadd.f32 0.0, %v3394
        %v3396 = vpop.f32.mrb[0].mxu0
        %3397 = vmatprep.mubr.bf16.mxu0 0
        %3398 = vmatmul.mubr.bf16.gmra.mrb[0].mxu0 %v3214
        %v3399 = vpop.f32.mrb[0].mxu0
        %v3400 = vadd.f32 0.0, %v3399
        %v3401 = vpop.f32.mrb[0].mxu0
        %v3402 = vpop.f32.mrb[0].mxu0
        %v3403 = vadd.f32 0.0, %v3402
        %v3404 = vpop.f32.mrb[0].mxu0
        %3405 = vmatprep.mubr.bf16.mxu0 0
        %3406 = vmatmul.mubr.bf16.gmra.mrb[0].mxu0 %v3215
        %v3407 = vpop.f32.mrb[0].mxu0
        %v3408 = vadd.f32 0.0, %v3407
        %v3409 = vpop.f32.mrb[0].mxu0
        %v3410 = vpop.f32.mrb[0].mxu0
        %v3411 = vadd.f32 0.0, %v3410
        %v3412 = vpop.f32.mrb[0].mxu0
        %3413 = vmatprep.mubr.bf16.mxu0 0
        %3414 = vmatmul.mubr.bf16.gmra.mrb[0].mxu0 %v3216
        %v3415 = vpop.f32.mrb[0].mxu0
        %v3416 = vadd.f32 0.0, %v3415
        %v3417 = vpop.f32.mrb[0].mxu0
        %v3418 = vpop.f32.mrb[0].mxu0
        %v3419 = vadd.f32 0.0, %v3418
        %v3420 = vpop.f32.mrb[0].mxu0
        %3421 = vmatprep.mubr.bf16.mxu0 0
        %3422 = vmatmul.mubr.bf16.gmra.mrb[0].mxu0 %v3217
        %v3423 = vpop.f32.mrb[0].mxu0
        %v3424 = vadd.f32 0.0, %v3423
        %v3425 = vpop.f32.mrb[0].mxu0
        %v3426 = vpop.f32.mrb[0].mxu0
        %v3427 = vadd.f32 0.0, %v3426
        %v3428 = vpop.f32.mrb[0].mxu0
        %3429 = vmatprep.mubr.bf16.mxu0 0
        %3430 = vmatmul.mubr.bf16.gmra.mrb[0].mxu0 %v3218
        %v3431 = vpop.f32.mrb[0].mxu0
        %v3432 = vadd.f32 0.0, %v3431
        %v3433 = vpop.f32.mrb[0].mxu0
        %v3434 = vpop.f32.mrb[0].mxu0
        %v3435 = vadd.f32 0.0, %v3434
        %v3436 = vpop.f32.mrb[0].mxu0
        %3437 = vmatprep.mubr.bf16.mxu0 0
        %3438 = vmatmul.mubr.bf16.gmra.mrb[0].mxu0 %v3219
        %v3439 = vpop.f32.mrb[0].mxu0
        %v3440 = vadd.f32 0.0, %v3439
        %v3441 = vpop.f32.mrb[0].mxu0
        %v3442 = vpop.f32.mrb[0].mxu0
        %v3443 = vadd.f32 0.0, %v3442
        %v3444 = vpop.f32.mrb[0].mxu0
        %3445 = vdwg.mxu0
        %v3446 = vsel %vm2432, %v3320, 0.0
        %v3447 = vsel %vm2433, %v3323, 0.0
        %v3448 = vsel %vm2434, %v3328, 0.0
        %v3449 = vsel %vm2435, %v3331, 0.0
        %v3450 = vsel %vm2436, %v3336, 0.0
        %v3451 = vsel %vm2437, %v3339, 0.0
        %v3452 = vsel %vm2438, %v3344, 0.0
        %v3453 = vsel %vm2439, %v3347, 0.0
        %v3454 = vsel %vm2440, %v3352, 0.0
        %v3455 = vsel %vm2441, %v3355, 0.0
        %v3456 = vsel %vm2442, %v3360, 0.0
        %v3457 = vsel %vm2443, %v3363, 0.0
        %v3458 = vsel %vm2444, %v3368, 0.0
        %v3459 = vsel %vm2445, %v3371, 0.0
        %v3460 = vsel %vm2446, %v3376, 0.0
        %v3461 = vsel %vm2447, %v3379, 0.0
        %v3462 = vsel %vm2448, %v3384, 0.0
        %v3463 = vsel %vm2449, %v3387, 0.0
        %v3464 = vsel %vm2450, %v3392, 0.0
        %v3465 = vsel %vm2451, %v3395, 0.0
        %v3466 = vsel %vm2452, %v3400, 0.0
        %v3467 = vsel %vm2453, %v3403, 0.0
        %v3468 = vsel %vm2454, %v3408, 0.0
        %v3469 = vsel %vm2455, %v3411, 0.0
        %v3470 = vsel %vm2456, %v3416, 0.0
        %v3471 = vsel %vm2457, %v3419, 0.0
        %v3472 = vsel %vm2458, %v3424, 0.0
        %v3473 = vsel %vm2459, %v3427, 0.0
        %v3474 = vsel %vm2460, %v3432, 0.0
        %v3475 = vsel %vm2461, %v3435, 0.0
        %v3476 = vsel %vm2462, %v3440, 0.0
        %v3477 = vsel %vm2463, %v3443, 0.0
        %v3478 = vadd.f32 %v3140, %v3446
        %v3479 = vadd.f32 %v3141, %v3447
        %v3480 = vadd.f32 %v3142, %v3448
        %v3481 = vadd.f32 %v3143, %v3449
        %v3482 = vadd.f32 %v3144, %v3450
        %v3483 = vadd.f32 %v3145, %v3451
        %v3484 = vadd.f32 %v3146, %v3452
        %v3485 = vadd.f32 %v3147, %v3453
        %v3486 = vadd.f32 %v3148, %v3454
        %v3487 = vadd.f32 %v3149, %v3455
        %v3488 = vadd.f32 %v3150, %v3456
        %v3489 = vadd.f32 %v3151, %v3457
        %v3490 = vadd.f32 %v3152, %v3458
        %v3491 = vadd.f32 %v3153, %v3459
        %v3492 = vadd.f32 %v3154, %v3460
        %v3493 = vadd.f32 %v3155, %v3461
        %v3494 = vadd.f32 %v3156, %v3462
        %v3495 = vadd.f32 %v3157, %v3463
        %v3496 = vadd.f32 %v3158, %v3464
        %v3497 = vadd.f32 %v3159, %v3465
        %v3498 = vadd.f32 %v3160, %v3466
        %v3499 = vadd.f32 %v3161, %v3467
        %v3500 = vadd.f32 %v3162, %v3468
        %v3501 = vadd.f32 %v3163, %v3469
        %v3502 = vadd.f32 %v3164, %v3470
        %v3503 = vadd.f32 %v3165, %v3471
        %v3504 = vadd.f32 %v3166, %v3472
        %v3505 = vadd.f32 %v3167, %v3473
        %v3506 = vadd.f32 %v3168, %v3474
        %v3507 = vadd.f32 %v3169, %v3475
        %v3508 = vadd.f32 %v3170, %v3476
        %v3509 = vadd.f32 %v3171, %v3477
        %v3510 = vld [vmem:[#allocation2 + $0x27] sm:$0xff]
        %v3511 = vld [vmem:[#allocation2 + $0x2f] sm:$0xff]
        %v3512 = vld [vmem:[#allocation2 + $0x37] sm:$0xff]
        %v3513 = vld [vmem:[#allocation2 + $0x3f] sm:$0xff]
        %v3514 = vld [vmem:[#allocation2 + $0x47] sm:$0xff]
        %v3515 = vld [vmem:[#allocation2 + $0x4f] sm:$0xff]
        %v3516 = vld [vmem:[#allocation2 + $0x57] sm:$0xff]
        %v3517 = vld [vmem:[#allocation2 + $0x5f] sm:$0xff]
        %v3518 = vld [vmem:[#allocation2 + $0x67] sm:$0xff]
        %v3519 = vld [vmem:[#allocation2 + $0x6f] sm:$0xff]
        %v3520 = vld [vmem:[#allocation2 + $0x77] sm:$0xff]
        %v3521 = vld [vmem:[#allocation2 + $0x7f] sm:$0xff]
        %v3522 = vld [vmem:[#allocation2 + $0x87] sm:$0xff]
        %v3523 = vld [vmem:[#allocation2 + $0x8f] sm:$0xff]
        %v3524 = vld [vmem:[#allocation2 + $0x97] sm:$0xff]
        %v3525 = vld [vmem:[#allocation2 + $0x9f] sm:$0xff]
        %v3526 = vld [vmem:[#allocation2 + $0xa7] sm:$0xff]
        %v3527 = vld [vmem:[#allocation2 + $0xaf] sm:$0xff]
        %v3528 = vld [vmem:[#allocation2 + $0xb7] sm:$0xff]
        %v3529 = vld [vmem:[#allocation2 + $0xbf] sm:$0xff]
        %v3530 = vld [vmem:[#allocation2 + $0xc7] sm:$0xff]
        %v3531 = vld [vmem:[#allocation2 + $0xcf] sm:$0xff]
        %v3532 = vld [vmem:[#allocation2 + $0xd7] sm:$0xff]
        %v3533 = vld [vmem:[#allocation2 + $0xdf] sm:$0xff]
        %v3534 = vld [vmem:[#allocation2 + $0xe7] sm:$0xff]
        %v3535 = vld [vmem:[#allocation2 + $0xef] sm:$0xff]
        %v3536 = vld [vmem:[#allocation2 + $0xf7] sm:$0xff]
        %v3537 = vld [vmem:[#allocation2 + $0xff] sm:$0xff]
        %v3538 = vld [vmem:[#allocation2 + $0x107] sm:$0xff]
        %v3539 = vld [vmem:[#allocation2 + $0x10f] sm:$0xff]
        %v3540 = vld [vmem:[#allocation2 + $0x117] sm:$0xff]
        %v3541 = vld [vmem:[#allocation2 + $0x11f] sm:$0xff]
        %v3542 = vpack.c.bf16 %v3511, %v3510
        %v3543 = vpack.c.bf16 %v3513, %v3512
        %v3544 = vpack.c.bf16 %v3515, %v3514
        %v3545 = vpack.c.bf16 %v3517, %v3516
        %v3546 = vpack.c.bf16 %v3519, %v3518
        %v3547 = vpack.c.bf16 %v3521, %v3520
        %v3548 = vpack.c.bf16 %v3523, %v3522
        %v3549 = vpack.c.bf16 %v3525, %v3524
        %v3550 = vpack.c.bf16 %v3527, %v3526
        %v3551 = vpack.c.bf16 %v3529, %v3528
        %v3552 = vpack.c.bf16 %v3531, %v3530
        %v3553 = vpack.c.bf16 %v3533, %v3532
        %v3554 = vpack.c.bf16 %v3535, %v3534
        %v3555 = vpack.c.bf16 %v3537, %v3536
        %v3556 = vpack.c.bf16 %v3539, %v3538
        %v3557 = vpack.c.bf16 %v3541, %v3540
        %s3558 = scalar_lea.vmem [#allocation8], 384
        %v3559 = vld [vmem:[%s3558] sm:$0xf]
        %v3560 = vld [vmem:[%s3558 + $0x4] sm:$0xf]
        %v3561 = vld [vmem:[%s3558 + $0x8] sm:$0xf]
        %v3562 = vld [vmem:[%s3558 + $0xc] sm:$0xf]
        %v3563 = vld [vmem:[%s3558 + $0x10] sm:$0xf]
        %v3564 = vld [vmem:[%s3558 + $0x14] sm:$0xf]
        %v3565 = vld [vmem:[%s3558 + $0x18] sm:$0xf]
        %v3566 = vld [vmem:[%s3558 + $0x1c] sm:$0xf]
        %v3567 = vld [vmem:[%s3558 + $0x20] sm:$0xf]
        %v3568 = vld [vmem:[%s3558 + $0x24] sm:$0xf]
        %v3569 = vld [vmem:[%s3558 + $0x28] sm:$0xf]
        %v3570 = vld [vmem:[%s3558 + $0x2c] sm:$0xf]
        %v3571 = vld [vmem:[%s3558 + $0x30] sm:$0xf]
        %v3572 = vld [vmem:[%s3558 + $0x34] sm:$0xf]
        %v3573 = vld [vmem:[%s3558 + $0x38] sm:$0xf]
        %v3574 = vld [vmem:[%s3558 + $0x3c] sm:$0xf]
        %v3591 = vunpack.c.l.b16 %v3559
        %v3592 = vunpack.c.l.b16 %v3560
        %v3593 = vunpack.c.l.b16 %v3561
        %v3594 = vunpack.c.l.b16 %v3562
        %v3595 = vunpack.c.l.b16 %v3563
        %v3596 = vunpack.c.l.b16 %v3564
        %v3597 = vunpack.c.l.b16 %v3565
        %v3598 = vunpack.c.l.b16 %v3566
        %v3599 = vunpack.c.l.b16 %v3567
        %v3600 = vunpack.c.l.b16 %v3568
        %v3601 = vunpack.c.l.b16 %v3569
        %v3602 = vunpack.c.l.b16 %v3570
        %v3603 = vunpack.c.l.b16 %v3571
        %v3604 = vunpack.c.l.b16 %v3572
        %v3605 = vunpack.c.l.b16 %v3573
        %v3606 = vunpack.c.l.b16 %v3574
        %v3607 = vpack.c.b16 %v3592, %v3591
        %v3608 = vpack.c.b16 %v3594, %v3593
        %v3609 = vpack.c.b16 %v3596, %v3595
        %v3610 = vpack.c.b16 %v3598, %v3597
        %v3611 = vpack.c.b16 %v3600, %v3599
        %v3612 = vpack.c.b16 %v3602, %v3601
        %v3613 = vpack.c.b16 %v3604, %v3603
        %v3614 = vpack.c.b16 %v3606, %v3605
        %3623 = vmatprep.subr.bf16.mxu0 0
        %3624 = vmatpush1.bf16.msra.mxu0 %v3607
        %3625 = vmatprep.subr.bf16.mxu0 0
        %3626 = vmatpush1.bf16.msra.mxu0 %v3608
        %3627 = vmatprep.subr.bf16.mxu0 0
        %3628 = vmatpush1.bf16.msra.mxu0 %v3609
        %3629 = vmatprep.subr.bf16.mxu0 0
        %3630 = vmatpush1.bf16.msra.mxu0 %v3610
        %3631 = vmatprep.subr.bf16.mxu0 0
        %3632 = vmatpush1.bf16.msra.mxu0 %v3611
        %3633 = vmatprep.subr.bf16.mxu0 0
        %3634 = vmatpush1.bf16.msra.mxu0 %v3612
        %3635 = vmatprep.subr.bf16.mxu0 0
        %3636 = vmatpush1.bf16.msra.mxu0 %v3613
        %3637 = vmatprep.subr.bf16.mxu0 0
        %3638 = vmatpush1.bf16.msra.mxu0 %v3614
        %3639 = vmatprep.subr.bf16.mxu0 0
        %3640 = vmatpush1.bf16.msra.mxu0 0
        %3641 = vmatprep.subr.bf16.mxu0 0
        %3642 = vmatpush1.bf16.msra.mxu0 0
        %3643 = vmatprep.subr.bf16.mxu0 0
        %3644 = vmatpush1.bf16.msra.mxu0 0
        %3645 = vmatprep.subr.bf16.mxu0 0
        %3646 = vmatpush1.bf16.msra.mxu0 0
        %3647 = vmatprep.subr.bf16.mxu0 0
        %3648 = vmatpush1.bf16.msra.mxu0 0
        %3649 = vmatprep.subr.bf16.mxu0 0
        %3650 = vmatpush1.bf16.msra.mxu0 0
        %3651 = vmatprep.subr.bf16.mxu0 0
        %3652 = vmatpush1.bf16.msra.mxu0 0
        %3653 = vmatprep.subr.bf16.mxu0 0
        %3654 = vmatpush1.bf16.msra.mxu0 0
        %3655 = vmatprep.mubr.bf16.mxu0 0
        %3656 = vmatmul.mubr.bf16.gmra.mrb[0].mxu0 %v3542
        %v3657 = vpop.f32.mrb[0].mxu0
        %v3658 = vadd.f32 0.0, %v3657
        %v3659 = vpop.f32.mrb[0].mxu0
        %v3660 = vpop.f32.mrb[0].mxu0
        %v3661 = vadd.f32 0.0, %v3660
        %v3662 = vpop.f32.mrb[0].mxu0
        %3663 = vmatprep.mubr.bf16.mxu0 0
        %3664 = vmatmul.mubr.bf16.gmra.mrb[0].mxu0 %v3543
        %v3665 = vpop.f32.mrb[0].mxu0
        %v3666 = vadd.f32 0.0, %v3665
        %v3667 = vpop.f32.mrb[0].mxu0
        %v3668 = vpop.f32.mrb[0].mxu0
        %v3669 = vadd.f32 0.0, %v3668
        %v3670 = vpop.f32.mrb[0].mxu0
        %3671 = vmatprep.mubr.bf16.mxu0 0
        %3672 = vmatmul.mubr.bf16.gmra.mrb[0].mxu0 %v3544
        %v3673 = vpop.f32.mrb[0].mxu0
        %v3674 = vadd.f32 0.0, %v3673
        %v3675 = vpop.f32.mrb[0].mxu0
        %v3676 = vpop.f32.mrb[0].mxu0
        %v3677 = vadd.f32 0.0, %v3676
        %v3678 = vpop.f32.mrb[0].mxu0
        %3679 = vmatprep.mubr.bf16.mxu0 0
        %3680 = vmatmul.mubr.bf16.gmra.mrb[0].mxu0 %v3545
        %v3681 = vpop.f32.mrb[0].mxu0
        %v3682 = vadd.f32 0.0, %v3681
        %v3683 = vpop.f32.mrb[0].mxu0
        %v3684 = vpop.f32.mrb[0].mxu0
        %v3685 = vadd.f32 0.0, %v3684
        %v3686 = vpop.f32.mrb[0].mxu0
        %3687 = vmatprep.mubr.bf16.mxu0 0
        %3688 = vmatmul.mubr.bf16.gmra.mrb[0].mxu0 %v3546
        %v3689 = vpop.f32.mrb[0].mxu0
        %v3690 = vadd.f32 0.0, %v3689
        %v3691 = vpop.f32.mrb[0].mxu0
        %v3692 = vpop.f32.mrb[0].mxu0
        %v3693 = vadd.f32 0.0, %v3692
        %v3694 = vpop.f32.mrb[0].mxu0
        %3695 = vmatprep.mubr.bf16.mxu0 0
        %3696 = vmatmul.mubr.bf16.gmra.mrb[0].mxu0 %v3547
        %v3697 = vpop.f32.mrb[0].mxu0
        %v3698 = vadd.f32 0.0, %v3697
        %v3699 = vpop.f32.mrb[0].mxu0
        %v3700 = vpop.f32.mrb[0].mxu0
        %v3701 = vadd.f32 0.0, %v3700
        %v3702 = vpop.f32.mrb[0].mxu0
        %3703 = vmatprep.mubr.bf16.mxu0 0
        %3704 = vmatmul.mubr.bf16.gmra.mrb[0].mxu0 %v3548
        %v3705 = vpop.f32.mrb[0].mxu0
        %v3706 = vadd.f32 0.0, %v3705
        %v3707 = vpop.f32.mrb[0].mxu0
        %v3708 = vpop.f32.mrb[0].mxu0
        %v3709 = vadd.f32 0.0, %v3708
        %v3710 = vpop.f32.mrb[0].mxu0
        %3711 = vmatprep.mubr.bf16.mxu0 0
        %3712 = vmatmul.mubr.bf16.gmra.mrb[0].mxu0 %v3549
        %v3713 = vpop.f32.mrb[0].mxu0
        %v3714 = vadd.f32 0.0, %v3713
        %v3715 = vpop.f32.mrb[0].mxu0
        %v3716 = vpop.f32.mrb[0].mxu0
        %v3717 = vadd.f32 0.0, %v3716
        %v3718 = vpop.f32.mrb[0].mxu0
        %3719 = vmatprep.mubr.bf16.mxu0 0
        %3720 = vmatmul.mubr.bf16.gmra.mrb[0].mxu0 %v3550
        %v3721 = vpop.f32.mrb[0].mxu0
        %v3722 = vadd.f32 0.0, %v3721
        %v3723 = vpop.f32.mrb[0].mxu0
        %v3724 = vpop.f32.mrb[0].mxu0
        %v3725 = vadd.f32 0.0, %v3724
        %v3726 = vpop.f32.mrb[0].mxu0
        %3727 = vmatprep.mubr.bf16.mxu0 0
        %3728 = vmatmul.mubr.bf16.gmra.mrb[0].mxu0 %v3551
        %v3729 = vpop.f32.mrb[0].mxu0
        %v3730 = vadd.f32 0.0, %v3729
        %v3731 = vpop.f32.mrb[0].mxu0
        %v3732 = vpop.f32.mrb[0].mxu0
        %v3733 = vadd.f32 0.0, %v3732
        %v3734 = vpop.f32.mrb[0].mxu0
        %3735 = vmatprep.mubr.bf16.mxu0 0
        %3736 = vmatmul.mubr.bf16.gmra.mrb[0].mxu0 %v3552
        %v3737 = vpop.f32.mrb[0].mxu0
        %v3738 = vadd.f32 0.0, %v3737
        %v3739 = vpop.f32.mrb[0].mxu0
        %v3740 = vpop.f32.mrb[0].mxu0
        %v3741 = vadd.f32 0.0, %v3740
        %v3742 = vpop.f32.mrb[0].mxu0
        %3743 = vmatprep.mubr.bf16.mxu0 0
        %3744 = vmatmul.mubr.bf16.gmra.mrb[0].mxu0 %v3553
        %v3745 = vpop.f32.mrb[0].mxu0
        %v3746 = vadd.f32 0.0, %v3745
        %v3747 = vpop.f32.mrb[0].mxu0
        %v3748 = vpop.f32.mrb[0].mxu0
        %v3749 = vadd.f32 0.0, %v3748
        %v3750 = vpop.f32.mrb[0].mxu0
        %3751 = vmatprep.mubr.bf16.mxu0 0
        %3752 = vmatmul.mubr.bf16.gmra.mrb[0].mxu0 %v3554
        %v3753 = vpop.f32.mrb[0].mxu0
        %v3754 = vadd.f32 0.0, %v3753
        %v3755 = vpop.f32.mrb[0].mxu0
        %v3756 = vpop.f32.mrb[0].mxu0
        %v3757 = vadd.f32 0.0, %v3756
        %v3758 = vpop.f32.mrb[0].mxu0
        %3759 = vmatprep.mubr.bf16.mxu0 0
        %3760 = vmatmul.mubr.bf16.gmra.mrb[0].mxu0 %v3555
        %v3761 = vpop.f32.mrb[0].mxu0
        %v3762 = vadd.f32 0.0, %v3761
        %v3763 = vpop.f32.mrb[0].mxu0
        %v3764 = vpop.f32.mrb[0].mxu0
        %v3765 = vadd.f32 0.0, %v3764
        %v3766 = vpop.f32.mrb[0].mxu0
        %3767 = vmatprep.mubr.bf16.mxu0 0
        %3768 = vmatmul.mubr.bf16.gmra.mrb[0].mxu0 %v3556
        %v3769 = vpop.f32.mrb[0].mxu0
        %v3770 = vadd.f32 0.0, %v3769
        %v3771 = vpop.f32.mrb[0].mxu0
        %v3772 = vpop.f32.mrb[0].mxu0
        %v3773 = vadd.f32 0.0, %v3772
        %v3774 = vpop.f32.mrb[0].mxu0
        %3775 = vmatprep.mubr.bf16.mxu0 0
        %3776 = vmatmul.mubr.bf16.gmra.mrb[0].mxu0 %v3557
        %v3777 = vpop.f32.mrb[0].mxu0
        %v3778 = vadd.f32 0.0, %v3777
        %v3779 = vpop.f32.mrb[0].mxu0
        %v3780 = vpop.f32.mrb[0].mxu0
        %v3781 = vadd.f32 0.0, %v3780
        %v3782 = vpop.f32.mrb[0].mxu0
        %3783 = vdwg.mxu0
        %v3784 = vsel %vm1724, %v3658, 0.0
        %v3785 = vsel %vm1725, %v3661, 0.0
        %v3786 = vsel %vm1726, %v3666, 0.0
        %v3787 = vsel %vm1727, %v3669, 0.0
        %v3788 = vsel %vm1728, %v3674, 0.0
        %v3789 = vsel %vm1729, %v3677, 0.0
        %v3790 = vsel %vm1730, %v3682, 0.0
        %v3791 = vsel %vm1731, %v3685, 0.0
        %v3792 = vsel %vm1732, %v3690, 0.0
        %v3793 = vsel %vm1733, %v3693, 0.0
        %v3794 = vsel %vm1734, %v3698, 0.0
        %v3795 = vsel %vm1735, %v3701, 0.0
        %v3796 = vsel %vm1736, %v3706, 0.0
        %v3797 = vsel %vm1737, %v3709, 0.0
        %v3798 = vsel %vm1738, %v3714, 0.0
        %v3799 = vsel %vm1739, %v3717, 0.0
        %v3800 = vsel %vm1740, %v3722, 0.0
        %v3801 = vsel %vm1741, %v3725, 0.0
        %v3802 = vsel %vm1742, %v3730, 0.0
        %v3803 = vsel %vm1743, %v3733, 0.0
        %v3804 = vsel %vm1744, %v3738, 0.0
        %v3805 = vsel %vm1745, %v3741, 0.0
        %v3806 = vsel %vm1746, %v3746, 0.0
        %v3807 = vsel %vm1747, %v3749, 0.0
        %v3808 = vsel %vm1748, %v3754, 0.0
        %v3809 = vsel %vm1749, %v3757, 0.0
        %v3810 = vsel %vm1750, %v3762, 0.0
        %v3811 = vsel %vm1751, %v3765, 0.0
        %v3812 = vsel %vm1752, %v3770, 0.0
        %v3813 = vsel %vm1753, %v3773, 0.0
        %v3814 = vsel %vm1754, %v3778, 0.0
        %v3815 = vsel %vm1755, %v3781, 0.0
        %v3816 = vadd.f32 %v3478, %v3784
        %v3817 = vadd.f32 %v3479, %v3785
        %v3818 = vadd.f32 %v3480, %v3786
        %v3819 = vadd.f32 %v3481, %v3787
        %v3820 = vadd.f32 %v3482, %v3788
        %v3821 = vadd.f32 %v3483, %v3789
        %v3822 = vadd.f32 %v3484, %v3790
        %v3823 = vadd.f32 %v3485, %v3791
        %v3824 = vadd.f32 %v3486, %v3792
        %v3825 = vadd.f32 %v3487, %v3793
        %v3826 = vadd.f32 %v3488, %v3794
        %v3827 = vadd.f32 %v3489, %v3795
        %v3828 = vadd.f32 %v3490, %v3796
        %v3829 = vadd.f32 %v3491, %v3797
        %v3830 = vadd.f32 %v3492, %v3798
        %v3831 = vadd.f32 %v3493, %v3799
        %v3832 = vadd.f32 %v3494, %v3800
        %v3833 = vadd.f32 %v3495, %v3801
        %v3834 = vadd.f32 %v3496, %v3802
        %v3835 = vadd.f32 %v3497, %v3803
        %v3836 = vadd.f32 %v3498, %v3804
        %v3837 = vadd.f32 %v3499, %v3805
        %v3838 = vadd.f32 %v3500, %v3806
        %v3839 = vadd.f32 %v3501, %v3807
        %v3840 = vadd.f32 %v3502, %v3808
        %v3841 = vadd.f32 %v3503, %v3809
        %v3842 = vadd.f32 %v3504, %v3810
        %v3843 = vadd.f32 %v3505, %v3811
        %v3844 = vadd.f32 %v3506, %v3812
        %v3845 = vadd.f32 %v3507, %v3813
        %v3846 = vadd.f32 %v3508, %v3814
        %v3847 = vadd.f32 %v3509, %v3815
        %v3848 = vld [vmem:[#allocation2 + $0x28] sm:$0xff]
        %v3849 = vld [vmem:[#allocation2 + $0x30] sm:$0xff]
        %v3850 = vld [vmem:[#allocation2 + $0x38] sm:$0xff]
        %v3851 = vld [vmem:[#allocation2 + $0x40] sm:$0xff]
        %v3852 = vld [vmem:[#allocation2 + $0x48] sm:$0xff]
        %v3853 = vld [vmem:[#allocation2 + $0x50] sm:$0xff]
        %v3854 = vld [vmem:[#allocation2 + $0x58] sm:$0xff]
        %v3855 = vld [vmem:[#allocation2 + $0x60] sm:$0xff]
        %v3856 = vld [vmem:[#allocation2 + $0x68] sm:$0xff]
        %v3857 = vld [vmem:[#allocation2 + $0x70] sm:$0xff]
        %v3858 = vld [vmem:[#allocation2 + $0x78] sm:$0xff]
        %v3859 = vld [vmem:[#allocation2 + $0x80] sm:$0xff]
        %v3860 = vld [vmem:[#allocation2 + $0x88] sm:$0xff]
        %v3861 = vld [vmem:[#allocation2 + $0x90] sm:$0xff]
        %v3862 = vld [vmem:[#allocation2 + $0x98] sm:$0xff]
        %v3863 = vld [vmem:[#allocation2 + $0xa0] sm:$0xff]
        %v3864 = vld [vmem:[#allocation2 + $0xa8] sm:$0xff]
        %v3865 = vld [vmem:[#allocation2 + $0xb0] sm:$0xff]
        %v3866 = vld [vmem:[#allocation2 + $0xb8] sm:$0xff]
        %v3867 = vld [vmem:[#allocation2 + $0xc0] sm:$0xff]
        %v3868 = vld [vmem:[#allocation2 + $0xc8] sm:$0xff]
        %v3869 = vld [vmem:[#allocation2 + $0xd0] sm:$0xff]
        %v3870 = vld [vmem:[#allocation2 + $0xd8] sm:$0xff]
        %v3871 = vld [vmem:[#allocation2 + $0xe0] sm:$0xff]
        %v3872 = vld [vmem:[#allocation2 + $0xe8] sm:$0xff]
        %v3873 = vld [vmem:[#allocation2 + $0xf0] sm:$0xff]
        %v3874 = vld [vmem:[#allocation2 + $0xf8] sm:$0xff]
        %v3875 = vld [vmem:[#allocation2 + $0x100] sm:$0xff]
        %v3876 = vld [vmem:[#allocation2 + $0x108] sm:$0xff]
        %v3877 = vld [vmem:[#allocation2 + $0x110] sm:$0xff]
        %v3878 = vld [vmem:[#allocation2 + $0x118] sm:$0xff]
        %v3879 = vld [vmem:[#allocation2 + $0x120] sm:$0xff]
        %v3880 = vpack.c.bf16 %v3849, %v3848
        %v3881 = vpack.c.bf16 %v3851, %v3850
        %v3882 = vpack.c.bf16 %v3853, %v3852
        %v3883 = vpack.c.bf16 %v3855, %v3854
        %v3884 = vpack.c.bf16 %v3857, %v3856
        %v3885 = vpack.c.bf16 %v3859, %v3858
        %v3886 = vpack.c.bf16 %v3861, %v3860
        %v3887 = vpack.c.bf16 %v3863, %v3862
        %v3888 = vpack.c.bf16 %v3865, %v3864
        %v3889 = vpack.c.bf16 %v3867, %v3866
        %v3890 = vpack.c.bf16 %v3869, %v3868
        %v3891 = vpack.c.bf16 %v3871, %v3870
        %v3892 = vpack.c.bf16 %v3873, %v3872
        %v3893 = vpack.c.bf16 %v3875, %v3874
        %v3894 = vpack.c.bf16 %v3877, %v3876
        %v3895 = vpack.c.bf16 %v3879, %v3878
        %s3896 = scalar_lea.vmem [#allocation8], 448
        %v3897 = vld [vmem:[%s3896] sm:$0xf]
        %v3898 = vld [vmem:[%s3896 + $0x4] sm:$0xf]
        %v3899 = vld [vmem:[%s3896 + $0x8] sm:$0xf]
        %v3900 = vld [vmem:[%s3896 + $0xc] sm:$0xf]
        %v3901 = vld [vmem:[%s3896 + $0x10] sm:$0xf]
        %v3902 = vld [vmem:[%s3896 + $0x14] sm:$0xf]
        %v3903 = vld [vmem:[%s3896 + $0x18] sm:$0xf]
        %v3904 = vld [vmem:[%s3896 + $0x1c] sm:$0xf]
        %v3905 = vld [vmem:[%s3896 + $0x20] sm:$0xf]
        %v3906 = vld [vmem:[%s3896 + $0x24] sm:$0xf]
        %v3907 = vld [vmem:[%s3896 + $0x28] sm:$0xf]
        %v3908 = vld [vmem:[%s3896 + $0x2c] sm:$0xf]
        %v3909 = vld [vmem:[%s3896 + $0x30] sm:$0xf]
        %v3910 = vld [vmem:[%s3896 + $0x34] sm:$0xf]
        %v3911 = vld [vmem:[%s3896 + $0x38] sm:$0xf]
        %v3912 = vld [vmem:[%s3896 + $0x3c] sm:$0xf]
        %v3929 = vunpack.c.l.b16 %v3897
        %v3930 = vunpack.c.l.b16 %v3898
        %v3931 = vunpack.c.l.b16 %v3899
        %v3932 = vunpack.c.l.b16 %v3900
        %v3933 = vunpack.c.l.b16 %v3901
        %v3934 = vunpack.c.l.b16 %v3902
        %v3935 = vunpack.c.l.b16 %v3903
        %v3936 = vunpack.c.l.b16 %v3904
        %v3937 = vunpack.c.l.b16 %v3905
        %v3938 = vunpack.c.l.b16 %v3906
        %v3939 = vunpack.c.l.b16 %v3907
        %v3940 = vunpack.c.l.b16 %v3908
        %v3941 = vunpack.c.l.b16 %v3909
        %v3942 = vunpack.c.l.b16 %v3910
        %v3943 = vunpack.c.l.b16 %v3911
        %v3944 = vunpack.c.l.b16 %v3912
        %v3945 = vpack.c.b16 %v3930, %v3929
        %v3946 = vpack.c.b16 %v3932, %v3931
        %v3947 = vpack.c.b16 %v3934, %v3933
        %v3948 = vpack.c.b16 %v3936, %v3935
        %v3949 = vpack.c.b16 %v3938, %v3937
        %v3950 = vpack.c.b16 %v3940, %v3939
        %v3951 = vpack.c.b16 %v3942, %v3941
        %v3952 = vpack.c.b16 %v3944, %v3943
        %3961 = vmatprep.subr.bf16.mxu0 0
        %3962 = vmatpush1.bf16.msra.mxu0 %v3945
        %3963 = vmatprep.subr.bf16.mxu0 0
        %3964 = vmatpush1.bf16.msra.mxu0 %v3946
        %3965 = vmatprep.subr.bf16.mxu0 0
        %3966 = vmatpush1.bf16.msra.mxu0 %v3947
        %3967 = vmatprep.subr.bf16.mxu0 0
        %3968 = vmatpush1.bf16.msra.mxu0 %v3948
        %3969 = vmatprep.subr.bf16.mxu0 0
        %3970 = vmatpush1.bf16.msra.mxu0 %v3949
        %3971 = vmatprep.subr.bf16.mxu0 0
        %3972 = vmatpush1.bf16.msra.mxu0 %v3950
        %3973 = vmatprep.subr.bf16.mxu0 0
        %3974 = vmatpush1.bf16.msra.mxu0 %v3951
        %3975 = vmatprep.subr.bf16.mxu0 0
        %3976 = vmatpush1.bf16.msra.mxu0 %v3952
        %3977 = vmatprep.subr.bf16.mxu0 0
        %3978 = vmatpush1.bf16.msra.mxu0 0
        %3979 = vmatprep.subr.bf16.mxu0 0
        %3980 = vmatpush1.bf16.msra.mxu0 0
        %3981 = vmatprep.subr.bf16.mxu0 0
        %3982 = vmatpush1.bf16.msra.mxu0 0
        %3983 = vmatprep.subr.bf16.mxu0 0
        %3984 = vmatpush1.bf16.msra.mxu0 0
        %3985 = vmatprep.subr.bf16.mxu0 0
        %3986 = vmatpush1.bf16.msra.mxu0 0
        %3987 = vmatprep.subr.bf16.mxu0 0
        %3988 = vmatpush1.bf16.msra.mxu0 0
        %3989 = vmatprep.subr.bf16.mxu0 0
        %3990 = vmatpush1.bf16.msra.mxu0 0
        %3991 = vmatprep.subr.bf16.mxu0 0
        %3992 = vmatpush1.bf16.msra.mxu0 0
        %3993 = vmatprep.mubr.bf16.mxu0 0
        %3994 = vmatmul.mubr.bf16.gmra.mrb[0].mxu0 %v3880
        %v3995 = vpop.f32.mrb[0].mxu0
        %v3996 = vadd.f32 0.0, %v3995
        %v3997 = vpop.f32.mrb[0].mxu0
        %v3998 = vpop.f32.mrb[0].mxu0
        %v3999 = vadd.f32 0.0, %v3998
        %v4000 = vpop.f32.mrb[0].mxu0
        %4001 = vmatprep.mubr.bf16.mxu0 0
        %4002 = vmatmul.mubr.bf16.gmra.mrb[0].mxu0 %v3881
        %v4003 = vpop.f32.mrb[0].mxu0
        %v4004 = vadd.f32 0.0, %v4003
        %v4005 = vpop.f32.mrb[0].mxu0
        %v4006 = vpop.f32.mrb[0].mxu0
        %v4007 = vadd.f32 0.0, %v4006
        %v4008 = vpop.f32.mrb[0].mxu0
        %4009 = vmatprep.mubr.bf16.mxu0 0
        %4010 = vmatmul.mubr.bf16.gmra.mrb[0].mxu0 %v3882
        %v4011 = vpop.f32.mrb[0].mxu0
        %v4012 = vadd.f32 0.0, %v4011
        %v4013 = vpop.f32.mrb[0].mxu0
        %v4014 = vpop.f32.mrb[0].mxu0
        %v4015 = vadd.f32 0.0, %v4014
        %v4016 = vpop.f32.mrb[0].mxu0
        %4017 = vmatprep.mubr.bf16.mxu0 0
        %4018 = vmatmul.mubr.bf16.gmra.mrb[0].mxu0 %v3883
        %v4019 = vpop.f32.mrb[0].mxu0
        %v4020 = vadd.f32 0.0, %v4019
        %v4021 = vpop.f32.mrb[0].mxu0
        %v4022 = vpop.f32.mrb[0].mxu0
        %v4023 = vadd.f32 0.0, %v4022
        %v4024 = vpop.f32.mrb[0].mxu0
        %4025 = vmatprep.mubr.bf16.mxu0 0
        %4026 = vmatmul.mubr.bf16.gmra.mrb[0].mxu0 %v3884
        %v4027 = vpop.f32.mrb[0].mxu0
        %v4028 = vadd.f32 0.0, %v4027
        %v4029 = vpop.f32.mrb[0].mxu0
        %v4030 = vpop.f32.mrb[0].mxu0
        %v4031 = vadd.f32 0.0, %v4030
        %v4032 = vpop.f32.mrb[0].mxu0
        %4033 = vmatprep.mubr.bf16.mxu0 0
        %4034 = vmatmul.mubr.bf16.gmra.mrb[0].mxu0 %v3885
        %v4035 = vpop.f32.mrb[0].mxu0
        %v4036 = vadd.f32 0.0, %v4035
        %v4037 = vpop.f32.mrb[0].mxu0
        %v4038 = vpop.f32.mrb[0].mxu0
        %v4039 = vadd.f32 0.0, %v4038
        %v4040 = vpop.f32.mrb[0].mxu0
        %4041 = vmatprep.mubr.bf16.mxu0 0
        %4042 = vmatmul.mubr.bf16.gmra.mrb[0].mxu0 %v3886
        %v4043 = vpop.f32.mrb[0].mxu0
        %v4044 = vadd.f32 0.0, %v4043
        %v4045 = vpop.f32.mrb[0].mxu0
        %v4046 = vpop.f32.mrb[0].mxu0
        %v4047 = vadd.f32 0.0, %v4046
        %v4048 = vpop.f32.mrb[0].mxu0
        %4049 = vmatprep.mubr.bf16.mxu0 0
        %4050 = vmatmul.mubr.bf16.gmra.mrb[0].mxu0 %v3887
        %v4051 = vpop.f32.mrb[0].mxu0
        %v4052 = vadd.f32 0.0, %v4051
        %v4053 = vpop.f32.mrb[0].mxu0
        %v4054 = vpop.f32.mrb[0].mxu0
        %v4055 = vadd.f32 0.0, %v4054
        %v4056 = vpop.f32.mrb[0].mxu0
        %4057 = vmatprep.mubr.bf16.mxu0 0
        %4058 = vmatmul.mubr.bf16.gmra.mrb[0].mxu0 %v3888
        %v4059 = vpop.f32.mrb[0].mxu0
        %v4060 = vadd.f32 0.0, %v4059
        %v4061 = vpop.f32.mrb[0].mxu0
        %v4062 = vpop.f32.mrb[0].mxu0
        %v4063 = vadd.f32 0.0, %v4062
        %v4064 = vpop.f32.mrb[0].mxu0
        %4065 = vmatprep.mubr.bf16.mxu0 0
        %4066 = vmatmul.mubr.bf16.gmra.mrb[0].mxu0 %v3889
        %v4067 = vpop.f32.mrb[0].mxu0
        %v4068 = vadd.f32 0.0, %v4067
        %v4069 = vpop.f32.mrb[0].mxu0
        %v4070 = vpop.f32.mrb[0].mxu0
        %v4071 = vadd.f32 0.0, %v4070
        %v4072 = vpop.f32.mrb[0].mxu0
        %4073 = vmatprep.mubr.bf16.mxu0 0
        %4074 = vmatmul.mubr.bf16.gmra.mrb[0].mxu0 %v3890
        %v4075 = vpop.f32.mrb[0].mxu0
        %v4076 = vadd.f32 0.0, %v4075
        %v4077 = vpop.f32.mrb[0].mxu0
        %v4078 = vpop.f32.mrb[0].mxu0
        %v4079 = vadd.f32 0.0, %v4078
        %v4080 = vpop.f32.mrb[0].mxu0
        %4081 = vmatprep.mubr.bf16.mxu0 0
        %4082 = vmatmul.mubr.bf16.gmra.mrb[0].mxu0 %v3891
        %v4083 = vpop.f32.mrb[0].mxu0
        %v4084 = vadd.f32 0.0, %v4083
        %v4085 = vpop.f32.mrb[0].mxu0
        %v4086 = vpop.f32.mrb[0].mxu0
        %v4087 = vadd.f32 0.0, %v4086
        %v4088 = vpop.f32.mrb[0].mxu0
        %4089 = vmatprep.mubr.bf16.mxu0 0
        %4090 = vmatmul.mubr.bf16.gmra.mrb[0].mxu0 %v3892
        %v4091 = vpop.f32.mrb[0].mxu0
        %v4092 = vadd.f32 0.0, %v4091
        %v4093 = vpop.f32.mrb[0].mxu0
        %v4094 = vpop.f32.mrb[0].mxu0
        %v4095 = vadd.f32 0.0, %v4094
        %v4096 = vpop.f32.mrb[0].mxu0
        %4097 = vmatprep.mubr.bf16.mxu0 0
        %4098 = vmatmul.mubr.bf16.gmra.mrb[0].mxu0 %v3893
        %v4099 = vpop.f32.mrb[0].mxu0
        %v4100 = vadd.f32 0.0, %v4099
        %v4101 = vpop.f32.mrb[0].mxu0
        %v4102 = vpop.f32.mrb[0].mxu0
        %v4103 = vadd.f32 0.0, %v4102
        %v4104 = vpop.f32.mrb[0].mxu0
        %4105 = vmatprep.mubr.bf16.mxu0 0
        %4106 = vmatmul.mubr.bf16.gmra.mrb[0].mxu0 %v3894
        %v4107 = vpop.f32.mrb[0].mxu0
        %v4108 = vadd.f32 0.0, %v4107
        %v4109 = vpop.f32.mrb[0].mxu0
        %v4110 = vpop.f32.mrb[0].mxu0
        %v4111 = vadd.f32 0.0, %v4110
        %v4112 = vpop.f32.mrb[0].mxu0
        %4113 = vmatprep.mubr.bf16.mxu0 0
        %4114 = vmatmul.mubr.bf16.gmra.mrb[0].mxu0 %v3895
        %v4115 = vpop.f32.mrb[0].mxu0
        %v4116 = vadd.f32 0.0, %v4115
        %v4117 = vpop.f32.mrb[0].mxu0
        %v4118 = vpop.f32.mrb[0].mxu0
        %v4119 = vadd.f32 0.0, %v4118
        %v4120 = vpop.f32.mrb[0].mxu0
        %4121 = vdwg.mxu0
        %v4122 = vadd.f32 %v3816, %v3996
        %v4123 = vadd.f32 %v3817, %v3999
        %v4124 = vadd.f32 %v3818, %v4004
        %v4125 = vadd.f32 %v3819, %v4007
        %v4126 = vadd.f32 %v3820, %v4012
        %v4127 = vadd.f32 %v3821, %v4015
        %v4128 = vadd.f32 %v3822, %v4020
        %v4129 = vadd.f32 %v3823, %v4023
        %v4130 = vadd.f32 %v3824, %v4028
        %v4131 = vadd.f32 %v3825, %v4031
        %v4132 = vadd.f32 %v3826, %v4036
        %v4133 = vadd.f32 %v3827, %v4039
        %v4134 = vadd.f32 %v3828, %v4044
        %v4135 = vadd.f32 %v3829, %v4047
        %v4136 = vadd.f32 %v3830, %v4052
        %v4137 = vadd.f32 %v3831, %v4055
        %v4138 = vadd.f32 %v3832, %v4060
        %v4139 = vadd.f32 %v3833, %v4063
        %v4140 = vadd.f32 %v3834, %v4068
        %v4141 = vadd.f32 %v3835, %v4071
        %v4142 = vadd.f32 %v3836, %v4076
        %v4143 = vadd.f32 %v3837, %v4079
        %v4144 = vadd.f32 %v3838, %v4084
        %v4145 = vadd.f32 %v3839, %v4087
        %v4146 = vadd.f32 %v3840, %v4092
        %v4147 = vadd.f32 %v3841, %v4095
        %v4148 = vadd.f32 %v3842, %v4100
        %v4149 = vadd.f32 %v3843, %v4103
        %v4150 = vadd.f32 %v3844, %v4108
        %v4151 = vadd.f32 %v3845, %v4111
        %v4152 = vadd.f32 %v3846, %v4116
        %v4153 = vadd.f32 %v3847, %v4119
        %v4154 = vld [vmem:[#allocation2 + $0x29] sm:$0xff]
        %v4155 = vld [vmem:[#allocation2 + $0x31] sm:$0xff]
        %v4156 = vld [vmem:[#allocation2 + $0x39] sm:$0xff]
        %v4157 = vld [vmem:[#allocation2 + $0x41] sm:$0xff]
        %v4158 = vld [vmem:[#allocation2 + $0x49] sm:$0xff]
        %v4159 = vld [vmem:[#allocation2 + $0x51] sm:$0xff]
        %v4160 = vld [vmem:[#allocation2 + $0x59] sm:$0xff]
        %v4161 = vld [vmem:[#allocation2 + $0x61] sm:$0xff]
        %v4162 = vld [vmem:[#allocation2 + $0x69] sm:$0xff]
        %v4163 = vld [vmem:[#allocation2 + $0x71] sm:$0xff]
        %v4164 = vld [vmem:[#allocation2 + $0x79] sm:$0xff]
        %v4165 = vld [vmem:[#allocation2 + $0x81] sm:$0xff]
        %v4166 = vld [vmem:[#allocation2 + $0x89] sm:$0xff]
        %v4167 = vld [vmem:[#allocation2 + $0x91] sm:$0xff]
        %v4168 = vld [vmem:[#allocation2 + $0x99] sm:$0xff]
        %v4169 = vld [vmem:[#allocation2 + $0xa1] sm:$0xff]
        %v4170 = vld [vmem:[#allocation2 + $0xa9] sm:$0xff]
        %v4171 = vld [vmem:[#allocation2 + $0xb1] sm:$0xff]
        %v4172 = vld [vmem:[#allocation2 + $0xb9] sm:$0xff]
        %v4173 = vld [vmem:[#allocation2 + $0xc1] sm:$0xff]
        %v4174 = vld [vmem:[#allocation2 + $0xc9] sm:$0xff]
        %v4175 = vld [vmem:[#allocation2 + $0xd1] sm:$0xff]
        %v4176 = vld [vmem:[#allocation2 + $0xd9] sm:$0xff]
        %v4177 = vld [vmem:[#allocation2 + $0xe1] sm:$0xff]
        %v4178 = vld [vmem:[#allocation2 + $0xe9] sm:$0xff]
        %v4179 = vld [vmem:[#allocation2 + $0xf1] sm:$0xff]
        %v4180 = vld [vmem:[#allocation2 + $0xf9] sm:$0xff]
        %v4181 = vld [vmem:[#allocation2 + $0x101] sm:$0xff]
        %v4182 = vld [vmem:[#allocation2 + $0x109] sm:$0xff]
        %v4183 = vld [vmem:[#allocation2 + $0x111] sm:$0xff]
        %v4184 = vld [vmem:[#allocation2 + $0x119] sm:$0xff]
        %v4185 = vld [vmem:[#allocation2 + $0x121] sm:$0xff]
        %v4186 = vpack.c.bf16 %v4155, %v4154
        %v4187 = vpack.c.bf16 %v4157, %v4156
        %v4188 = vpack.c.bf16 %v4159, %v4158
        %v4189 = vpack.c.bf16 %v4161, %v4160
        %v4190 = vpack.c.bf16 %v4163, %v4162
        %v4191 = vpack.c.bf16 %v4165, %v4164
        %v4192 = vpack.c.bf16 %v4167, %v4166
        %v4193 = vpack.c.bf16 %v4169, %v4168
        %v4194 = vpack.c.bf16 %v4171, %v4170
        %v4195 = vpack.c.bf16 %v4173, %v4172
        %v4196 = vpack.c.bf16 %v4175, %v4174
        %v4197 = vpack.c.bf16 %v4177, %v4176
        %v4198 = vpack.c.bf16 %v4179, %v4178
        %v4199 = vpack.c.bf16 %v4181, %v4180
        %v4200 = vpack.c.bf16 %v4183, %v4182
        %v4201 = vpack.c.bf16 %v4185, %v4184
        %s4202 = scalar_lea.vmem [#allocation8], 512
        %v4203 = vld [vmem:[%s4202] sm:$0xf]
        %v4204 = vld [vmem:[%s4202 + $0x4] sm:$0xf]
        %v4205 = vld [vmem:[%s4202 + $0x8] sm:$0xf]
        %v4206 = vld [vmem:[%s4202 + $0xc] sm:$0xf]
        %v4207 = vld [vmem:[%s4202 + $0x10] sm:$0xf]
        %v4208 = vld [vmem:[%s4202 + $0x14] sm:$0xf]
        %v4209 = vld [vmem:[%s4202 + $0x18] sm:$0xf]
        %v4210 = vld [vmem:[%s4202 + $0x1c] sm:$0xf]
        %v4211 = vld [vmem:[%s4202 + $0x20] sm:$0xf]
        %v4212 = vld [vmem:[%s4202 + $0x24] sm:$0xf]
        %v4213 = vld [vmem:[%s4202 + $0x28] sm:$0xf]
        %v4214 = vld [vmem:[%s4202 + $0x2c] sm:$0xf]
        %v4215 = vld [vmem:[%s4202 + $0x30] sm:$0xf]
        %v4216 = vld [vmem:[%s4202 + $0x34] sm:$0xf]
        %v4217 = vld [vmem:[%s4202 + $0x38] sm:$0xf]
        %v4218 = vld [vmem:[%s4202 + $0x3c] sm:$0xf]
        %v4235 = vunpack.c.l.b16 %v4203
        %v4236 = vunpack.c.l.b16 %v4204
        %v4237 = vunpack.c.l.b16 %v4205
        %v4238 = vunpack.c.l.b16 %v4206
        %v4239 = vunpack.c.l.b16 %v4207
        %v4240 = vunpack.c.l.b16 %v4208
        %v4241 = vunpack.c.l.b16 %v4209
        %v4242 = vunpack.c.l.b16 %v4210
        %v4243 = vunpack.c.l.b16 %v4211
        %v4244 = vunpack.c.l.b16 %v4212
        %v4245 = vunpack.c.l.b16 %v4213
        %v4246 = vunpack.c.l.b16 %v4214
        %v4247 = vunpack.c.l.b16 %v4215
        %v4248 = vunpack.c.l.b16 %v4216
        %v4249 = vunpack.c.l.b16 %v4217
        %v4250 = vunpack.c.l.b16 %v4218
        %v4251 = vpack.c.b16 %v4236, %v4235
        %v4252 = vpack.c.b16 %v4238, %v4237
        %v4253 = vpack.c.b16 %v4240, %v4239
        %v4254 = vpack.c.b16 %v4242, %v4241
        %v4255 = vpack.c.b16 %v4244, %v4243
        %v4256 = vpack.c.b16 %v4246, %v4245
        %v4257 = vpack.c.b16 %v4248, %v4247
        %v4258 = vpack.c.b16 %v4250, %v4249
        %4267 = vmatprep.subr.bf16.mxu0 0
        %4268 = vmatpush1.bf16.msra.mxu0 %v4251
        %4269 = vmatprep.subr.bf16.mxu0 0
        %4270 = vmatpush1.bf16.msra.mxu0 %v4252
        %4271 = vmatprep.subr.bf16.mxu0 0
        %4272 = vmatpush1.bf16.msra.mxu0 %v4253
        %4273 = vmatprep.subr.bf16.mxu0 0
        %4274 = vmatpush1.bf16.msra.mxu0 %v4254
        %4275 = vmatprep.subr.bf16.mxu0 0
        %4276 = vmatpush1.bf16.msra.mxu0 %v4255
        %4277 = vmatprep.subr.bf16.mxu0 0
        %4278 = vmatpush1.bf16.msra.mxu0 %v4256
        %4279 = vmatprep.subr.bf16.mxu0 0
        %4280 = vmatpush1.bf16.msra.mxu0 %v4257
        %4281 = vmatprep.subr.bf16.mxu0 0
        %4282 = vmatpush1.bf16.msra.mxu0 %v4258
        %4283 = vmatprep.subr.bf16.mxu0 0
        %4284 = vmatpush1.bf16.msra.mxu0 0
        %4285 = vmatprep.subr.bf16.mxu0 0
        %4286 = vmatpush1.bf16.msra.mxu0 0
        %4287 = vmatprep.subr.bf16.mxu0 0
        %4288 = vmatpush1.bf16.msra.mxu0 0
        %4289 = vmatprep.subr.bf16.mxu0 0
        %4290 = vmatpush1.bf16.msra.mxu0 0
        %4291 = vmatprep.subr.bf16.mxu0 0
        %4292 = vmatpush1.bf16.msra.mxu0 0
        %4293 = vmatprep.subr.bf16.mxu0 0
        %4294 = vmatpush1.bf16.msra.mxu0 0
        %4295 = vmatprep.subr.bf16.mxu0 0
        %4296 = vmatpush1.bf16.msra.mxu0 0
        %4297 = vmatprep.subr.bf16.mxu0 0
        %4298 = vmatpush1.bf16.msra.mxu0 0
        %4299 = vmatprep.mubr.bf16.mxu0 0
        %4300 = vmatmul.mubr.bf16.gmra.mrb[0].mxu0 %v4186
        %v4301 = vpop.f32.mrb[0].mxu0
        %v4302 = vadd.f32 0.0, %v4301
        %v4303 = vpop.f32.mrb[0].mxu0
        %v4304 = vpop.f32.mrb[0].mxu0
        %v4305 = vadd.f32 0.0, %v4304
        %v4306 = vpop.f32.mrb[0].mxu0
        %4307 = vmatprep.mubr.bf16.mxu0 0
        %4308 = vmatmul.mubr.bf16.gmra.mrb[0].mxu0 %v4187
        %v4309 = vpop.f32.mrb[0].mxu0
        %v4310 = vadd.f32 0.0, %v4309
        %v4311 = vpop.f32.mrb[0].mxu0
        %v4312 = vpop.f32.mrb[0].mxu0
        %v4313 = vadd.f32 0.0, %v4312
        %v4314 = vpop.f32.mrb[0].mxu0
        %4315 = vmatprep.mubr.bf16.mxu0 0
        %4316 = vmatmul.mubr.bf16.gmra.mrb[0].mxu0 %v4188
        %v4317 = vpop.f32.mrb[0].mxu0
        %v4318 = vadd.f32 0.0, %v4317
        %v4319 = vpop.f32.mrb[0].mxu0
        %v4320 = vpop.f32.mrb[0].mxu0
        %v4321 = vadd.f32 0.0, %v4320
        %v4322 = vpop.f32.mrb[0].mxu0
        %4323 = vmatprep.mubr.bf16.mxu0 0
        %4324 = vmatmul.mubr.bf16.gmra.mrb[0].mxu0 %v4189
        %v4325 = vpop.f32.mrb[0].mxu0
        %v4326 = vadd.f32 0.0, %v4325
        %v4327 = vpop.f32.mrb[0].mxu0
        %v4328 = vpop.f32.mrb[0].mxu0
        %v4329 = vadd.f32 0.0, %v4328
        %v4330 = vpop.f32.mrb[0].mxu0
        %4331 = vmatprep.mubr.bf16.mxu0 0
        %4332 = vmatmul.mubr.bf16.gmra.mrb[0].mxu0 %v4190
        %v4333 = vpop.f32.mrb[0].mxu0
        %v4334 = vadd.f32 0.0, %v4333
        %v4335 = vpop.f32.mrb[0].mxu0
        %v4336 = vpop.f32.mrb[0].mxu0
        %v4337 = vadd.f32 0.0, %v4336
        %v4338 = vpop.f32.mrb[0].mxu0
        %4339 = vmatprep.mubr.bf16.mxu0 0
        %4340 = vmatmul.mubr.bf16.gmra.mrb[0].mxu0 %v4191
        %v4341 = vpop.f32.mrb[0].mxu0
        %v4342 = vadd.f32 0.0, %v4341
        %v4343 = vpop.f32.mrb[0].mxu0
        %v4344 = vpop.f32.mrb[0].mxu0
        %v4345 = vadd.f32 0.0, %v4344
        %v4346 = vpop.f32.mrb[0].mxu0
        %4347 = vmatprep.mubr.bf16.mxu0 0
        %4348 = vmatmul.mubr.bf16.gmra.mrb[0].mxu0 %v4192
        %v4349 = vpop.f32.mrb[0].mxu0
        %v4350 = vadd.f32 0.0, %v4349
        %v4351 = vpop.f32.mrb[0].mxu0
        %v4352 = vpop.f32.mrb[0].mxu0
        %v4353 = vadd.f32 0.0, %v4352
        %v4354 = vpop.f32.mrb[0].mxu0
        %4355 = vmatprep.mubr.bf16.mxu0 0
        %4356 = vmatmul.mubr.bf16.gmra.mrb[0].mxu0 %v4193
        %v4357 = vpop.f32.mrb[0].mxu0
        %v4358 = vadd.f32 0.0, %v4357
        %v4359 = vpop.f32.mrb[0].mxu0
        %v4360 = vpop.f32.mrb[0].mxu0
        %v4361 = vadd.f32 0.0, %v4360
        %v4362 = vpop.f32.mrb[0].mxu0
        %4363 = vmatprep.mubr.bf16.mxu0 0
        %4364 = vmatmul.mubr.bf16.gmra.mrb[0].mxu0 %v4194
        %v4365 = vpop.f32.mrb[0].mxu0
        %v4366 = vadd.f32 0.0, %v4365
        %v4367 = vpop.f32.mrb[0].mxu0
        %v4368 = vpop.f32.mrb[0].mxu0
        %v4369 = vadd.f32 0.0, %v4368
        %v4370 = vpop.f32.mrb[0].mxu0
        %4371 = vmatprep.mubr.bf16.mxu0 0
        %4372 = vmatmul.mubr.bf16.gmra.mrb[0].mxu0 %v4195
        %v4373 = vpop.f32.mrb[0].mxu0
        %v4374 = vadd.f32 0.0, %v4373
        %v4375 = vpop.f32.mrb[0].mxu0
        %v4376 = vpop.f32.mrb[0].mxu0
        %v4377 = vadd.f32 0.0, %v4376
        %v4378 = vpop.f32.mrb[0].mxu0
        %4379 = vmatprep.mubr.bf16.mxu0 0
        %4380 = vmatmul.mubr.bf16.gmra.mrb[0].mxu0 %v4196
        %v4381 = vpop.f32.mrb[0].mxu0
        %v4382 = vadd.f32 0.0, %v4381
        %v4383 = vpop.f32.mrb[0].mxu0
        %v4384 = vpop.f32.mrb[0].mxu0
        %v4385 = vadd.f32 0.0, %v4384
        %v4386 = vpop.f32.mrb[0].mxu0
        %4387 = vmatprep.mubr.bf16.mxu0 0
        %4388 = vmatmul.mubr.bf16.gmra.mrb[0].mxu0 %v4197
        %v4389 = vpop.f32.mrb[0].mxu0
        %v4390 = vadd.f32 0.0, %v4389
        %v4391 = vpop.f32.mrb[0].mxu0
        %v4392 = vpop.f32.mrb[0].mxu0
        %v4393 = vadd.f32 0.0, %v4392
        %v4394 = vpop.f32.mrb[0].mxu0
        %4395 = vmatprep.mubr.bf16.mxu0 0
        %4396 = vmatmul.mubr.bf16.gmra.mrb[0].mxu0 %v4198
        %v4397 = vpop.f32.mrb[0].mxu0
        %v4398 = vadd.f32 0.0, %v4397
        %v4399 = vpop.f32.mrb[0].mxu0
        %v4400 = vpop.f32.mrb[0].mxu0
        %v4401 = vadd.f32 0.0, %v4400
        %v4402 = vpop.f32.mrb[0].mxu0
        %4403 = vmatprep.mubr.bf16.mxu0 0
        %4404 = vmatmul.mubr.bf16.gmra.mrb[0].mxu0 %v4199
        %v4405 = vpop.f32.mrb[0].mxu0
        %v4406 = vadd.f32 0.0, %v4405
        %v4407 = vpop.f32.mrb[0].mxu0
        %v4408 = vpop.f32.mrb[0].mxu0
        %v4409 = vadd.f32 0.0, %v4408
        %v4410 = vpop.f32.mrb[0].mxu0
        %4411 = vmatprep.mubr.bf16.mxu0 0
        %4412 = vmatmul.mubr.bf16.gmra.mrb[0].mxu0 %v4200
        %v4413 = vpop.f32.mrb[0].mxu0
        %v4414 = vadd.f32 0.0, %v4413
        %v4415 = vpop.f32.mrb[0].mxu0
        %v4416 = vpop.f32.mrb[0].mxu0
        %v4417 = vadd.f32 0.0, %v4416
        %v4418 = vpop.f32.mrb[0].mxu0
        %4419 = vmatprep.mubr.bf16.mxu0 0
        %4420 = vmatmul.mubr.bf16.gmra.mrb[0].mxu0 %v4201
        %v4421 = vpop.f32.mrb[0].mxu0
        %v4422 = vadd.f32 0.0, %v4421
        %v4423 = vpop.f32.mrb[0].mxu0
        %v4424 = vpop.f32.mrb[0].mxu0
        %v4425 = vadd.f32 0.0, %v4424
        %v4426 = vpop.f32.mrb[0].mxu0
        %4427 = vdwg.mxu0
        %v4428 = vsel %vm2432, %v4302, 0.0
        %v4429 = vsel %vm2433, %v4305, 0.0
        %v4430 = vsel %vm2434, %v4310, 0.0
        %v4431 = vsel %vm2435, %v4313, 0.0
        %v4432 = vsel %vm2436, %v4318, 0.0
        %v4433 = vsel %vm2437, %v4321, 0.0
        %v4434 = vsel %vm2438, %v4326, 0.0
        %v4435 = vsel %vm2439, %v4329, 0.0
        %v4436 = vsel %vm2440, %v4334, 0.0
        %v4437 = vsel %vm2441, %v4337, 0.0
        %v4438 = vsel %vm2442, %v4342, 0.0
        %v4439 = vsel %vm2443, %v4345, 0.0
        %v4440 = vsel %vm2444, %v4350, 0.0
        %v4441 = vsel %vm2445, %v4353, 0.0
        %v4442 = vsel %vm2446, %v4358, 0.0
        %v4443 = vsel %vm2447, %v4361, 0.0
        %v4444 = vsel %vm2448, %v4366, 0.0
        %v4445 = vsel %vm2449, %v4369, 0.0
        %v4446 = vsel %vm2450, %v4374, 0.0
        %v4447 = vsel %vm2451, %v4377, 0.0
        %v4448 = vsel %vm2452, %v4382, 0.0
        %v4449 = vsel %vm2453, %v4385, 0.0
        %v4450 = vsel %vm2454, %v4390, 0.0
        %v4451 = vsel %vm2455, %v4393, 0.0
        %v4452 = vsel %vm2456, %v4398, 0.0
        %v4453 = vsel %vm2457, %v4401, 0.0
        %v4454 = vsel %vm2458, %v4406, 0.0
        %v4455 = vsel %vm2459, %v4409, 0.0
        %v4456 = vsel %vm2460, %v4414, 0.0
        %v4457 = vsel %vm2461, %v4417, 0.0
        %v4458 = vsel %vm2462, %v4422, 0.0
        %v4459 = vsel %vm2463, %v4425, 0.0
        %v4460 = vadd.f32 %v4122, %v4428
        %v4461 = vadd.f32 %v4123, %v4429
        %v4462 = vadd.f32 %v4124, %v4430
        %v4463 = vadd.f32 %v4125, %v4431
        %v4464 = vadd.f32 %v4126, %v4432
        %v4465 = vadd.f32 %v4127, %v4433
        %v4466 = vadd.f32 %v4128, %v4434
        %v4467 = vadd.f32 %v4129, %v4435
        %v4468 = vadd.f32 %v4130, %v4436
        %v4469 = vadd.f32 %v4131, %v4437
        %v4470 = vadd.f32 %v4132, %v4438
        %v4471 = vadd.f32 %v4133, %v4439
        %v4472 = vadd.f32 %v4134, %v4440
        %v4473 = vadd.f32 %v4135, %v4441
        %v4474 = vadd.f32 %v4136, %v4442
        %v4475 = vadd.f32 %v4137, %v4443
        %v4476 = vadd.f32 %v4138, %v4444
        %v4477 = vadd.f32 %v4139, %v4445
        %v4478 = vadd.f32 %v4140, %v4446
        %v4479 = vadd.f32 %v4141, %v4447
        %v4480 = vadd.f32 %v4142, %v4448
        %v4481 = vadd.f32 %v4143, %v4449
        %v4482 = vadd.f32 %v4144, %v4450
        %v4483 = vadd.f32 %v4145, %v4451
        %v4484 = vadd.f32 %v4146, %v4452
        %v4485 = vadd.f32 %v4147, %v4453
        %v4486 = vadd.f32 %v4148, %v4454
        %v4487 = vadd.f32 %v4149, %v4455
        %v4488 = vadd.f32 %v4150, %v4456
        %v4489 = vadd.f32 %v4151, %v4457
        %v4490 = vadd.f32 %v4152, %v4458
        %v4491 = vadd.f32 %v4153, %v4459
        %v4492 = vadd.f32 %v4460, %v4461
        %v4493 = vadd.f32 %v4492, %v4462
        %v4494 = vadd.f32 %v4493, %v4463
        %v4495 = vadd.f32 %v4494, %v4464
        %v4496 = vadd.f32 %v4495, %v4465
        %v4497 = vadd.f32 %v4496, %v4466
        %v4498 = vadd.f32 %v4497, %v4467
        %v4499 = vadd.f32 %v4498, %v4468
        %v4500 = vadd.f32 %v4499, %v4469
        %v4501 = vadd.f32 %v4500, %v4470
        %v4502 = vadd.f32 %v4501, %v4471
        %v4503 = vadd.f32 %v4502, %v4472
        %v4504 = vadd.f32 %v4503, %v4473
        %v4505 = vadd.f32 %v4504, %v4474
        %v4506 = vadd.f32 %v4505, %v4475
        %v4507 = vadd.f32 %v4506, %v4476
        %v4508 = vadd.f32 %v4507, %v4477
        %v4509 = vadd.f32 %v4508, %v4478
        %v4510 = vadd.f32 %v4509, %v4479
        %v4511 = vadd.f32 %v4510, %v4480
        %v4512 = vadd.f32 %v4511, %v4481
        %v4513 = vadd.f32 %v4512, %v4482
        %v4514 = vadd.f32 %v4513, %v4483
        %v4515 = vadd.f32 %v4514, %v4484
        %v4516 = vadd.f32 %v4515, %v4485
        %v4517 = vadd.f32 %v4516, %v4486
        %v4518 = vadd.f32 %v4517, %v4487
        %v4519 = vadd.f32 %v4518, %v4488
        %v4520 = vadd.f32 %v4519, %v4489
        %v4521 = vadd.f32 %v4520, %v4490
        %v4522 = vadd.f32 %v4521, %v4491
        %4523 = vadd.xlane.f32.xlu0 %v4522
        %v4524 = vpop.xlane.xlu0 %4523
        %v4525 = vrot.slane %v4524, 4
        %v4526 = vadd.f32 %v4524, %v4525
        %v4527 = vrot.slane %v4526, 2
        %v4528 = vadd.f32 %v4526, %v4527
        %v4529 = vrot.slane %v4528, 1
        %v4530 = vadd.f32 %v4528, %v4529
        %s4531 = vtos %v4530
        %v4532 = vrcp.pop 2048.0
        %s4533 = vtos %v4532
        %s4534 = smul.f32 %s4531, %s4533
        %v4535 = vmul.f32 %v4460, %v4460
        %v4536 = vmul.f32 %v4461, %v4461
        %v4537 = vmul.f32 %v4462, %v4462
        %v4538 = vmul.f32 %v4463, %v4463
        %v4539 = vmul.f32 %v4464, %v4464
        %v4540 = vmul.f32 %v4465, %v4465
        %v4541 = vmul.f32 %v4466, %v4466
        %v4542 = vmul.f32 %v4467, %v4467
        %v4543 = vmul.f32 %v4468, %v4468
        %v4544 = vmul.f32 %v4469, %v4469
        %v4545 = vmul.f32 %v4470, %v4470
        %v4546 = vmul.f32 %v4471, %v4471
        %v4547 = vmul.f32 %v4472, %v4472
        %v4548 = vmul.f32 %v4473, %v4473
        %v4549 = vmul.f32 %v4474, %v4474
        %v4550 = vmul.f32 %v4475, %v4475
        %v4551 = vmul.f32 %v4476, %v4476
        %v4552 = vmul.f32 %v4477, %v4477
        %v4553 = vmul.f32 %v4478, %v4478
        %v4554 = vmul.f32 %v4479, %v4479
        %v4555 = vmul.f32 %v4480, %v4480
        %v4556 = vmul.f32 %v4481, %v4481
        %v4557 = vmul.f32 %v4482, %v4482
        %v4558 = vmul.f32 %v4483, %v4483
        %v4559 = vmul.f32 %v4484, %v4484
        %v4560 = vmul.f32 %v4485, %v4485
        %v4561 = vmul.f32 %v4486, %v4486
        %v4562 = vmul.f32 %v4487, %v4487
        %v4563 = vmul.f32 %v4488, %v4488
        %v4564 = vmul.f32 %v4489, %v4489
        %v4565 = vmul.f32 %v4490, %v4490
        %v4566 = vmul.f32 %v4491, %v4491
        %v4567 = vadd.f32 %v4535, %v4536
        %v4568 = vadd.f32 %v4567, %v4537
        %v4569 = vadd.f32 %v4568, %v4538
        %v4570 = vadd.f32 %v4569, %v4539
        %v4571 = vadd.f32 %v4570, %v4540
        %v4572 = vadd.f32 %v4571, %v4541
        %v4573 = vadd.f32 %v4572, %v4542
        %v4574 = vadd.f32 %v4573, %v4543
        %v4575 = vadd.f32 %v4574, %v4544
        %v4576 = vadd.f32 %v4575, %v4545
        %v4577 = vadd.f32 %v4576, %v4546
        %v4578 = vadd.f32 %v4577, %v4547
        %v4579 = vadd.f32 %v4578, %v4548
        %v4580 = vadd.f32 %v4579, %v4549
        %v4581 = vadd.f32 %v4580, %v4550
        %v4582 = vadd.f32 %v4581, %v4551
        %v4583 = vadd.f32 %v4582, %v4552
        %v4584 = vadd.f32 %v4583, %v4553
        %v4585 = vadd.f32 %v4584, %v4554
        %v4586 = vadd.f32 %v4585, %v4555
        %v4587 = vadd.f32 %v4586, %v4556
        %v4588 = vadd.f32 %v4587, %v4557
        %v4589 = vadd.f32 %v4588, %v4558
        %v4590 = vadd.f32 %v4589, %v4559
        %v4591 = vadd.f32 %v4590, %v4560
        %v4592 = vadd.f32 %v4591, %v4561
        %v4593 = vadd.f32 %v4592, %v4562
        %v4594 = vadd.f32 %v4593, %v4563
        %v4595 = vadd.f32 %v4594, %v4564
        %v4596 = vadd.f32 %v4595, %v4565
        %v4597 = vadd.f32 %v4596, %v4566
        %4598 = vadd.xlane.f32.xlu0 %v4597
        %v4599 = vpop.xlane.xlu0 %4598
        %v4600 = vrot.slane %v4599, 4
        %v4601 = vadd.f32 %v4599, %v4600
        %v4602 = vrot.slane %v4601, 2
        %v4603 = vadd.f32 %v4601, %v4602
        %v4604 = vrot.slane %v4603, 1
        %v4605 = vadd.f32 %v4603, %v4604
        %s4606 = vtos %v4605
        %v4607 = vrcp.pop 2048.0
        %s4608 = vtos %v4607
        %s4609 = smul.f32 %s4606, %s4608
        %s4610 = smul.f32 %s4534, %s4534
        %s4611 = ssub.f32 %s4609, %s4610
        %v4612 = vstv %s4534
        %v4613 = vsub.f32 %v4460, %v4612
        %v4614 = vsub.f32 %v4461, %v4612
        %v4615 = vsub.f32 %v4462, %v4612
        %v4616 = vsub.f32 %v4463, %v4612
        %v4617 = vsub.f32 %v4464, %v4612
        %v4618 = vsub.f32 %v4465, %v4612
        %v4619 = vsub.f32 %v4466, %v4612
        %v4620 = vsub.f32 %v4467, %v4612
        %v4621 = vsub.f32 %v4468, %v4612
        %v4622 = vsub.f32 %v4469, %v4612
        %v4623 = vsub.f32 %v4470, %v4612
        %v4624 = vsub.f32 %v4471, %v4612
        %v4625 = vsub.f32 %v4472, %v4612
        %v4626 = vsub.f32 %v4473, %v4612
        %v4627 = vsub.f32 %v4474, %v4612
        %v4628 = vsub.f32 %v4475, %v4612
        %v4629 = vsub.f32 %v4476, %v4612
        %v4630 = vsub.f32 %v4477, %v4612
        %v4631 = vsub.f32 %v4478, %v4612
        %v4632 = vsub.f32 %v4479, %v4612
        %v4633 = vsub.f32 %v4480, %v4612
        %v4634 = vsub.f32 %v4481, %v4612
        %v4635 = vsub.f32 %v4482, %v4612
        %v4636 = vsub.f32 %v4483, %v4612
        %v4637 = vsub.f32 %v4484, %v4612
        %v4638 = vsub.f32 %v4485, %v4612
        %v4639 = vsub.f32 %v4486, %v4612
        %v4640 = vsub.f32 %v4487, %v4612
        %v4641 = vsub.f32 %v4488, %v4612
        %v4642 = vsub.f32 %v4489, %v4612
        %v4643 = vsub.f32 %v4490, %v4612
        %v4644 = vsub.f32 %v4491, %v4612
        %s4645 = sadd.f32 %s4611, 1e-05
        %v4646 = vstv %s4645
        %v4647 = vrsqrt.pop %v4646
        %s4648 = vtos %v4647
        %v4649 = vstv %s4648
        %v4650 = vmul.f32 %v4613, %v4649
        %v4651 = vmul.f32 %v4614, %v4649
        %v4652 = vmul.f32 %v4615, %v4649
        %v4653 = vmul.f32 %v4616, %v4649
        %v4654 = vmul.f32 %v4617, %v4649
        %v4655 = vmul.f32 %v4618, %v4649
        %v4656 = vmul.f32 %v4619, %v4649
        %v4657 = vmul.f32 %v4620, %v4649
        %v4658 = vmul.f32 %v4621, %v4649
        %v4659 = vmul.f32 %v4622, %v4649
        %v4660 = vmul.f32 %v4623, %v4649
        %v4661 = vmul.f32 %v4624, %v4649
        %v4662 = vmul.f32 %v4625, %v4649
        %v4663 = vmul.f32 %v4626, %v4649
        %v4664 = vmul.f32 %v4627, %v4649
        %v4665 = vmul.f32 %v4628, %v4649
        %v4666 = vmul.f32 %v4629, %v4649
        %v4667 = vmul.f32 %v4630, %v4649
        %v4668 = vmul.f32 %v4631, %v4649
        %v4669 = vmul.f32 %v4632, %v4649
        %v4670 = vmul.f32 %v4633, %v4649
        %v4671 = vmul.f32 %v4634, %v4649
        %v4672 = vmul.f32 %v4635, %v4649
        %v4673 = vmul.f32 %v4636, %v4649
        %v4674 = vmul.f32 %v4637, %v4649
        %v4675 = vmul.f32 %v4638, %v4649
        %v4676 = vmul.f32 %v4639, %v4649
        %v4677 = vmul.f32 %v4640, %v4649
        %v4678 = vmul.f32 %v4641, %v4649
        %v4679 = vmul.f32 %v4642, %v4649
        %v4680 = vmul.f32 %v4643, %v4649
        %v4681 = vmul.f32 %v4644, %v4649
        %v4682 = vld [vmem:[%s5] sm:$0x1]
        %v4684 = vlaneseq
        %v4685 = vshrl.u32 %v4684, 7
        %v4686 = vsub.s32 0, %v4685
        %v4687 = vrot.slane %v4682, %v4686
        %v4689 = vmul.f32 %v4650, %v4687
        %v4690 = vmul.f32 %v4651, %v4687
        %v4691 = vmul.f32 %v4652, %v4687
        %v4692 = vmul.f32 %v4653, %v4687
        %v4693 = vmul.f32 %v4654, %v4687
        %v4694 = vmul.f32 %v4655, %v4687
        %v4695 = vmul.f32 %v4656, %v4687
        %v4696 = vmul.f32 %v4657, %v4687
        %v4697 = vmul.f32 %v4658, %v4687
        %v4698 = vmul.f32 %v4659, %v4687
        %v4699 = vmul.f32 %v4660, %v4687
        %v4700 = vmul.f32 %v4661, %v4687
        %v4701 = vmul.f32 %v4662, %v4687
        %v4702 = vmul.f32 %v4663, %v4687
        %v4703 = vmul.f32 %v4664, %v4687
        %v4704 = vmul.f32 %v4665, %v4687
        %v4705 = vmul.f32 %v4666, %v4687
        %v4706 = vmul.f32 %v4667, %v4687
        %v4707 = vmul.f32 %v4668, %v4687
        %v4708 = vmul.f32 %v4669, %v4687
        %v4709 = vmul.f32 %v4670, %v4687
        %v4710 = vmul.f32 %v4671, %v4687
        %v4711 = vmul.f32 %v4672, %v4687
        %v4712 = vmul.f32 %v4673, %v4687
        %v4713 = vmul.f32 %v4674, %v4687
        %v4714 = vmul.f32 %v4675, %v4687
        %v4715 = vmul.f32 %v4676, %v4687
        %v4716 = vmul.f32 %v4677, %v4687
        %v4717 = vmul.f32 %v4678, %v4687
        %v4718 = vmul.f32 %v4679, %v4687
        %v4719 = vmul.f32 %v4680, %v4687
        %v4720 = vmul.f32 %v4681, %v4687
        %v4721 = vld [vmem:[%s6] sm:$0x1]
        %v4723 = vlaneseq
        %v4724 = vshrl.u32 %v4723, 7
        %v4725 = vsub.s32 0, %v4724
        %v4726 = vrot.slane %v4721, %v4725
        %v4728 = vadd.f32 %v4689, %v4726
        %v4729 = vadd.f32 %v4690, %v4726
        %v4730 = vadd.f32 %v4691, %v4726
        %v4731 = vadd.f32 %v4692, %v4726
        %v4732 = vadd.f32 %v4693, %v4726
        %v4733 = vadd.f32 %v4694, %v4726
        %v4734 = vadd.f32 %v4695, %v4726
        %v4735 = vadd.f32 %v4696, %v4726
        %v4736 = vadd.f32 %v4697, %v4726
        %v4737 = vadd.f32 %v4698, %v4726
        %v4738 = vadd.f32 %v4699, %v4726
        %v4739 = vadd.f32 %v4700, %v4726
        %v4740 = vadd.f32 %v4701, %v4726
        %v4741 = vadd.f32 %v4702, %v4726
        %v4742 = vadd.f32 %v4703, %v4726
        %v4743 = vadd.f32 %v4704, %v4726
        %v4744 = vadd.f32 %v4705, %v4726
        %v4745 = vadd.f32 %v4706, %v4726
        %v4746 = vadd.f32 %v4707, %v4726
        %v4747 = vadd.f32 %v4708, %v4726
        %v4748 = vadd.f32 %v4709, %v4726
        %v4749 = vadd.f32 %v4710, %v4726
        %v4750 = vadd.f32 %v4711, %v4726
        %v4751 = vadd.f32 %v4712, %v4726
        %v4752 = vadd.f32 %v4713, %v4726
        %v4753 = vadd.f32 %v4714, %v4726
        %v4754 = vadd.f32 %v4715, %v4726
        %v4755 = vadd.f32 %v4716, %v4726
        %v4756 = vadd.f32 %v4717, %v4726
        %v4757 = vadd.f32 %v4718, %v4726
        %v4758 = vadd.f32 %v4719, %v4726
        %v4759 = vadd.f32 %v4720, %v4726
        %v4760 = vmax.f32 %v4728, 0.0
        %v4761 = vmax.f32 %v4729, 0.0
        %v4762 = vmax.f32 %v4730, 0.0
        %v4763 = vmax.f32 %v4731, 0.0
        %v4764 = vmax.f32 %v4732, 0.0
        %v4765 = vmax.f32 %v4733, 0.0
        %v4766 = vmax.f32 %v4734, 0.0
        %v4767 = vmax.f32 %v4735, 0.0
        %v4768 = vmax.f32 %v4736, 0.0
        %v4769 = vmax.f32 %v4737, 0.0
        %v4770 = vmax.f32 %v4738, 0.0
        %v4771 = vmax.f32 %v4739, 0.0
        %v4772 = vmax.f32 %v4740, 0.0
        %v4773 = vmax.f32 %v4741, 0.0
        %v4774 = vmax.f32 %v4742, 0.0
        %v4775 = vmax.f32 %v4743, 0.0
        %v4776 = vmax.f32 %v4744, 0.0
        %v4777 = vmax.f32 %v4745, 0.0
        %v4778 = vmax.f32 %v4746, 0.0
        %v4779 = vmax.f32 %v4747, 0.0
        %v4780 = vmax.f32 %v4748, 0.0
        %v4781 = vmax.f32 %v4749, 0.0
        %v4782 = vmax.f32 %v4750, 0.0
        %v4783 = vmax.f32 %v4751, 0.0
        %v4784 = vmax.f32 %v4752, 0.0
        %v4785 = vmax.f32 %v4753, 0.0
        %v4786 = vmax.f32 %v4754, 0.0
        %v4787 = vmax.f32 %v4755, 0.0
        %v4788 = vmax.f32 %v4756, 0.0
        %v4789 = vmax.f32 %v4757, 0.0
        %v4790 = vmax.f32 %v4758, 0.0
        %v4791 = vmax.f32 %v4759, 0.0
        %v4792 = vadd.f32 %v4760, %v327
        %v4793 = vadd.f32 %v4761, %v328
        %v4794 = vadd.f32 %v4762, %v329
        %v4795 = vadd.f32 %v4763, %v330
        %v4796 = vadd.f32 %v4764, %v331
        %v4797 = vadd.f32 %v4765, %v332
        %v4798 = vadd.f32 %v4766, %v333
        %v4799 = vadd.f32 %v4767, %v334
        %v4800 = vadd.f32 %v4768, %v335
        %v4801 = vadd.f32 %v4769, %v336
        %v4802 = vadd.f32 %v4770, %v337
        %v4803 = vadd.f32 %v4771, %v338
        %v4804 = vadd.f32 %v4772, %v339
        %v4805 = vadd.f32 %v4773, %v340
        %v4806 = vadd.f32 %v4774, %v341
        %v4807 = vadd.f32 %v4775, %v342
        %v4808 = vadd.f32 %v4776, %v343
        %v4809 = vadd.f32 %v4777, %v344
        %v4810 = vadd.f32 %v4778, %v345
        %v4811 = vadd.f32 %v4779, %v346
        %v4812 = vadd.f32 %v4780, %v347
        %v4813 = vadd.f32 %v4781, %v348
        %v4814 = vadd.f32 %v4782, %v349
        %v4815 = vadd.f32 %v4783, %v350
        %v4816 = vadd.f32 %v4784, %v351
        %v4817 = vadd.f32 %v4785, %v352
        %v4818 = vadd.f32 %v4786, %v353
        %v4819 = vadd.f32 %v4787, %v354
        %v4820 = vadd.f32 %v4788, %v355
        %v4821 = vadd.f32 %v4789, %v356
        %v4822 = vadd.f32 %v4790, %v357
        %v4823 = vadd.f32 %v4791, %v358
        %4824 = vst [vmem:[%s325] sm:$0xff] %v4792
        %4825 = vst [vmem:[%s325 + $0x8] sm:$0xff] %v4793
        %4826 = vst [vmem:[%s325 + $0x10] sm:$0xff] %v4794
        %4827 = vst [vmem:[%s325 + $0x18] sm:$0xff] %v4795
        %4828 = vst [vmem:[%s325 + $0x20] sm:$0xff] %v4796
        %4829 = vst [vmem:[%s325 + $0x28] sm:$0xff] %v4797
        %4830 = vst [vmem:[%s325 + $0x30] sm:$0xff] %v4798
        %4831 = vst [vmem:[%s325 + $0x38] sm:$0xff] %v4799
        %4832 = vst [vmem:[%s325 + $0x40] sm:$0xff] %v4800
        %4833 = vst [vmem:[%s325 + $0x48] sm:$0xff] %v4801
        %4834 = vst [vmem:[%s325 + $0x50] sm:$0xff] %v4802
        %4835 = vst [vmem:[%s325 + $0x58] sm:$0xff] %v4803
        %4836 = vst [vmem:[%s325 + $0x60] sm:$0xff] %v4804
        %4837 = vst [vmem:[%s325 + $0x68] sm:$0xff] %v4805
        %4838 = vst [vmem:[%s325 + $0x70] sm:$0xff] %v4806
        %4839 = vst [vmem:[%s325 + $0x78] sm:$0xff] %v4807
        %4840 = vst [vmem:[%s325 + $0x80] sm:$0xff] %v4808
        %4841 = vst [vmem:[%s325 + $0x88] sm:$0xff] %v4809
        %4842 = vst [vmem:[%s325 + $0x90] sm:$0xff] %v4810
        %4843 = vst [vmem:[%s325 + $0x98] sm:$0xff] %v4811
        %4844 = vst [vmem:[%s325 + $0xa0] sm:$0xff] %v4812
        %4845 = vst [vmem:[%s325 + $0xa8] sm:$0xff] %v4813
        %4846 = vst [vmem:[%s325 + $0xb0] sm:$0xff] %v4814
        %4847 = vst [vmem:[%s325 + $0xb8] sm:$0xff] %v4815
        %4848 = vst [vmem:[%s325 + $0xc0] sm:$0xff] %v4816
        %4849 = vst [vmem:[%s325 + $0xc8] sm:$0xff] %v4817
        %4850 = vst [vmem:[%s325 + $0xd0] sm:$0xff] %v4818
        %4851 = vst [vmem:[%s325 + $0xd8] sm:$0xff] %v4819
        %4852 = vst [vmem:[%s325 + $0xe0] sm:$0xff] %v4820
        %4853 = vst [vmem:[%s325 + $0xe8] sm:$0xff] %v4821
        %4854 = vst [vmem:[%s325 + $0xf0] sm:$0xff] %v4822
        %4855 = vst [vmem:[%s325 + $0xf8] sm:$0xff] %v4823
        %s4856 = sand.u32 %s185, 1
        %s4857 = scalar_lea.sflag [#allocation5], %s4856
        %s4858 = sand.u32 %s185, 1
        %s4859 = smul.addr %s4858, 256
        %s4860 = scalar_lea.vmem [#allocation9], %s4859
        // Predicated region
        $region61: #{tpu_custom_call.1} parent=47 // pred_check
          %p4861 = pneg %p195
        $region62: #{tpu_custom_call.1} parent=47 // pred_check_branch
          %4863 = sbr.rel (%p4861) target = $region64
        $region63: #{tpu_custom_call.1} parent=47 // pred_region
          %s4865 = ssub.s32 4096, 4096
          %4866 = vsyncadd %s4857, %s4865
          %s4867 = smul.addr %s25, 32
          %s4868 = smul.addr %s4867, 128
          %s4869 = scalar_lea.hbm %s7, %s4868
          %s4870 = sshll.u32 %s4860, 4
          %s4871 = int_to_ptr.vmem [resolvable:$true] %s4870
          %4876 = dma.vmem_to_hbm [thread:$0]  %s4871, 4096, %s4869, %s4857, 128, 128, 8
        $region64: #{tpu_custom_call.1} parent=47 // pred_fallthru
          _
      $region48: #{tpu_custom_call.1} parent=5 // pred_fallthru
        _
      %p4877 = scmp.le.s32.totalorder 2, %s20
      // Predicated region
      $region65: #{tpu_custom_call.1} parent=5 // pred_check
        %p4878 = pneg %p4877
      $region66: #{tpu_custom_call.1} parent=5 // pred_check_branch
        %4880 = sbr.rel (%p4878) target = $region68
      $region67: #{tpu_custom_call.1} parent=5 // pred_region
        %s4881 = ssub.s32 %s20, 2
        // Predicated region
        $region69: #{tpu_custom_call.1} parent=67 // pred_check
          %p4882 = pneg %p201
        $region70: #{tpu_custom_call.1} parent=67 // pred_check_branch
          %4884 = sbr.rel (%p4882) target = $region72
        $region71: #{tpu_custom_call.1} parent=67 // pred_region
          %s4885 = sand.u32 %s186, 1
          %s4886 = scalar_lea.sflag [#allocation5], %s4885
          %s4887 = sand.u32 %s186, 1
          %s4888 = smul.addr %s4887, 256
          %s4889 = scalar_lea.vmem [#allocation9], %s4888
          %4890 = dma.done %s4886, 4096
        $region72: #{tpu_custom_call.1} parent=67 // pred_fallthru
          _
      $region68: #{tpu_custom_call.1} parent=5 // pred_fallthru
        _
    $region6: #{tpu_custom_call.1} parent=1 // loop_footer
      %s24 = sadd.s32 1, %s20
    $region7: #{tpu_custom_call.1} parent=1 // loop_footer_branch
      %19 = sbr.rel target = $region3
    $region8: #{tpu_custom_call.1} parent=1 // loop_exit
      _
    %4891 = vsyncpa [#allocation4], 1
    %s4892 = scalar_lea.sflag [#allocation4], 1
    %4893 = vsyncpa %s4892, 1
    %4894 = vsyncpa [#allocation7], 1
    %4895 = vsyncpa [#allocation5], 1
    %s4896 = scalar_lea.sflag [#allocation5], 1
    %4897 = vsyncpa %s4896, 1

</llo_original>
